<compile_context>
chip_gen: v7x
topology: tpu7x:2x2x1
jax: 0.10.0
libtpu: 0.0.40
codegen_flags: <defaults>
</compile_context>

<pallas_src>
import math
from functools import partial

import jax
import jax.numpy as jnp
import numpy as np
from jax.experimental import pallas as pl
from jax.experimental.pallas import tpu as pltpu

_VMEM = pl.BlockSpec(memory_space=pltpu.MemorySpace.VMEM)


# ------------------- torch transpose(1,2).view reorder ---------------------- #
# For a per-batch attention output ao : (N, D), torch computes
#     reshape(ao.T, (N, D))        (row-major)
# which is a fixed permutation of the N*D elements.  We express it as
#     sum_s  L_s @ ao.T @ R_s
# with 0/1 matrices L_s, R_s of shape (N, D), grouping contiguous
# length-gcd(N, D) runs that share the same column shift.  0/1 matmuls are
# exact in f32 and lower to standard MXU ops inside the kernel.

def _reorder_decomposition(N, D):
    g = math.gcd(N, D)
    n_chunks = (N * D) // g

    def chunk(t):
        f = t * g
        d, n0 = divmod(f, N)          # source: ao.T[d, n0:n0+g]
        r, c0 = divmod(f, D)          # dest:   out[r, c0:c0+g]
        return r, d, n0, c0

    def build(groups):
        Ls, Rs = [], []
        for chunks in groups:
            L = np.zeros((N, D), np.float32)
            R = np.zeros((N, D), np.float32)
            for (r, d, n0, c0) in chunks:
                L[r, d] = 1.0
                for j in range(g):
                    R[n0 + j, c0 + j] = 1.0
            Ls.append(L)
            Rs.append(R)
        return np.stack(Ls), np.stack(Rs)

    # few-term construction (group chunks by column shift), verified below
    by_shift = {}
    for t in range(n_chunks):
        r, d, n0, c0 = chunk(t)
        by_shift.setdefault(c0 - n0, []).append((r, d, n0, c0))
    L, R = build(list(by_shift.values()))

    x = np.random.default_rng(0).standard_normal((N, D))
    want = x.T.reshape(N, D)
    got = np.einsum('srd,dn,snc->rc', L, x.T, R)
    if not np.allclose(got, want, rtol=0.0, atol=1e-9):
        # always-correct fallback: one term per chunk (more, tinier matmuls)
        L, R = build([[chunk(t)] for t in range(n_chunks)])
    return L, R


# ------------------------------ Pallas kernel ------------------------------- #

def _node_decoder_kernel(node_ref, cent_ref, perml_ref, permr_ref,
                         wq_ref, bq_ref, wk_ref, bk_ref, wv_ref, bv_ref,
                         wo_ref, bo_ref, bn_g_ref, bn_b_ref, al_ref, ab_ref,
                         w1_ref, b1_ref, w2_ref, b2_ref,
                         out_ref, reord_scratch,
                         *, B, N, num_blocks, n_perm):
    """Entire NodeDecoder forward, all blocks fused, activations VMEM-resident.

    node_ref: (B*N, D)  cent_ref: (B, C, Cd)  out_ref: (B*N, D)
    per-block weights stacked on a leading num_blocks axis.
    """
    f32 = jnp.float32
    x = node_ref[...]                                   # (B*N, D)
    cents = [cent_ref[b] for b in range(B)]             # each (C, Cd)
    perms = [(perml_ref[s], permr_ref[s]) for s in range(n_perm)]

    for i in range(num_blocks):                         # static unrolled blocks
        # ---- P2C attention (1/sqrt(D) scale pre-folded into wq/bq) ----
        q = jnp.dot(x, wq_ref[i], preferred_element_type=f32) + bq_ref[i]
        for b in range(B):                              # B is tiny, static
            k = jnp.dot(cents[b], wk_ref[i], preferred_element_type=f32) + bk_ref[i]
            v = jnp.dot(cents[b], wv_ref[i], preferred_element_type=f32) + bv_ref[i]
            qb = q[b * N:(b + 1) * N, :]                # (N, D) aligned slice
            s = jax.lax.dot_general(qb, k, (((1,), (1,)), ((), ())),
                                    preferred_element_type=f32)       # (N, C)
            s_max = jnp.max(s, axis=-1, keepdims=True)
            e = jnp.exp(s - s_max)
            p = e * pl.reciprocal(jnp.sum(e, axis=-1, keepdims=True),
                                  approx=True)
            aoT = jnp.dot(p, v, preferred_element_type=f32).T          # (D, N)
            # torch transpose(1,2).view(B,-1,D) reorder as permutation matmuls
            rb = None
            for (Lp, Rp) in perms:
                t = jnp.dot(jnp.dot(Lp, aoT, preferred_element_type=f32),
                            Rp, preferred_element_type=f32)            # (N, D)
                rb = t if rb is None else rb + t
            reord_scratch[b * N:(b + 1) * N, :] = rb
        reord = reord_scratch[...]                                     # (B*N, D)

        # ---- Output linear + Add & BatchNorm (training-mode batch stats) ----
        ao = jnp.dot(reord, wo_ref[i], preferred_element_type=f32) + bo_ref[i]
        z = x + ao
        mean = jnp.mean(z, axis=0, keepdims=True)                      # (1, D)
        var = jnp.mean((z - mean) ** 2, axis=0, keepdims=True)         # biased
        zn = (z - mean) * jax.lax.rsqrt(var + 1e-5)
        zn = zn * bn_g_ref[i] + bn_b_ref[i]
        z = al_ref[i] * zn + ab_ref[i]

        # ---- FeedForward: Linear -> ReLU -> Linear ----
        h = jnp.maximum(
            jnp.dot(z, w1_ref[i], preferred_element_type=f32) + b1_ref[i], 0.0)
        x = jnp.dot(h, w2_ref[i], preferred_element_type=f32) + b2_ref[i]

    out_ref[...] = x


# ------------------------------ JAX wrapper --------------------------------- #

def node_decoder_forward(node_embed, centroids, block_params, num_nodes):
    B = node_embed.shape[0]
    D = node_embed.shape[-1]
    node3 = node_embed.reshape(B, -1, D)     # torch.reshape(node_embed,(B,-1,D))
    N = node3.shape[1]
    node2 = node3.reshape(B * N, D)
    nb = len(block_params)
    scale = 1.0 / float(D) ** 0.5

    stack = lambda key: jnp.stack([p[key] for p in block_params], axis=0)
    wq = jnp.stack([p['wq'] * scale for p in block_params], axis=0)   # fold scale
    bq = jnp.stack([p['bq'] * scale for p in block_params], axis=0)
    wk, bk, wv, bv = stack('wk'), stack('bk'), stack('wv'), stack('bv')
    wo, bo = stack('wo'), stack('bo')
    bn_g, bn_b = stack('bn_gamma'), stack('bn_beta')
    a_al, a_bi = stack('abn_alpha'), stack('abn_bias')
    w1, b1, w2, b2 = stack('w1'), stack('b1'), stack('w2'), stack('b2')

    perm_l_np, perm_r_np = _reorder_decomposition(N, D)
    perm_l = jnp.asarray(perm_l_np)
    perm_r = jnp.asarray(perm_r_np)

    kernel = partial(_node_decoder_kernel, B=B, N=N, num_blocks=nb,
                     n_perm=int(perm_l.shape[0]))
    out2 = pl.pallas_call(
        kernel,
        out_shape=jax.ShapeDtypeStruct((B * N, D), jnp.float32),
        in_specs=[_VMEM] * 20,
        out_specs=_VMEM,
        scratch_shapes=[pltpu.VMEM((B * N, D), jnp.float32)],
    )(node2, centroids, perm_l, perm_r, wq, bq, wk, bk, wv, bv, wo, bo,
      bn_g, bn_b, a_al, a_bi, w1, b1, w2, b2)
    return out2.reshape(B, -1, num_nodes, D)


# --------------------------- parameter creation ----------------------------- #
# NOTE: self.alpha = nn.Parameter(torch.tensor([1.0])) and self.attn_output in
# __init__ are unused in forward(), so they are not materialized here.

def _init_linear(key, fan_in, fan_out):
    kw, kb = jax.random.split(key)
    bound = 1.0 / math.sqrt(fan_in)
    w = jax.random.uniform(kw, (fan_in, fan_out), jnp.float32, -bound, bound)
    b = jax.random.uniform(kb, (1, fan_out), jnp.float32, -bound, bound)
    return w, b


def init_node_decoder_params(key, node_dim, centroid_dim, num_of_blocks):
    blocks = []
    for _ in range(num_of_blocks):
        key, k0, k1, k2, k3, k4, k5 = jax.random.split(key, 7)
        wq, bq = _init_linear(k0, node_dim, node_dim)
        wk, bk = _init_linear(k1, centroid_dim, node_dim)
        wv, bv = _init_linear(k2, centroid_dim, node_dim)
        wo, bo = _init_linear(k3, node_dim, node_dim)
        w1, b1 = _init_linear(k4, node_dim, node_dim)
        w2, b2 = _init_linear(k5, node_dim, node_dim)
        blocks.append(dict(
            wq=wq, bq=bq, wk=wk, bk=bk, wv=wv, bv=bv, wo=wo, bo=bo,
            bn_gamma=jnp.ones((1, node_dim), jnp.float32),
            bn_beta=jnp.zeros((1, node_dim), jnp.float32),
            abn_alpha=jnp.ones((1, node_dim), jnp.float32),
            abn_bias=jnp.zeros((1, node_dim), jnp.float32),
            w1=w1, b1=b1, w2=w2, b2=b2,
        ))
    return blocks


# ------------------------------ pure-JAX ref -------------------------------- #

def node_decoder_reference(node_embed, centroids, block_params, num_nodes):
    B = node_embed.shape[0]
    D = node_embed.shape[-1]
    node = node_embed.reshape(B, -1, D)
    N = node.shape[1]
    with jax.default_matmul_precision("highest"):
        for p in block_params:
            q = node @ p['wq'] + p['bq']
            k = centroids @ p['wk'] + p['bk']
            v = centroids @ p['wv'] + p['bv']
            s = jnp.einsum('bnd,bcd->bnc', q, k) / (D ** 0.5)
            w = jax.nn.softmax(s, axis=-1)
            ao = jnp.einsum('bnc,bcd->bnd', w, v)
            ao = jnp.transpose(ao, (0, 2, 1)).reshape(B, N, D)
            ao = ao @ p['wo'] + p['bo']
            z = node + ao
            mean = jnp.mean(z, axis=(0, 1), keepdims=True)
            var = jnp.mean((z - mean) ** 2, axis=(0, 1), keepdims=True)
            zn = (z - mean) / jnp.sqrt(var + 1e-5)
            zn = zn * p['bn_gamma'] + p['bn_beta']
            z = p['abn_alpha'] * zn + p['abn_bias']
            h = jnp.maximum(z @ p['w1'] + p['b1'], 0.0)
            node = h @ p['w2'] + p['b2']
    return node.reshape(B, -1, num_nodes, D)


# ----------------------------------- main ----------------------------------- #

if __name__ == "__main__":
    # model_args: feature/diw/tid/adaptive embedding dims = 8 each -> D = 32
    D = 32
    num_nodes = 8
    T = 2                 # extra leading steps dim folded into N = T * num_nodes
    B = 2
    C = 4                 # number of centroids
    centroid_dim = 16
    num_of_blocks = 2

    key = jax.random.PRNGKey(0)
    k_node, k_cent, k_par = jax.random.split(key, 3)
    node_embed = jax.random.normal(k_node, (B, T, num_nodes, D), jnp.float32)
    centroids = jax.random.normal(k_cent, (B, C, centroid_dim), jnp.float32)
    params = init_node_decoder_params(k_par, D, centroid_dim, num_of_blocks)

    out = node_decoder_forward(node_embed, centroids, params, num_nodes)
    out = jax.block_until_ready(out)
    assert out.shape == (B, T, num_nodes, D), out.shape

    ref = node_decoder_reference(node_embed, centroids, params, num_nodes)
    np.testing.assert_allclose(np.asarray(out), np.asarray(ref),
                               rtol=1e-2, atol=1e-2)
    print("KERNEL_OK")
</pallas_src>

<mosaic_0001>
module attributes {stable_mosaic.version = 11 : i64} {
  func.func @_node_decoder_kernel(%arg0: memref<32x32xf32, #tpu.memory_space<vmem>>, %arg1: memref<2x4x16xf32, #tpu.memory_space<vmem>>, %arg2: memref<2x16x32xf32, #tpu.memory_space<vmem>>, %arg3: memref<2x16x32xf32, #tpu.memory_space<vmem>>, %arg4: memref<2x32x32xf32, #tpu.memory_space<vmem>>, %arg5: memref<2x1x32xf32, #tpu.memory_space<vmem>>, %arg6: memref<2x16x32xf32, #tpu.memory_space<vmem>>, %arg7: memref<2x1x32xf32, #tpu.memory_space<vmem>>, %arg8: memref<2x16x32xf32, #tpu.memory_space<vmem>>, %arg9: memref<2x1x32xf32, #tpu.memory_space<vmem>>, %arg10: memref<2x32x32xf32, #tpu.memory_space<vmem>>, %arg11: memref<2x1x32xf32, #tpu.memory_space<vmem>>, %arg12: memref<2x1x32xf32, #tpu.memory_space<vmem>>, %arg13: memref<2x1x32xf32, #tpu.memory_space<vmem>>, %arg14: memref<2x1x32xf32, #tpu.memory_space<vmem>>, %arg15: memref<2x1x32xf32, #tpu.memory_space<vmem>>, %arg16: memref<2x32x32xf32, #tpu.memory_space<vmem>>, %arg17: memref<2x1x32xf32, #tpu.memory_space<vmem>>, %arg18: memref<2x32x32xf32, #tpu.memory_space<vmem>>, %arg19: memref<2x1x32xf32, #tpu.memory_space<vmem>>, %arg20: memref<32x32xf32, #tpu.memory_space<vmem>>, %arg21: memref<32x32xf32, #tpu.memory_space<vmem>>) attributes {dimension_semantics = [], scalar_prefetch = 0 : i64, scratch_operands = 1 : i64, tpu.core_type = #tpu.core_type<tc>} {
    %c0 = arith.constant 0 : index
    %c0_0 = arith.constant 0 : index
    %0 = vector.load %arg0[%c0, %c0_0] : memref<32x32xf32, #tpu.memory_space<vmem>>, vector<32x32xf32>
    %c0_1 = arith.constant 0 : index
    %c0_2 = arith.constant 0 : index
    %c0_3 = arith.constant 0 : index
    %1 = vector.load %arg1[%c0_1, %c0_2, %c0_3] : memref<2x4x16xf32, #tpu.memory_space<vmem>>, vector<1x4x16xf32>
    %2 = vector.shape_cast %1 : vector<1x4x16xf32> to vector<4x16xf32>
    %c1 = arith.constant 1 : index
    %c0_4 = arith.constant 0 : index
    %c0_5 = arith.constant 0 : index
    %3 = vector.load %arg1[%c1, %c0_4, %c0_5] : memref<2x4x16xf32, #tpu.memory_space<vmem>>, vector<1x4x16xf32>
    %4 = vector.shape_cast %3 : vector<1x4x16xf32> to vector<4x16xf32>
    %c0_6 = arith.constant 0 : index
    %c0_7 = arith.constant 0 : index
    %c0_8 = arith.constant 0 : index
    %5 = vector.load %arg2[%c0_6, %c0_7, %c0_8] : memref<2x16x32xf32, #tpu.memory_space<vmem>>, vector<1x16x32xf32>
    %6 = vector.shape_cast %5 : vector<1x16x32xf32> to vector<16x32xf32>
    %c0_9 = arith.constant 0 : index
    %c0_10 = arith.constant 0 : index
    %c0_11 = arith.constant 0 : index
    %7 = vector.load %arg3[%c0_9, %c0_10, %c0_11] : memref<2x16x32xf32, #tpu.memory_space<vmem>>, vector<1x16x32xf32>
    %8 = vector.shape_cast %7 : vector<1x16x32xf32> to vector<16x32xf32>
    %c1_12 = arith.constant 1 : index
    %c0_13 = arith.constant 0 : index
    %c0_14 = arith.constant 0 : index
    %9 = vector.load %arg2[%c1_12, %c0_13, %c0_14] : memref<2x16x32xf32, #tpu.memory_space<vmem>>, vector<1x16x32xf32>
    %10 = vector.shape_cast %9 : vector<1x16x32xf32> to vector<16x32xf32>
    %c1_15 = arith.constant 1 : index
    %c0_16 = arith.constant 0 : index
    %c0_17 = arith.constant 0 : index
    %11 = vector.load %arg3[%c1_15, %c0_16, %c0_17] : memref<2x16x32xf32, #tpu.memory_space<vmem>>, vector<1x16x32xf32>
    %12 = vector.shape_cast %11 : vector<1x16x32xf32> to vector<16x32xf32>
    %c0_18 = arith.constant 0 : index
    %c0_19 = arith.constant 0 : index
    %c0_20 = arith.constant 0 : index
    %13 = vector.load %arg4[%c0_18, %c0_19, %c0_20] : memref<2x32x32xf32, #tpu.memory_space<vmem>>, vector<1x32x32xf32>
    %14 = vector.shape_cast %13 : vector<1x32x32xf32> to vector<32x32xf32>
    %cst = arith.constant dense<0.000000e+00> : vector<32x32xf32>
    %15 = tpu.matmul %0, %14, %cst {dimension_numbers = #tpu.dot_dimension_numbers<[1], [0], [0], [1], [0, 0, 1, 1], [], []>} : vector<32x32xf32>, vector<32x32xf32>, vector<32x32xf32> -> vector<32x32xf32>
    %c0_21 = arith.constant 0 : index
    %c0_22 = arith.constant 0 : index
    %c0_23 = arith.constant 0 : index
    %16 = vector.load %arg5[%c0_21, %c0_22, %c0_23] : memref<2x1x32xf32, #tpu.memory_space<vmem>>, vector<1x1x32xf32>
    %17 = vector.shape_cast %16 : vector<1x1x32xf32> to vector<1x32xf32>
    %18 = vector.broadcast %17 : vector<1x32xf32> to vector<32x32xf32>
    %19 = arith.addf %15, %18 : vector<32x32xf32>
    %c0_24 = arith.constant 0 : index
    %c0_25 = arith.constant 0 : index
    %c0_26 = arith.constant 0 : index
    %20 = vector.load %arg6[%c0_24, %c0_25, %c0_26] : memref<2x16x32xf32, #tpu.memory_space<vmem>>, vector<1x16x32xf32>
    %21 = vector.shape_cast %20 : vector<1x16x32xf32> to vector<16x32xf32>
    %cst_27 = arith.constant dense<0.000000e+00> : vector<4x32xf32>
    %22 = tpu.matmul %2, %21, %cst_27 {dimension_numbers = #tpu.dot_dimension_numbers<[1], [0], [0], [1], [0, 0, 1, 1], [], []>} : vector<4x16xf32>, vector<16x32xf32>, vector<4x32xf32> -> vector<4x32xf32>
    %c0_28 = arith.constant 0 : index
    %c0_29 = arith.constant 0 : index
    %c0_30 = arith.constant 0 : index
    %23 = vector.load %arg7[%c0_28, %c0_29, %c0_30] : memref<2x1x32xf32, #tpu.memory_space<vmem>>, vector<1x1x32xf32>
    %24 = vector.shape_cast %23 : vector<1x1x32xf32> to vector<1x32xf32>
    %25 = vector.broadcast %24 : vector<1x32xf32> to vector<4x32xf32>
    %26 = arith.addf %22, %25 : vector<4x32xf32>
    %c0_31 = arith.constant 0 : index
    %c0_32 = arith.constant 0 : index
    %c0_33 = arith.constant 0 : index
    %27 = vector.load %arg8[%c0_31, %c0_32, %c0_33] : memref<2x16x32xf32, #tpu.memory_space<vmem>>, vector<1x16x32xf32>
    %28 = vector.shape_cast %27 : vector<1x16x32xf32> to vector<16x32xf32>
    %cst_34 = arith.constant dense<0.000000e+00> : vector<4x32xf32>
    %29 = tpu.matmul %2, %28, %cst_34 {dimension_numbers = #tpu.dot_dimension_numbers<[1], [0], [0], [1], [0, 0, 1, 1], [], []>} : vector<4x16xf32>, vector<16x32xf32>, vector<4x32xf32> -> vector<4x32xf32>
    %c0_35 = arith.constant 0 : index
    %c0_36 = arith.constant 0 : index
    %c0_37 = arith.constant 0 : index
    %30 = vector.load %arg9[%c0_35, %c0_36, %c0_37] : memref<2x1x32xf32, #tpu.memory_space<vmem>>, vector<1x1x32xf32>
    %31 = vector.shape_cast %30 : vector<1x1x32xf32> to vector<1x32xf32>
    %32 = vector.broadcast %31 : vector<1x32xf32> to vector<4x32xf32>
    %33 = arith.addf %29, %32 : vector<4x32xf32>
    %34 = vector.extract_strided_slice %19 {offsets = [0, 0], sizes = [16, 32], strides = [1, 1]} : vector<32x32xf32> to vector<16x32xf32>
    %cst_38 = arith.constant dense<0.000000e+00> : vector<16x4xf32>
    %35 = tpu.matmul %34, %26, %cst_38 {dimension_numbers = #tpu.dot_dimension_numbers<[1], [1], [0], [0], [0, 0, 1, 0], [], []>} : vector<16x32xf32>, vector<4x32xf32>, vector<16x4xf32> -> vector<16x4xf32>
    %cst_39 = arith.constant dense<0xFF800000> : vector<16xf32>
    %36 = vector.multi_reduction <maximumf>, %35, %cst_39 [1] : vector<16x4xf32> to vector<16xf32>
    %37 = vector.shape_cast %36 : vector<16xf32> to vector<16x1xf32>
    %38 = vector.broadcast %37 : vector<16x1xf32> to vector<16x4xf32>
    %39 = arith.subf %35, %38 : vector<16x4xf32>
    %40 = math.exp %39 : vector<16x4xf32>
    %cst_40 = arith.constant dense<0.000000e+00> : vector<16xf32>
    %41 = vector.multi_reduction <add>, %40, %cst_40 [1] : vector<16x4xf32> to vector<16xf32>
    %42 = vector.shape_cast %41 : vector<16xf32> to vector<16x1xf32>
    %43 = tpu.reciprocal %42 {approx = true} : vector<16x1xf32> -> vector<16x1xf32>
    %44 = vector.broadcast %43 : vector<16x1xf32> to vector<16x4xf32>
    %45 = arith.mulf %40, %44 : vector<16x4xf32>
    %cst_41 = arith.constant dense<0.000000e+00> : vector<16x32xf32>
    %46 = tpu.matmul %45, %33, %cst_41 {dimension_numbers = #tpu.dot_dimension_numbers<[1], [0], [0], [1], [0, 0, 1, 1], [], []>} : vector<16x4xf32>, vector<4x32xf32>, vector<16x32xf32> -> vector<16x32xf32>
    %47 = tpu.transpose %46, [1, 0] : vector<16x32xf32> -> vector<32x16xf32>
    %cst_42 = arith.constant dense<0.000000e+00> : vector<16x16xf32>
    %48 = tpu.matmul %6, %47, %cst_42 {dimension_numbers = #tpu.dot_dimension_numbers<[1], [0], [0], [1], [0, 0, 1, 1], [], []>} : vector<16x32xf32>, vector<32x16xf32>, vector<16x16xf32> -> vector<16x16xf32>
    %cst_43 = arith.constant dense<0.000000e+00> : vector<16x32xf32>
    %49 = tpu.matmul %48, %8, %cst_43 {dimension_numbers = #tpu.dot_dimension_numbers<[1], [0], [0], [1], [0, 0, 1, 1], [], []>} : vector<16x16xf32>, vector<16x32xf32>, vector<16x32xf32> -> vector<16x32xf32>
    %cst_44 = arith.constant dense<0.000000e+00> : vector<16x16xf32>
    %50 = tpu.matmul %10, %47, %cst_44 {dimension_numbers = #tpu.dot_dimension_numbers<[1], [0], [0], [1], [0, 0, 1, 1], [], []>} : vector<16x32xf32>, vector<32x16xf32>, vector<16x16xf32> -> vector<16x16xf32>
    %cst_45 = arith.constant dense<0.000000e+00> : vector<16x32xf32>
    %51 = tpu.matmul %50, %12, %cst_45 {dimension_numbers = #tpu.dot_dimension_numbers<[1], [0], [0], [1], [0, 0, 1, 1], [], []>} : vector<16x16xf32>, vector<16x32xf32>, vector<16x32xf32> -> vector<16x32xf32>
    %52 = arith.addf %49, %51 : vector<16x32xf32>
    %c0_46 = arith.constant 0 : index
    %c0_47 = arith.constant 0 : index
    %53 = vector.load %arg21[%c0_46, %c0_47] : memref<32x32xf32, #tpu.memory_space<vmem>>, vector<16x32xf32>
    tpu.vector_store %arg21[%c0_46, %c0_47], %52 {strides = array<i32>} : memref<32x32xf32, #tpu.memory_space<vmem>>, vector<16x32xf32>,
    %c0_48 = arith.constant 0 : index
    %c0_49 = arith.constant 0 : index
    %c0_50 = arith.constant 0 : index
    %54 = vector.load %arg6[%c0_48, %c0_49, %c0_50] : memref<2x16x32xf32, #tpu.memory_space<vmem>>, vector<1x16x32xf32>
    %55 = vector.shape_cast %54 : vector<1x16x32xf32> to vector<16x32xf32>
    %cst_51 = arith.constant dense<0.000000e+00> : vector<4x32xf32>
    %56 = tpu.matmul %4, %55, %cst_51 {dimension_numbers = #tpu.dot_dimension_numbers<[1], [0], [0], [1], [0, 0, 1, 1], [], []>} : vector<4x16xf32>, vector<16x32xf32>, vector<4x32xf32> -> vector<4x32xf32>
    %c0_52 = arith.constant 0 : index
    %c0_53 = arith.constant 0 : index
    %c0_54 = arith.constant 0 : index
    %57 = vector.load %arg7[%c0_52, %c0_53, %c0_54] : memref<2x1x32xf32, #tpu.memory_space<vmem>>, vector<1x1x32xf32>
    %58 = vector.shape_cast %57 : vector<1x1x32xf32> to vector<1x32xf32>
    %59 = vector.broadcast %58 : vector<1x32xf32> to vector<4x32xf32>
    %60 = arith.addf %56, %59 : vector<4x32xf32>
    %c0_55 = arith.constant 0 : index
    %c0_56 = arith.constant 0 : index
    %c0_57 = arith.constant 0 : index
    %61 = vector.load %arg8[%c0_55, %c0_56, %c0_57] : memref<2x16x32xf32, #tpu.memory_space<vmem>>, vector<1x16x32xf32>
    %62 = vector.shape_cast %61 : vector<1x16x32xf32> to vector<16x32xf32>
    %cst_58 = arith.constant dense<0.000000e+00> : vector<4x32xf32>
    %63 = tpu.matmul %4, %62, %cst_58 {dimension_numbers = #tpu.dot_dimension_numbers<[1], [0], [0], [1], [0, 0, 1, 1], [], []>} : vector<4x16xf32>, vector<16x32xf32>, vector<4x32xf32> -> vector<4x32xf32>
    %c0_59 = arith.constant 0 : index
    %c0_60 = arith.constant 0 : index
    %c0_61 = arith.constant 0 : index
    %64 = vector.load %arg9[%c0_59, %c0_60, %c0_61] : memref<2x1x32xf32, #tpu.memory_space<vmem>>, vector<1x1x32xf32>
    %65 = vector.shape_cast %64 : vector<1x1x32xf32> to vector<1x32xf32>
    %66 = vector.broadcast %65 : vector<1x32xf32> to vector<4x32xf32>
    %67 = arith.addf %63, %66 : vector<4x32xf32>
    %68 = vector.extract_strided_slice %19 {offsets = [16, 0], sizes = [16, 32], strides = [1, 1]} : vector<32x32xf32> to vector<16x32xf32>
    %cst_62 = arith.constant dense<0.000000e+00> : vector<16x4xf32>
    %69 = tpu.matmul %68, %60, %cst_62 {dimension_numbers = #tpu.dot_dimension_numbers<[1], [1], [0], [0], [0, 0, 1, 0], [], []>} : vector<16x32xf32>, vector<4x32xf32>, vector<16x4xf32> -> vector<16x4xf32>
    %cst_63 = arith.constant dense<0xFF800000> : vector<16xf32>
    %70 = vector.multi_reduction <maximumf>, %69, %cst_63 [1] : vector<16x4xf32> to vector<16xf32>
    %71 = vector.shape_cast %70 : vector<16xf32> to vector<16x1xf32>
    %72 = vector.broadcast %71 : vector<16x1xf32> to vector<16x4xf32>
    %73 = arith.subf %69, %72 : vector<16x4xf32>
    %74 = math.exp %73 : vector<16x4xf32>
    %cst_64 = arith.constant dense<0.000000e+00> : vector<16xf32>
    %75 = vector.multi_reduction <add>, %74, %cst_64 [1] : vector<16x4xf32> to vector<16xf32>
    %76 = vector.shape_cast %75 : vector<16xf32> to vector<16x1xf32>
    %77 = tpu.reciprocal %76 {approx = true} : vector<16x1xf32> -> vector<16x1xf32>
    %78 = vector.broadcast %77 : vector<16x1xf32> to vector<16x4xf32>
    %79 = arith.mulf %74, %78 : vector<16x4xf32>
    %cst_65 = arith.constant dense<0.000000e+00> : vector<16x32xf32>
    %80 = tpu.matmul %79, %67, %cst_65 {dimension_numbers = #tpu.dot_dimension_numbers<[1], [0], [0], [1], [0, 0, 1, 1], [], []>} : vector<16x4xf32>, vector<4x32xf32>, vector<16x32xf32> -> vector<16x32xf32>
    %81 = tpu.transpose %80, [1, 0] : vector<16x32xf32> -> vector<32x16xf32>
    %cst_66 = arith.constant dense<0.000000e+00> : vector<16x16xf32>
    %82 = tpu.matmul %6, %81, %cst_66 {dimension_numbers = #tpu.dot_dimension_numbers<[1], [0], [0], [1], [0, 0, 1, 1], [], []>} : vector<16x32xf32>, vector<32x16xf32>, vector<16x16xf32> -> vector<16x16xf32>
    %cst_67 = arith.constant dense<0.000000e+00> : vector<16x32xf32>
    %83 = tpu.matmul %82, %8, %cst_67 {dimension_numbers = #tpu.dot_dimension_numbers<[1], [0], [0], [1], [0, 0, 1, 1], [], []>} : vector<16x16xf32>, vector<16x32xf32>, vector<16x32xf32> -> vector<16x32xf32>
    %cst_68 = arith.constant dense<0.000000e+00> : vector<16x16xf32>
    %84 = tpu.matmul %10, %81, %cst_68 {dimension_numbers = #tpu.dot_dimension_numbers<[1], [0], [0], [1], [0, 0, 1, 1], [], []>} : vector<16x32xf32>, vector<32x16xf32>, vector<16x16xf32> -> vector<16x16xf32>
    %cst_69 = arith.constant dense<0.000000e+00> : vector<16x32xf32>
    %85 = tpu.matmul %84, %12, %cst_69 {dimension_numbers = #tpu.dot_dimension_numbers<[1], [0], [0], [1], [0, 0, 1, 1], [], []>} : vector<16x16xf32>, vector<16x32xf32>, vector<16x32xf32> -> vector<16x32xf32>
    %86 = arith.addf %83, %85 : vector<16x32xf32>
    %c16 = arith.constant 16 : index
    %c0_70 = arith.constant 0 : index
    %87 = vector.load %arg21[%c16, %c0_70] : memref<32x32xf32, #tpu.memory_space<vmem>>, vector<16x32xf32>
    tpu.vector_store %arg21[%c16, %c0_70], %86 {strides = array<i32>} : memref<32x32xf32, #tpu.memory_space<vmem>>, vector<16x32xf32>,
    %c0_71 = arith.constant 0 : index
    %c0_72 = arith.constant 0 : index
    %88 = vector.load %arg21[%c0_71, %c0_72] : memref<32x32xf32, #tpu.memory_space<vmem>>, vector<32x32xf32>
    %c0_73 = arith.constant 0 : index
    %c0_74 = arith.constant 0 : index
    %c0_75 = arith.constant 0 : index
    %89 = vector.load %arg10[%c0_73, %c0_74, %c0_75] : memref<2x32x32xf32, #tpu.memory_space<vmem>>, vector<1x32x32xf32>
    %90 = vector.shape_cast %89 : vector<1x32x32xf32> to vector<32x32xf32>
    %cst_76 = arith.constant dense<0.000000e+00> : vector<32x32xf32>
    %91 = tpu.matmul %88, %90, %cst_76 {dimension_numbers = #tpu.dot_dimension_numbers<[1], [0], [0], [1], [0, 0, 1, 1], [], []>} : vector<32x32xf32>, vector<32x32xf32>, vector<32x32xf32> -> vector<32x32xf32>
    %c0_77 = arith.constant 0 : index
    %c0_78 = arith.constant 0 : index
    %c0_79 = arith.constant 0 : index
    %92 = vector.load %arg11[%c0_77, %c0_78, %c0_79] : memref<2x1x32xf32, #tpu.memory_space<vmem>>, vector<1x1x32xf32>
    %93 = vector.shape_cast %92 : vector<1x1x32xf32> to vector<1x32xf32>
    %94 = vector.broadcast %93 : vector<1x32xf32> to vector<32x32xf32>
    %95 = arith.addf %91, %94 : vector<32x32xf32>
    %96 = arith.addf %0, %95 : vector<32x32xf32>
    %cst_80 = arith.constant dense<0.000000e+00> : vector<32xf32>
    %97 = vector.multi_reduction <add>, %96, %cst_80 [0] : vector<32x32xf32> to vector<32xf32>
    %98 = vector.shape_cast %97 : vector<32xf32> to vector<1x32xf32>
    %cst_81 = arith.constant 3.200000e+01 : f32
    %99 = vector.broadcast %cst_81 : f32 to vector<1x32xf32>
    %100 = arith.divf %98, %99 : vector<1x32xf32>
    %101 = vector.broadcast %100 : vector<1x32xf32> to vector<32x32xf32>
    %102 = arith.subf %96, %101 : vector<32x32xf32>
    %103 = arith.mulf %102, %102 : vector<32x32xf32>
    %cst_82 = arith.constant dense<0.000000e+00> : vector<32xf32>
    %104 = vector.multi_reduction <add>, %103, %cst_82 [0] : vector<32x32xf32> to vector<32xf32>
    %105 = vector.shape_cast %104 : vector<32xf32> to vector<1x32xf32>
    %cst_83 = arith.constant 3.200000e+01 : f32
    %106 = vector.broadcast %cst_83 : f32 to vector<1x32xf32>
    %107 = arith.divf %105, %106 : vector<1x32xf32>
    %108 = vector.broadcast %100 : vector<1x32xf32> to vector<32x32xf32>
    %109 = arith.subf %96, %108 : vector<32x32xf32>
    %cst_84 = arith.constant 9.99999974E-6 : f32
    %110 = vector.broadcast %cst_84 : f32 to vector<1x32xf32>
    %111 = arith.addf %107, %110 : vector<1x32xf32>
    %112 = math.rsqrt %111 : vector<1x32xf32>
    %113 = vector.broadcast %112 : vector<1x32xf32> to vector<32x32xf32>
    %114 = arith.mulf %109, %113 : vector<32x32xf32>
    %c0_85 = arith.constant 0 : index
    %c0_86 = arith.constant 0 : index
    %c0_87 = arith.constant 0 : index
    %115 = vector.load %arg12[%c0_85, %c0_86, %c0_87] : memref<2x1x32xf32, #tpu.memory_space<vmem>>, vector<1x1x32xf32>
    %116 = vector.shape_cast %115 : vector<1x1x32xf32> to vector<1x32xf32>
    %117 = vector.broadcast %116 : vector<1x32xf32> to vector<32x32xf32>
    %118 = arith.mulf %114, %117 : vector<32x32xf32>
    %c0_88 = arith.constant 0 : index
    %c0_89 = arith.constant 0 : index
    %c0_90 = arith.constant 0 : index
    %119 = vector.load %arg13[%c0_88, %c0_89, %c0_90] : memref<2x1x32xf32, #tpu.memory_space<vmem>>, vector<1x1x32xf32>
    %120 = vector.shape_cast %119 : vector<1x1x32xf32> to vector<1x32xf32>
    %121 = vector.broadcast %120 : vector<1x32xf32> to vector<32x32xf32>
    %122 = arith.addf %118, %121 : vector<32x32xf32>
    %c0_91 = arith.constant 0 : index
    %c0_92 = arith.constant 0 : index
    %c0_93 = arith.constant 0 : index
    %123 = vector.load %arg14[%c0_91, %c0_92, %c0_93] : memref<2x1x32xf32, #tpu.memory_space<vmem>>, vector<1x1x32xf32>
    %124 = vector.shape_cast %123 : vector<1x1x32xf32> to vector<1x32xf32>
    %125 = vector.broadcast %124 : vector<1x32xf32> to vector<32x32xf32>
    %126 = arith.mulf %125, %122 : vector<32x32xf32>
    %c0_94 = arith.constant 0 : index
    %c0_95 = arith.constant 0 : index
    %c0_96 = arith.constant 0 : index
    %127 = vector.load %arg15[%c0_94, %c0_95, %c0_96] : memref<2x1x32xf32, #tpu.memory_space<vmem>>, vector<1x1x32xf32>
    %128 = vector.shape_cast %127 : vector<1x1x32xf32> to vector<1x32xf32>
    %129 = vector.broadcast %128 : vector<1x32xf32> to vector<32x32xf32>
    %130 = arith.addf %126, %129 : vector<32x32xf32>
    %c0_97 = arith.constant 0 : index
    %c0_98 = arith.constant 0 : index
    %c0_99 = arith.constant 0 : index
    %131 = vector.load %arg16[%c0_97, %c0_98, %c0_99] : memref<2x32x32xf32, #tpu.memory_space<vmem>>, vector<1x32x32xf32>
    %132 = vector.shape_cast %131 : vector<1x32x32xf32> to vector<32x32xf32>
    %cst_100 = arith.constant dense<0.000000e+00> : vector<32x32xf32>
    %133 = tpu.matmul %130, %132, %cst_100 {dimension_numbers = #tpu.dot_dimension_numbers<[1], [0], [0], [1], [0, 0, 1, 1], [], []>} : vector<32x32xf32>, vector<32x32xf32>, vector<32x32xf32> -> vector<32x32xf32>
    %c0_101 = arith.constant 0 : index
    %c0_102 = arith.constant 0 : index
    %c0_103 = arith.constant 0 : index
    %134 = vector.load %arg17[%c0_101, %c0_102, %c0_103] : memref<2x1x32xf32, #tpu.memory_space<vmem>>, vector<1x1x32xf32>
    %135 = vector.shape_cast %134 : vector<1x1x32xf32> to vector<1x32xf32>
    %136 = vector.broadcast %135 : vector<1x32xf32> to vector<32x32xf32>
    %137 = arith.addf %133, %136 : vector<32x32xf32>
    %cst_104 = arith.constant 0.000000e+00 : f32
    %138 = vector.broadcast %cst_104 : f32 to vector<32x32xf32>
    %139 = arith.maximumf %137, %138 : vector<32x32xf32>
    %c0_105 = arith.constant 0 : index
    %c0_106 = arith.constant 0 : index
    %c0_107 = arith.constant 0 : index
    %140 = vector.load %arg18[%c0_105, %c0_106, %c0_107] : memref<2x32x32xf32, #tpu.memory_space<vmem>>, vector<1x32x32xf32>
    %141 = vector.shape_cast %140 : vector<1x32x32xf32> to vector<32x32xf32>
    %cst_108 = arith.constant dense<0.000000e+00> : vector<32x32xf32>
    %142 = tpu.matmul %139, %141, %cst_108 {dimension_numbers = #tpu.dot_dimension_numbers<[1], [0], [0], [1], [0, 0, 1, 1], [], []>} : vector<32x32xf32>, vector<32x32xf32>, vector<32x32xf32> -> vector<32x32xf32>
    %c0_109 = arith.constant 0 : index
    %c0_110 = arith.constant 0 : index
    %c0_111 = arith.constant 0 : index
    %143 = vector.load %arg19[%c0_109, %c0_110, %c0_111] : memref<2x1x32xf32, #tpu.memory_space<vmem>>, vector<1x1x32xf32>
    %144 = vector.shape_cast %143 : vector<1x1x32xf32> to vector<1x32xf32>
    %145 = vector.broadcast %144 : vector<1x32xf32> to vector<32x32xf32>
    %146 = arith.addf %142, %145 : vector<32x32xf32>
    %c1_112 = arith.constant 1 : index
    %c0_113 = arith.constant 0 : index
    %c0_114 = arith.constant 0 : index
    %147 = vector.load %arg4[%c1_112, %c0_113, %c0_114] : memref<2x32x32xf32, #tpu.memory_space<vmem>>, vector<1x32x32xf32>
    %148 = vector.shape_cast %147 : vector<1x32x32xf32> to vector<32x32xf32>
    %cst_115 = arith.constant dense<0.000000e+00> : vector<32x32xf32>
    %149 = tpu.matmul %146, %148, %cst_115 {dimension_numbers = #tpu.dot_dimension_numbers<[1], [0], [0], [1], [0, 0, 1, 1], [], []>} : vector<32x32xf32>, vector<32x32xf32>, vector<32x32xf32> -> vector<32x32xf32>
    %c1_116 = arith.constant 1 : index
    %c0_117 = arith.constant 0 : index
    %c0_118 = arith.constant 0 : index
    %150 = vector.load %arg5[%c1_116, %c0_117, %c0_118] : memref<2x1x32xf32, #tpu.memory_space<vmem>>, vector<1x1x32xf32>
    %151 = vector.shape_cast %150 : vector<1x1x32xf32> to vector<1x32xf32>
    %152 = vector.broadcast %151 : vector<1x32xf32> to vector<32x32xf32>
    %153 = arith.addf %149, %152 : vector<32x32xf32>
    %c1_119 = arith.constant 1 : index
    %c0_120 = arith.constant 0 : index
    %c0_121 = arith.constant 0 : index
    %154 = vector.load %arg6[%c1_119, %c0_120, %c0_121] : memref<2x16x32xf32, #tpu.memory_space<vmem>>, vector<1x16x32xf32>
    %155 = vector.shape_cast %154 : vector<1x16x32xf32> to vector<16x32xf32>
    %cst_122 = arith.constant dense<0.000000e+00> : vector<4x32xf32>
    %156 = tpu.matmul %2, %155, %cst_122 {dimension_numbers = #tpu.dot_dimension_numbers<[1], [0], [0], [1], [0, 0, 1, 1], [], []>} : vector<4x16xf32>, vector<16x32xf32>, vector<4x32xf32> -> vector<4x32xf32>
    %c1_123 = arith.constant 1 : index
    %c0_124 = arith.constant 0 : index
    %c0_125 = arith.constant 0 : index
    %157 = vector.load %arg7[%c1_123, %c0_124, %c0_125] : memref<2x1x32xf32, #tpu.memory_space<vmem>>, vector<1x1x32xf32>
    %158 = vector.shape_cast %157 : vector<1x1x32xf32> to vector<1x32xf32>
    %159 = vector.broadcast %158 : vector<1x32xf32> to vector<4x32xf32>
    %160 = arith.addf %156, %159 : vector<4x32xf32>
    %c1_126 = arith.constant 1 : index
    %c0_127 = arith.constant 0 : index
    %c0_128 = arith.constant 0 : index
    %161 = vector.load %arg8[%c1_126, %c0_127, %c0_128] : memref<2x16x32xf32, #tpu.memory_space<vmem>>, vector<1x16x32xf32>
    %162 = vector.shape_cast %161 : vector<1x16x32xf32> to vector<16x32xf32>
    %cst_129 = arith.constant dense<0.000000e+00> : vector<4x32xf32>
    %163 = tpu.matmul %2, %162, %cst_129 {dimension_numbers = #tpu.dot_dimension_numbers<[1], [0], [0], [1], [0, 0, 1, 1], [], []>} : vector<4x16xf32>, vector<16x32xf32>, vector<4x32xf32> -> vector<4x32xf32>
    %c1_130 = arith.constant 1 : index
    %c0_131 = arith.constant 0 : index
    %c0_132 = arith.constant 0 : index
    %164 = vector.load %arg9[%c1_130, %c0_131, %c0_132] : memref<2x1x32xf32, #tpu.memory_space<vmem>>, vector<1x1x32xf32>
    %165 = vector.shape_cast %164 : vector<1x1x32xf32> to vector<1x32xf32>
    %166 = vector.broadcast %165 : vector<1x32xf32> to vector<4x32xf32>
    %167 = arith.addf %163, %166 : vector<4x32xf32>
    %168 = vector.extract_strided_slice %153 {offsets = [0, 0], sizes = [16, 32], strides = [1, 1]} : vector<32x32xf32> to vector<16x32xf32>
    %cst_133 = arith.constant dense<0.000000e+00> : vector<16x4xf32>
    %169 = tpu.matmul %168, %160, %cst_133 {dimension_numbers = #tpu.dot_dimension_numbers<[1], [1], [0], [0], [0, 0, 1, 0], [], []>} : vector<16x32xf32>, vector<4x32xf32>, vector<16x4xf32> -> vector<16x4xf32>
    %cst_134 = arith.constant dense<0xFF800000> : vector<16xf32>
    %170 = vector.multi_reduction <maximumf>, %169, %cst_134 [1] : vector<16x4xf32> to vector<16xf32>
    %171 = vector.shape_cast %170 : vector<16xf32> to vector<16x1xf32>
    %172 = vector.broadcast %171 : vector<16x1xf32> to vector<16x4xf32>
    %173 = arith.subf %169, %172 : vector<16x4xf32>
    %174 = math.exp %173 : vector<16x4xf32>
    %cst_135 = arith.constant dense<0.000000e+00> : vector<16xf32>
    %175 = vector.multi_reduction <add>, %174, %cst_135 [1] : vector<16x4xf32> to vector<16xf32>
    %176 = vector.shape_cast %175 : vector<16xf32> to vector<16x1xf32>
    %177 = tpu.reciprocal %176 {approx = true} : vector<16x1xf32> -> vector<16x1xf32>
    %178 = vector.broadcast %177 : vector<16x1xf32> to vector<16x4xf32>
    %179 = arith.mulf %174, %178 : vector<16x4xf32>
    %cst_136 = arith.constant dense<0.000000e+00> : vector<16x32xf32>
    %180 = tpu.matmul %179, %167, %cst_136 {dimension_numbers = #tpu.dot_dimension_numbers<[1], [0], [0], [1], [0, 0, 1, 1], [], []>} : vector<16x4xf32>, vector<4x32xf32>, vector<16x32xf32> -> vector<16x32xf32>
    %181 = tpu.transpose %180, [1, 0] : vector<16x32xf32> -> vector<32x16xf32>
    %cst_137 = arith.constant dense<0.000000e+00> : vector<16x16xf32>
    %182 = tpu.matmul %6, %181, %cst_137 {dimension_numbers = #tpu.dot_dimension_numbers<[1], [0], [0], [1], [0, 0, 1, 1], [], []>} : vector<16x32xf32>, vector<32x16xf32>, vector<16x16xf32> -> vector<16x16xf32>
    %cst_138 = arith.constant dense<0.000000e+00> : vector<16x32xf32>
    %183 = tpu.matmul %182, %8, %cst_138 {dimension_numbers = #tpu.dot_dimension_numbers<[1], [0], [0], [1], [0, 0, 1, 1], [], []>} : vector<16x16xf32>, vector<16x32xf32>, vector<16x32xf32> -> vector<16x32xf32>
    %cst_139 = arith.constant dense<0.000000e+00> : vector<16x16xf32>
    %184 = tpu.matmul %10, %181, %cst_139 {dimension_numbers = #tpu.dot_dimension_numbers<[1], [0], [0], [1], [0, 0, 1, 1], [], []>} : vector<16x32xf32>, vector<32x16xf32>, vector<16x16xf32> -> vector<16x16xf32>
    %cst_140 = arith.constant dense<0.000000e+00> : vector<16x32xf32>
    %185 = tpu.matmul %184, %12, %cst_140 {dimension_numbers = #tpu.dot_dimension_numbers<[1], [0], [0], [1], [0, 0, 1, 1], [], []>} : vector<16x16xf32>, vector<16x32xf32>, vector<16x32xf32> -> vector<16x32xf32>
    %186 = arith.addf %183, %185 : vector<16x32xf32>
    %c0_141 = arith.constant 0 : index
    %c0_142 = arith.constant 0 : index
    %187 = vector.load %arg21[%c0_141, %c0_142] : memref<32x32xf32, #tpu.memory_space<vmem>>, vector<16x32xf32>
    tpu.vector_store %arg21[%c0_141, %c0_142], %186 {strides = array<i32>} : memref<32x32xf32, #tpu.memory_space<vmem>>, vector<16x32xf32>,
    %c1_143 = arith.constant 1 : index
    %c0_144 = arith.constant 0 : index
    %c0_145 = arith.constant 0 : index
    %188 = vector.load %arg6[%c1_143, %c0_144, %c0_145] : memref<2x16x32xf32, #tpu.memory_space<vmem>>, vector<1x16x32xf32>
    %189 = vector.shape_cast %188 : vector<1x16x32xf32> to vector<16x32xf32>
    %cst_146 = arith.constant dense<0.000000e+00> : vector<4x32xf32>
    %190 = tpu.matmul %4, %189, %cst_146 {dimension_numbers = #tpu.dot_dimension_numbers<[1], [0], [0], [1], [0, 0, 1, 1], [], []>} : vector<4x16xf32>, vector<16x32xf32>, vector<4x32xf32> -> vector<4x32xf32>
    %c1_147 = arith.constant 1 : index
    %c0_148 = arith.constant 0 : index
    %c0_149 = arith.constant 0 : index
    %191 = vector.load %arg7[%c1_147, %c0_148, %c0_149] : memref<2x1x32xf32, #tpu.memory_space<vmem>>, vector<1x1x32xf32>
    %192 = vector.shape_cast %191 : vector<1x1x32xf32> to vector<1x32xf32>
    %193 = vector.broadcast %192 : vector<1x32xf32> to vector<4x32xf32>
    %194 = arith.addf %190, %193 : vector<4x32xf32>
    %c1_150 = arith.constant 1 : index
    %c0_151 = arith.constant 0 : index
    %c0_152 = arith.constant 0 : index
    %195 = vector.load %arg8[%c1_150, %c0_151, %c0_152] : memref<2x16x32xf32, #tpu.memory_space<vmem>>, vector<1x16x32xf32>
    %196 = vector.shape_cast %195 : vector<1x16x32xf32> to vector<16x32xf32>
    %cst_153 = arith.constant dense<0.000000e+00> : vector<4x32xf32>
    %197 = tpu.matmul %4, %196, %cst_153 {dimension_numbers = #tpu.dot_dimension_numbers<[1], [0], [0], [1], [0, 0, 1, 1], [], []>} : vector<4x16xf32>, vector<16x32xf32>, vector<4x32xf32> -> vector<4x32xf32>
    %c1_154 = arith.constant 1 : index
    %c0_155 = arith.constant 0 : index
    %c0_156 = arith.constant 0 : index
    %198 = vector.load %arg9[%c1_154, %c0_155, %c0_156] : memref<2x1x32xf32, #tpu.memory_space<vmem>>, vector<1x1x32xf32>
    %199 = vector.shape_cast %198 : vector<1x1x32xf32> to vector<1x32xf32>
    %200 = vector.broadcast %199 : vector<1x32xf32> to vector<4x32xf32>
    %201 = arith.addf %197, %200 : vector<4x32xf32>
    %202 = vector.extract_strided_slice %153 {offsets = [16, 0], sizes = [16, 32], strides = [1, 1]} : vector<32x32xf32> to vector<16x32xf32>
    %cst_157 = arith.constant dense<0.000000e+00> : vector<16x4xf32>
    %203 = tpu.matmul %202, %194, %cst_157 {dimension_numbers = #tpu.dot_dimension_numbers<[1], [1], [0], [0], [0, 0, 1, 0], [], []>} : vector<16x32xf32>, vector<4x32xf32>, vector<16x4xf32> -> vector<16x4xf32>
    %cst_158 = arith.constant dense<0xFF800000> : vector<16xf32>
    %204 = vector.multi_reduction <maximumf>, %203, %cst_158 [1] : vector<16x4xf32> to vector<16xf32>
    %205 = vector.shape_cast %204 : vector<16xf32> to vector<16x1xf32>
    %206 = vector.broadcast %205 : vector<16x1xf32> to vector<16x4xf32>
    %207 = arith.subf %203, %206 : vector<16x4xf32>
    %208 = math.exp %207 : vector<16x4xf32>
    %cst_159 = arith.constant dense<0.000000e+00> : vector<16xf32>
    %209 = vector.multi_reduction <add>, %208, %cst_159 [1] : vector<16x4xf32> to vector<16xf32>
    %210 = vector.shape_cast %209 : vector<16xf32> to vector<16x1xf32>
    %211 = tpu.reciprocal %210 {approx = true} : vector<16x1xf32> -> vector<16x1xf32>
    %212 = vector.broadcast %211 : vector<16x1xf32> to vector<16x4xf32>
    %213 = arith.mulf %208, %212 : vector<16x4xf32>
    %cst_160 = arith.constant dense<0.000000e+00> : vector<16x32xf32>
    %214 = tpu.matmul %213, %201, %cst_160 {dimension_numbers = #tpu.dot_dimension_numbers<[1], [0], [0], [1], [0, 0, 1, 1], [], []>} : vector<16x4xf32>, vector<4x32xf32>, vector<16x32xf32> -> vector<16x32xf32>
    %215 = tpu.transpose %214, [1, 0] : vector<16x32xf32> -> vector<32x16xf32>
    %cst_161 = arith.constant dense<0.000000e+00> : vector<16x16xf32>
    %216 = tpu.matmul %6, %215, %cst_161 {dimension_numbers = #tpu.dot_dimension_numbers<[1], [0], [0], [1], [0, 0, 1, 1], [], []>} : vector<16x32xf32>, vector<32x16xf32>, vector<16x16xf32> -> vector<16x16xf32>
    %cst_162 = arith.constant dense<0.000000e+00> : vector<16x32xf32>
    %217 = tpu.matmul %216, %8, %cst_162 {dimension_numbers = #tpu.dot_dimension_numbers<[1], [0], [0], [1], [0, 0, 1, 1], [], []>} : vector<16x16xf32>, vector<16x32xf32>, vector<16x32xf32> -> vector<16x32xf32>
    %cst_163 = arith.constant dense<0.000000e+00> : vector<16x16xf32>
    %218 = tpu.matmul %10, %215, %cst_163 {dimension_numbers = #tpu.dot_dimension_numbers<[1], [0], [0], [1], [0, 0, 1, 1], [], []>} : vector<16x32xf32>, vector<32x16xf32>, vector<16x16xf32> -> vector<16x16xf32>
    %cst_164 = arith.constant dense<0.000000e+00> : vector<16x32xf32>
    %219 = tpu.matmul %218, %12, %cst_164 {dimension_numbers = #tpu.dot_dimension_numbers<[1], [0], [0], [1], [0, 0, 1, 1], [], []>} : vector<16x16xf32>, vector<16x32xf32>, vector<16x32xf32> -> vector<16x32xf32>
    %220 = arith.addf %217, %219 : vector<16x32xf32>
    %c16_165 = arith.constant 16 : index
    %c0_166 = arith.constant 0 : index
    %221 = vector.load %arg21[%c16_165, %c0_166] : memref<32x32xf32, #tpu.memory_space<vmem>>, vector<16x32xf32>
    tpu.vector_store %arg21[%c16_165, %c0_166], %220 {strides = array<i32>} : memref<32x32xf32, #tpu.memory_space<vmem>>, vector<16x32xf32>,
    %c0_167 = arith.constant 0 : index
    %c0_168 = arith.constant 0 : index
    %222 = vector.load %arg21[%c0_167, %c0_168] : memref<32x32xf32, #tpu.memory_space<vmem>>, vector<32x32xf32>
    %c1_169 = arith.constant 1 : index
    %c0_170 = arith.constant 0 : index
    %c0_171 = arith.constant 0 : index
    %223 = vector.load %arg10[%c1_169, %c0_170, %c0_171] : memref<2x32x32xf32, #tpu.memory_space<vmem>>, vector<1x32x32xf32>
    %224 = vector.shape_cast %223 : vector<1x32x32xf32> to vector<32x32xf32>
    %cst_172 = arith.constant dense<0.000000e+00> : vector<32x32xf32>
    %225 = tpu.matmul %222, %224, %cst_172 {dimension_numbers = #tpu.dot_dimension_numbers<[1], [0], [0], [1], [0, 0, 1, 1], [], []>} : vector<32x32xf32>, vector<32x32xf32>, vector<32x32xf32> -> vector<32x32xf32>
    %c1_173 = arith.constant 1 : index
    %c0_174 = arith.constant 0 : index
    %c0_175 = arith.constant 0 : index
    %226 = vector.load %arg11[%c1_173, %c0_174, %c0_175] : memref<2x1x32xf32, #tpu.memory_space<vmem>>, vector<1x1x32xf32>
    %227 = vector.shape_cast %226 : vector<1x1x32xf32> to vector<1x32xf32>
    %228 = vector.broadcast %227 : vector<1x32xf32> to vector<32x32xf32>
    %229 = arith.addf %225, %228 : vector<32x32xf32>
    %230 = arith.addf %146, %229 : vector<32x32xf32>
    %cst_176 = arith.constant dense<0.000000e+00> : vector<32xf32>
    %231 = vector.multi_reduction <add>, %230, %cst_176 [0] : vector<32x32xf32> to vector<32xf32>
    %232 = vector.shape_cast %231 : vector<32xf32> to vector<1x32xf32>
    %cst_177 = arith.constant 3.200000e+01 : f32
    %233 = vector.broadcast %cst_177 : f32 to vector<1x32xf32>
    %234 = arith.divf %232, %233 : vector<1x32xf32>
    %235 = vector.broadcast %234 : vector<1x32xf32> to vector<32x32xf32>
    %236 = arith.subf %230, %235 : vector<32x32xf32>
    %237 = arith.mulf %236, %236 : vector<32x32xf32>
    %cst_178 = arith.constant dense<0.000000e+00> : vector<32xf32>
    %238 = vector.multi_reduction <add>, %237, %cst_178 [0] : vector<32x32xf32> to vector<32xf32>
    %239 = vector.shape_cast %238 : vector<32xf32> to vector<1x32xf32>
    %cst_179 = arith.constant 3.200000e+01 : f32
    %240 = vector.broadcast %cst_179 : f32 to vector<1x32xf32>
    %241 = arith.divf %239, %240 : vector<1x32xf32>
    %242 = vector.broadcast %234 : vector<1x32xf32> to vector<32x32xf32>
    %243 = arith.subf %230, %242 : vector<32x32xf32>
    %cst_180 = arith.constant 9.99999974E-6 : f32
    %244 = vector.broadcast %cst_180 : f32 to vector<1x32xf32>
    %245 = arith.addf %241, %244 : vector<1x32xf32>
    %246 = math.rsqrt %245 : vector<1x32xf32>
    %247 = vector.broadcast %246 : vector<1x32xf32> to vector<32x32xf32>
    %248 = arith.mulf %243, %247 : vector<32x32xf32>
    %c1_181 = arith.constant 1 : index
    %c0_182 = arith.constant 0 : index
    %c0_183 = arith.constant 0 : index
    %249 = vector.load %arg12[%c1_181, %c0_182, %c0_183] : memref<2x1x32xf32, #tpu.memory_space<vmem>>, vector<1x1x32xf32>
    %250 = vector.shape_cast %249 : vector<1x1x32xf32> to vector<1x32xf32>
    %251 = vector.broadcast %250 : vector<1x32xf32> to vector<32x32xf32>
    %252 = arith.mulf %248, %251 : vector<32x32xf32>
    %c1_184 = arith.constant 1 : index
    %c0_185 = arith.constant 0 : index
    %c0_186 = arith.constant 0 : index
    %253 = vector.load %arg13[%c1_184, %c0_185, %c0_186] : memref<2x1x32xf32, #tpu.memory_space<vmem>>, vector<1x1x32xf32>
    %254 = vector.shape_cast %253 : vector<1x1x32xf32> to vector<1x32xf32>
    %255 = vector.broadcast %254 : vector<1x32xf32> to vector<32x32xf32>
    %256 = arith.addf %252, %255 : vector<32x32xf32>
    %c1_187 = arith.constant 1 : index
    %c0_188 = arith.constant 0 : index
    %c0_189 = arith.constant 0 : index
    %257 = vector.load %arg14[%c1_187, %c0_188, %c0_189] : memref<2x1x32xf32, #tpu.memory_space<vmem>>, vector<1x1x32xf32>
    %258 = vector.shape_cast %257 : vector<1x1x32xf32> to vector<1x32xf32>
    %259 = vector.broadcast %258 : vector<1x32xf32> to vector<32x32xf32>
    %260 = arith.mulf %259, %256 : vector<32x32xf32>
    %c1_190 = arith.constant 1 : index
    %c0_191 = arith.constant 0 : index
    %c0_192 = arith.constant 0 : index
    %261 = vector.load %arg15[%c1_190, %c0_191, %c0_192] : memref<2x1x32xf32, #tpu.memory_space<vmem>>, vector<1x1x32xf32>
    %262 = vector.shape_cast %261 : vector<1x1x32xf32> to vector<1x32xf32>
    %263 = vector.broadcast %262 : vector<1x32xf32> to vector<32x32xf32>
    %264 = arith.addf %260, %263 : vector<32x32xf32>
    %c1_193 = arith.constant 1 : index
    %c0_194 = arith.constant 0 : index
    %c0_195 = arith.constant 0 : index
    %265 = vector.load %arg16[%c1_193, %c0_194, %c0_195] : memref<2x32x32xf32, #tpu.memory_space<vmem>>, vector<1x32x32xf32>
    %266 = vector.shape_cast %265 : vector<1x32x32xf32> to vector<32x32xf32>
    %cst_196 = arith.constant dense<0.000000e+00> : vector<32x32xf32>
    %267 = tpu.matmul %264, %266, %cst_196 {dimension_numbers = #tpu.dot_dimension_numbers<[1], [0], [0], [1], [0, 0, 1, 1], [], []>} : vector<32x32xf32>, vector<32x32xf32>, vector<32x32xf32> -> vector<32x32xf32>
    %c1_197 = arith.constant 1 : index
    %c0_198 = arith.constant 0 : index
    %c0_199 = arith.constant 0 : index
    %268 = vector.load %arg17[%c1_197, %c0_198, %c0_199] : memref<2x1x32xf32, #tpu.memory_space<vmem>>, vector<1x1x32xf32>
    %269 = vector.shape_cast %268 : vector<1x1x32xf32> to vector<1x32xf32>
    %270 = vector.broadcast %269 : vector<1x32xf32> to vector<32x32xf32>
    %271 = arith.addf %267, %270 : vector<32x32xf32>
    %cst_200 = arith.constant 0.000000e+00 : f32
    %272 = vector.broadcast %cst_200 : f32 to vector<32x32xf32>
    %273 = arith.maximumf %271, %272 : vector<32x32xf32>
    %c1_201 = arith.constant 1 : index
    %c0_202 = arith.constant 0 : index
    %c0_203 = arith.constant 0 : index
    %274 = vector.load %arg18[%c1_201, %c0_202, %c0_203] : memref<2x32x32xf32, #tpu.memory_space<vmem>>, vector<1x32x32xf32>
    %275 = vector.shape_cast %274 : vector<1x32x32xf32> to vector<32x32xf32>
    %cst_204 = arith.constant dense<0.000000e+00> : vector<32x32xf32>
    %276 = tpu.matmul %273, %275, %cst_204 {dimension_numbers = #tpu.dot_dimension_numbers<[1], [0], [0], [1], [0, 0, 1, 1], [], []>} : vector<32x32xf32>, vector<32x32xf32>, vector<32x32xf32> -> vector<32x32xf32>
    %c1_205 = arith.constant 1 : index
    %c0_206 = arith.constant 0 : index
    %c0_207 = arith.constant 0 : index
    %277 = vector.load %arg19[%c1_205, %c0_206, %c0_207] : memref<2x1x32xf32, #tpu.memory_space<vmem>>, vector<1x1x32xf32>
    %278 = vector.shape_cast %277 : vector<1x1x32xf32> to vector<1x32xf32>
    %279 = vector.broadcast %278 : vector<1x32xf32> to vector<32x32xf32>
    %280 = arith.addf %276, %279 : vector<32x32xf32>
    %c0_208 = arith.constant 0 : index
    %c0_209 = arith.constant 0 : index
    %281 = vector.load %arg20[%c0_208, %c0_209] : memref<32x32xf32, #tpu.memory_space<vmem>>, vector<32x32xf32>
    tpu.vector_store %arg20[%c0_208, %c0_209], %280 {strides = array<i32>} : memref<32x32xf32, #tpu.memory_space<vmem>>, vector<32x32xf32>,
    return
  }
}

</mosaic_0001>

<llo_original>
// kernel: tpu_custom_call.1
$region0: #{tpu_custom_call.1}
  #allocation0 [shape = 'u32[]', space=smem, size = 0x4, offset = 0x4, fixed_abs, tag = 'smem constant byte address 0x4 - core index']
  #allocation1 [shape = 'u32[144,128]{1,0:T(1,128)}', space=vmem, size = 0x12000, scoped, tag = 'internal scratch']
  #allocation2 [shape = 'f32[32,32]{1,0:T(8,128)}', space=vmem, size = 0x4000, scoped, tag = 'scratch operand']
  %s0 = inlined_call_operand.hbm [shape: f32[32,32], index: 0, kind: input, shape index: {}]
  %s1 = inlined_call_operand.hbm [shape: f32[2,4,16], index: 1, kind: input, shape index: {}]
  %s2 = inlined_call_operand.hbm [shape: f32[2,16,32], index: 2, kind: input, shape index: {}]
  %s3 = inlined_call_operand.hbm [shape: f32[2,16,32], index: 3, kind: input, shape index: {}]
  %s4 = inlined_call_operand.hbm [shape: f32[2,32,32], index: 4, kind: input, shape index: {}]
  %s5 = inlined_call_operand.vmem [shape: f32[2,1,32], index: 5, kind: input, shape index: {}]
  %s6 = inlined_call_operand.hbm [shape: f32[2,16,32], index: 6, kind: input, shape index: {}]
  %s7 = inlined_call_operand.vmem [shape: f32[2,1,32], index: 7, kind: input, shape index: {}]
  %s8 = inlined_call_operand.hbm [shape: f32[2,16,32], index: 8, kind: input, shape index: {}]
  %s9 = inlined_call_operand.hbm [shape: f32[2,1,32], index: 9, kind: input, shape index: {}]
  %s10 = inlined_call_operand.hbm [shape: f32[2,32,32], index: 10, kind: input, shape index: {}]
  %s11 = inlined_call_operand.hbm [shape: f32[2,1,32], index: 11, kind: input, shape index: {}]
  %s12 = inlined_call_operand.hbm [shape: f32[2,1,32], index: 12, kind: input, shape index: {}]
  %s13 = inlined_call_operand.hbm [shape: f32[2,1,32], index: 13, kind: input, shape index: {}]
  %s14 = inlined_call_operand.hbm [shape: f32[2,1,32], index: 14, kind: input, shape index: {}]
  %s15 = inlined_call_operand.hbm [shape: f32[2,1,32], index: 15, kind: input, shape index: {}]
  %s16 = inlined_call_operand.hbm [shape: f32[2,32,32], index: 16, kind: input, shape index: {}]
  %s17 = inlined_call_operand.hbm [shape: f32[2,1,32], index: 17, kind: input, shape index: {}]
  %s18 = inlined_call_operand.vmem [shape: f32[2,32,32], index: 18, kind: input, shape index: {}]
  %s19 = inlined_call_operand.vmem [shape: f32[2,1,32], index: 19, kind: input, shape index: {}]
  %s20 = inlined_call_operand.hbm [shape: f32[32,32], index: 20, kind: output, shape index: {}]
  %s21 = sld [smem:[#allocation0]]
  $region154: #{tpu_custom_call.1} parent=0
    _
  %s23 = ssub.s32 1, %s21
  %s24 = scalar_select 0, %s23, %s21
  $region1: #{tpu_custom_call.1} parent=0
    #allocation3 [shape = 'u8[16384]{0}', space=vmem, size = 0x4000, scoped, tag = 'input window, operand 0, single buffered']
    #allocation4 [shape = 's32[1]{0}', space=sflag, size = 0x4, scoped, tag = 'scoped memory for tpu_custom_call.1']
    #allocation5 [shape = 's32[1]{0}', space=sflag, size = 0x4, scoped, tag = 'scoped memory for tpu_custom_call.1']
    #allocation6 [shape = 'u8[4096]{0}', space=vmem, size = 0x1000, scoped, tag = 'input window, operand 1, single buffered']
    #allocation7 [shape = 's32[1]{0}', space=sflag, size = 0x4, scoped, tag = 'scoped memory for tpu_custom_call.1']
    #allocation8 [shape = 'u8[16384]{0}', space=vmem, size = 0x4000, scoped, tag = 'input window, operand 2, single buffered']
    #allocation9 [shape = 'u8[16384]{0}', space=vmem, size = 0x4000, scoped, tag = 'input window, operand 3, single buffered']
    #allocation10 [shape = 's32[1]{0}', space=sflag, size = 0x4, scoped, tag = 'scoped memory for tpu_custom_call.1']
    #allocation11 [shape = 'u8[32768]{0}', space=vmem, size = 0x8000, scoped, tag = 'input window, operand 4, single buffered']
    #allocation12 [shape = 'u8[16384]{0}', space=vmem, size = 0x4000, scoped, tag = 'input window, operand 6, single buffered']
    #allocation13 [shape = 's32[1]{0}', space=sflag, size = 0x4, scoped, tag = 'scoped memory for tpu_custom_call.1']
    #allocation14 [shape = 'u8[16384]{0}', space=vmem, size = 0x4000, scoped, tag = 'input window, operand 8, single buffered']
    #allocation15 [shape = 'u8[1024]{0}', space=vmem, size = 0x400, scoped, tag = 'input window, operand 9, single buffered']
    #allocation16 [shape = 's32[1]{0}', space=sflag, size = 0x4, scoped, tag = 'scoped memory for tpu_custom_call.1']
    #allocation17 [shape = 'u8[32768]{0}', space=vmem, size = 0x8000, scoped, tag = 'input window, operand 10, single buffered']
    #allocation18 [shape = 'u8[1024]{0}', space=vmem, size = 0x400, scoped, tag = 'input window, operand 11, single buffered']
    #allocation19 [shape = 's32[1]{0}', space=sflag, size = 0x4, scoped, tag = 'scoped memory for tpu_custom_call.1']
    #allocation20 [shape = 'u8[1024]{0}', space=vmem, size = 0x400, scoped, tag = 'input window, operand 12, single buffered']
    #allocation21 [shape = 'u8[1024]{0}', space=vmem, size = 0x400, scoped, tag = 'input window, operand 13, single buffered']
    #allocation22 [shape = 's32[1]{0}', space=sflag, size = 0x4, scoped, tag = 'scoped memory for tpu_custom_call.1']
    #allocation23 [shape = 'u8[1024]{0}', space=vmem, size = 0x400, scoped, tag = 'input window, operand 14, single buffered']
    #allocation24 [shape = 'u8[1024]{0}', space=vmem, size = 0x400, scoped, tag = 'input window, operand 15, single buffered']
    #allocation25 [shape = 's32[1]{0}', space=sflag, size = 0x4, scoped, tag = 'scoped memory for tpu_custom_call.1']
    #allocation26 [shape = 'u8[32768]{0}', space=vmem, size = 0x8000, scoped, tag = 'input window, operand 16, single buffered']
    #allocation27 [shape = 'u8[1024]{0}', space=vmem, size = 0x400, scoped, tag = 'input window, operand 17, single buffered']
    #allocation28 [shape = 's32[1]{0}', space=sflag, size = 0x4, scoped, tag = 'scoped memory for tpu_custom_call.1']
    #allocation29 [shape = 'u8[16384]{0}', space=vmem, size = 0x4000, scoped, tag = 'output window, operand 0, single buffered']
    %25 = vsyncpa [#allocation4], 0
    %26 = vsyncpa [#allocation7], 0
    %27 = vsyncpa [#allocation10], 0
    %28 = vsyncpa [#allocation13], 0
    %29 = vsyncpa [#allocation16], 0
    %30 = vsyncpa [#allocation19], 0
    %31 = vsyncpa [#allocation22], 0
    %32 = vsyncpa [#allocation25], 0
    %33 = vsyncpa [#allocation28], 0
    %34 = vsyncpa [#allocation5], 0
    // Predicated region
    $region2: #{tpu_custom_call.1} parent=1 // pred_check
      _
    $region3: #{tpu_custom_call.1} parent=1 // pred_check_branch
      %36 = sbr.rel (0) target = $region5
    $region4: #{tpu_custom_call.1} parent=1 // pred_region
      %s38 = ssub.s32 512, 512
      %39 = vsyncadd [#allocation4], %s38
      %s40 = sshll.u32 [#allocation3], 4
      %s41 = int_to_ptr.vmem [resolvable:$true] %s40
      %46 = dma.hbm_to_vmem [thread:$0]  %s0, 512, %s41, [#allocation4], 128, 128, 8
    $region5: #{tpu_custom_call.1} parent=1 // pred_fallthru
      _
    // Predicated region
    $region6: #{tpu_custom_call.1} parent=1 // pred_check
      _
    $region7: #{tpu_custom_call.1} parent=1 // pred_check_branch
      %48 = sbr.rel (0) target = $region9
    $region8: #{tpu_custom_call.1} parent=1 // pred_region
      %s50 = ssub.s32 128, 128
      %51 = vsyncadd [#allocation7], %s50
      %s52 = sshll.u32 [#allocation6], 4
      %s53 = int_to_ptr.vmem [resolvable:$true] %s52
      %58 = dma.hbm_to_vmem [thread:$0]  %s1, 128, %s53, [#allocation7], 64, 64, 4
    $region9: #{tpu_custom_call.1} parent=1 // pred_fallthru
      _
    // Predicated region
    $region10: #{tpu_custom_call.1} parent=1 // pred_check
      _
    $region11: #{tpu_custom_call.1} parent=1 // pred_check_branch
      %60 = sbr.rel (0) target = $region13
    $region12: #{tpu_custom_call.1} parent=1 // pred_region
      %s62 = ssub.s32 512, 512
      %63 = vsyncadd [#allocation7], %s62
      %s64 = sshll.u32 [#allocation8], 4
      %s65 = int_to_ptr.vmem [resolvable:$true] %s64
      %70 = dma.hbm_to_vmem [thread:$0]  %s2, 512, %s65, [#allocation7], 128, 128, 8
    $region13: #{tpu_custom_call.1} parent=1 // pred_fallthru
      _
    // Predicated region
    $region14: #{tpu_custom_call.1} parent=1 // pred_check
      _
    $region15: #{tpu_custom_call.1} parent=1 // pred_check_branch
      %72 = sbr.rel (0) target = $region17
    $region16: #{tpu_custom_call.1} parent=1 // pred_region
      %s74 = ssub.s32 512, 512
      %75 = vsyncadd [#allocation10], %s74
      %s76 = sshll.u32 [#allocation9], 4
      %s77 = int_to_ptr.vmem [resolvable:$true] %s76
      %82 = dma.hbm_to_vmem [thread:$0]  %s3, 512, %s77, [#allocation10], 128, 128, 8
    $region17: #{tpu_custom_call.1} parent=1 // pred_fallthru
      _
    // Predicated region
    $region18: #{tpu_custom_call.1} parent=1 // pred_check
      _
    $region19: #{tpu_custom_call.1} parent=1 // pred_check_branch
      %84 = sbr.rel (0) target = $region21
    $region20: #{tpu_custom_call.1} parent=1 // pred_region
      %s86 = ssub.s32 1024, 1024
      %87 = vsyncadd [#allocation10], %s86
      %s88 = sshll.u32 [#allocation11], 4
      %s89 = int_to_ptr.vmem [resolvable:$true] %s88
      %94 = dma.hbm_to_vmem [thread:$0]  %s4, 1024, %s89, [#allocation10], 128, 128, 8
    $region21: #{tpu_custom_call.1} parent=1 // pred_fallthru
      _
    // Predicated region
    $region22: #{tpu_custom_call.1} parent=1 // pred_check
      _
    $region23: #{tpu_custom_call.1} parent=1 // pred_check_branch
      %96 = sbr.rel (0) target = $region25
    $region24: #{tpu_custom_call.1} parent=1 // pred_region
      _
    $region25: #{tpu_custom_call.1} parent=1 // pred_fallthru
      _
    // Predicated region
    $region26: #{tpu_custom_call.1} parent=1 // pred_check
      _
    $region27: #{tpu_custom_call.1} parent=1 // pred_check_branch
      %98 = sbr.rel (0) target = $region29
    $region28: #{tpu_custom_call.1} parent=1 // pred_region
      %s100 = ssub.s32 512, 512
      %101 = vsyncadd [#allocation13], %s100
      %s102 = sshll.u32 [#allocation12], 4
      %s103 = int_to_ptr.vmem [resolvable:$true] %s102
      %108 = dma.hbm_to_vmem [thread:$0]  %s6, 512, %s103, [#allocation13], 128, 128, 8
    $region29: #{tpu_custom_call.1} parent=1 // pred_fallthru
      _
    // Predicated region
    $region30: #{tpu_custom_call.1} parent=1 // pred_check
      _
    $region31: #{tpu_custom_call.1} parent=1 // pred_check_branch
      %110 = sbr.rel (0) target = $region33
    $region32: #{tpu_custom_call.1} parent=1 // pred_region
      _
    $region33: #{tpu_custom_call.1} parent=1 // pred_fallthru
      _
    // Predicated region
    $region34: #{tpu_custom_call.1} parent=1 // pred_check
      _
    $region35: #{tpu_custom_call.1} parent=1 // pred_check_branch
      %112 = sbr.rel (0) target = $region37
    $region36: #{tpu_custom_call.1} parent=1 // pred_region
      %s114 = ssub.s32 512, 512
      %115 = vsyncadd [#allocation13], %s114
      %s116 = sshll.u32 [#allocation14], 4
      %s117 = int_to_ptr.vmem [resolvable:$true] %s116
      %122 = dma.hbm_to_vmem [thread:$0]  %s8, 512, %s117, [#allocation13], 128, 128, 8
    $region37: #{tpu_custom_call.1} parent=1 // pred_fallthru
      _
    // Predicated region
    $region38: #{tpu_custom_call.1} parent=1 // pred_check
      _
    $region39: #{tpu_custom_call.1} parent=1 // pred_check_branch
      %124 = sbr.rel (0) target = $region41
    $region40: #{tpu_custom_call.1} parent=1 // pred_region
      %s126 = ssub.s32 32, 32
      %127 = vsyncadd [#allocation16], %s126
      %s128 = sshll.u32 [#allocation15], 4
      %s129 = int_to_ptr.vmem [resolvable:$true] %s128
      %134 = dma.hbm_to_vmem [thread:$0]  %s9, 32, %s129, [#allocation16], 16, 16, 1
    $region41: #{tpu_custom_call.1} parent=1 // pred_fallthru
      _
    // Predicated region
    $region42: #{tpu_custom_call.1} parent=1 // pred_check
      _
    $region43: #{tpu_custom_call.1} parent=1 // pred_check_branch
      %136 = sbr.rel (0) target = $region45
    $region44: #{tpu_custom_call.1} parent=1 // pred_region
      %s138 = ssub.s32 1024, 1024
      %139 = vsyncadd [#allocation16], %s138
      %s140 = sshll.u32 [#allocation17], 4
      %s141 = int_to_ptr.vmem [resolvable:$true] %s140
      %146 = dma.hbm_to_vmem [thread:$0]  %s10, 1024, %s141, [#allocation16], 128, 128, 8
    $region45: #{tpu_custom_call.1} parent=1 // pred_fallthru
      _
    // Predicated region
    $region46: #{tpu_custom_call.1} parent=1 // pred_check
      _
    $region47: #{tpu_custom_call.1} parent=1 // pred_check_branch
      %148 = sbr.rel (0) target = $region49
    $region48: #{tpu_custom_call.1} parent=1 // pred_region
      %s150 = ssub.s32 32, 32
      %151 = vsyncadd [#allocation19], %s150
      %s152 = sshll.u32 [#allocation18], 4
      %s153 = int_to_ptr.vmem [resolvable:$true] %s152
      %158 = dma.hbm_to_vmem [thread:$0]  %s11, 32, %s153, [#allocation19], 16, 16, 1
    $region49: #{tpu_custom_call.1} parent=1 // pred_fallthru
      _
    // Predicated region
    $region50: #{tpu_custom_call.1} parent=1 // pred_check
      _
    $region51: #{tpu_custom_call.1} parent=1 // pred_check_branch
      %160 = sbr.rel (0) target = $region53
    $region52: #{tpu_custom_call.1} parent=1 // pred_region
      %s162 = ssub.s32 32, 32
      %163 = vsyncadd [#allocation19], %s162
      %s164 = sshll.u32 [#allocation20], 4
      %s165 = int_to_ptr.vmem [resolvable:$true] %s164
      %170 = dma.hbm_to_vmem [thread:$0]  %s12, 32, %s165, [#allocation19], 16, 16, 1
    $region53: #{tpu_custom_call.1} parent=1 // pred_fallthru
      _
    // Predicated region
    $region54: #{tpu_custom_call.1} parent=1 // pred_check
      _
    $region55: #{tpu_custom_call.1} parent=1 // pred_check_branch
      %172 = sbr.rel (0) target = $region57
    $region56: #{tpu_custom_call.1} parent=1 // pred_region
      %s174 = ssub.s32 32, 32
      %175 = vsyncadd [#allocation22], %s174
      %s176 = sshll.u32 [#allocation21], 4
      %s177 = int_to_ptr.vmem [resolvable:$true] %s176
      %182 = dma.hbm_to_vmem [thread:$0]  %s13, 32, %s177, [#allocation22], 16, 16, 1
    $region57: #{tpu_custom_call.1} parent=1 // pred_fallthru
      _
    // Predicated region
    $region58: #{tpu_custom_call.1} parent=1 // pred_check
      _
    $region59: #{tpu_custom_call.1} parent=1 // pred_check_branch
      %184 = sbr.rel (0) target = $region61
    $region60: #{tpu_custom_call.1} parent=1 // pred_region
      %s186 = ssub.s32 32, 32
      %187 = vsyncadd [#allocation22], %s186
      %s188 = sshll.u32 [#allocation23], 4
      %s189 = int_to_ptr.vmem [resolvable:$true] %s188
      %194 = dma.hbm_to_vmem [thread:$0]  %s14, 32, %s189, [#allocation22], 16, 16, 1
    $region61: #{tpu_custom_call.1} parent=1 // pred_fallthru
      _
    // Predicated region
    $region62: #{tpu_custom_call.1} parent=1 // pred_check
      _
    $region63: #{tpu_custom_call.1} parent=1 // pred_check_branch
      %196 = sbr.rel (0) target = $region65
    $region64: #{tpu_custom_call.1} parent=1 // pred_region
      %s198 = ssub.s32 32, 32
      %199 = vsyncadd [#allocation25], %s198
      %s200 = sshll.u32 [#allocation24], 4
      %s201 = int_to_ptr.vmem [resolvable:$true] %s200
      %206 = dma.hbm_to_vmem [thread:$0]  %s15, 32, %s201, [#allocation25], 16, 16, 1
    $region65: #{tpu_custom_call.1} parent=1 // pred_fallthru
      _
    // Predicated region
    $region66: #{tpu_custom_call.1} parent=1 // pred_check
      _
    $region67: #{tpu_custom_call.1} parent=1 // pred_check_branch
      %208 = sbr.rel (0) target = $region69
    $region68: #{tpu_custom_call.1} parent=1 // pred_region
      %s210 = ssub.s32 1024, 1024
      %211 = vsyncadd [#allocation25], %s210
      %s212 = sshll.u32 [#allocation26], 4
      %s213 = int_to_ptr.vmem [resolvable:$true] %s212
      %218 = dma.hbm_to_vmem [thread:$0]  %s16, 1024, %s213, [#allocation25], 128, 128, 8
    $region69: #{tpu_custom_call.1} parent=1 // pred_fallthru
      _
    // Predicated region
    $region70: #{tpu_custom_call.1} parent=1 // pred_check
      _
    $region71: #{tpu_custom_call.1} parent=1 // pred_check_branch
      %220 = sbr.rel (0) target = $region73
    $region72: #{tpu_custom_call.1} parent=1 // pred_region
      %s222 = ssub.s32 32, 32
      %223 = vsyncadd [#allocation28], %s222
      %s224 = sshll.u32 [#allocation27], 4
      %s225 = int_to_ptr.vmem [resolvable:$true] %s224
      %230 = dma.hbm_to_vmem [thread:$0]  %s17, 32, %s225, [#allocation28], 16, 16, 1
    $region73: #{tpu_custom_call.1} parent=1 // pred_fallthru
      _
    // Predicated region
    $region74: #{tpu_custom_call.1} parent=1 // pred_check
      _
    $region75: #{tpu_custom_call.1} parent=1 // pred_check_branch
      %232 = sbr.rel (0) target = $region77
    $region76: #{tpu_custom_call.1} parent=1 // pred_region
      _
    $region77: #{tpu_custom_call.1} parent=1 // pred_fallthru
      _
    // Predicated region
    $region78: #{tpu_custom_call.1} parent=1 // pred_check
      _
    $region79: #{tpu_custom_call.1} parent=1 // pred_check_branch
      %234 = sbr.rel (0) target = $region81
    $region80: #{tpu_custom_call.1} parent=1 // pred_region
      _
    $region81: #{tpu_custom_call.1} parent=1 // pred_fallthru
      _
    // Predicated region
    $region82: #{tpu_custom_call.1} parent=1 // pred_check
      _
    $region83: #{tpu_custom_call.1} parent=1 // pred_check_branch
      %236 = sbr.rel (0) target = $region85
    $region84: #{tpu_custom_call.1} parent=1 // pred_region
      %237 = dma.done [#allocation4], 512
    $region85: #{tpu_custom_call.1} parent=1 // pred_fallthru
      _
    // Predicated region
    $region86: #{tpu_custom_call.1} parent=1 // pred_check
      _
    $region87: #{tpu_custom_call.1} parent=1 // pred_check_branch
      %239 = sbr.rel (0) target = $region89
    $region88: #{tpu_custom_call.1} parent=1 // pred_region
      %240 = dma.done [#allocation7], 128
    $region89: #{tpu_custom_call.1} parent=1 // pred_fallthru
      _
    // Predicated region
    $region90: #{tpu_custom_call.1} parent=1 // pred_check
      _
    $region91: #{tpu_custom_call.1} parent=1 // pred_check_branch
      %242 = sbr.rel (0) target = $region93
    $region92: #{tpu_custom_call.1} parent=1 // pred_region
      %243 = dma.done [#allocation7], 512
    $region93: #{tpu_custom_call.1} parent=1 // pred_fallthru
      _
    // Predicated region
    $region94: #{tpu_custom_call.1} parent=1 // pred_check
      _
    $region95: #{tpu_custom_call.1} parent=1 // pred_check_branch
      %245 = sbr.rel (0) target = $region97
    $region96: #{tpu_custom_call.1} parent=1 // pred_region
      %246 = dma.done [#allocation10], 512
    $region97: #{tpu_custom_call.1} parent=1 // pred_fallthru
      _
    // Predicated region
    $region98: #{tpu_custom_call.1} parent=1 // pred_check
      _
    $region99: #{tpu_custom_call.1} parent=1 // pred_check_branch
      %248 = sbr.rel (0) target = $region101
    $region100: #{tpu_custom_call.1} parent=1 // pred_region
      %249 = dma.done [#allocation10], 1024
    $region101: #{tpu_custom_call.1} parent=1 // pred_fallthru
      _
    // Predicated region
    $region102: #{tpu_custom_call.1} parent=1 // pred_check
      _
    $region103: #{tpu_custom_call.1} parent=1 // pred_check_branch
      %251 = sbr.rel (0) target = $region105
    $region104: #{tpu_custom_call.1} parent=1 // pred_region
      %252 = dma.done [#allocation13], 512
    $region105: #{tpu_custom_call.1} parent=1 // pred_fallthru
      _
    // Predicated region
    $region106: #{tpu_custom_call.1} parent=1 // pred_check
      _
    $region107: #{tpu_custom_call.1} parent=1 // pred_check_branch
      %254 = sbr.rel (0) target = $region109
    $region108: #{tpu_custom_call.1} parent=1 // pred_region
      %255 = dma.done [#allocation13], 512
    $region109: #{tpu_custom_call.1} parent=1 // pred_fallthru
      _
    // Predicated region
    $region110: #{tpu_custom_call.1} parent=1 // pred_check
      _
    $region111: #{tpu_custom_call.1} parent=1 // pred_check_branch
      %257 = sbr.rel (0) target = $region113
    $region112: #{tpu_custom_call.1} parent=1 // pred_region
      %258 = dma.done [#allocation16], 32
    $region113: #{tpu_custom_call.1} parent=1 // pred_fallthru
      _
    // Predicated region
    $region114: #{tpu_custom_call.1} parent=1 // pred_check
      _
    $region115: #{tpu_custom_call.1} parent=1 // pred_check_branch
      %260 = sbr.rel (0) target = $region117
    $region116: #{tpu_custom_call.1} parent=1 // pred_region
      %261 = dma.done [#allocation16], 1024
    $region117: #{tpu_custom_call.1} parent=1 // pred_fallthru
      _
    // Predicated region
    $region118: #{tpu_custom_call.1} parent=1 // pred_check
      _
    $region119: #{tpu_custom_call.1} parent=1 // pred_check_branch
      %263 = sbr.rel (0) target = $region121
    $region120: #{tpu_custom_call.1} parent=1 // pred_region
      %264 = dma.done [#allocation19], 32
    $region121: #{tpu_custom_call.1} parent=1 // pred_fallthru
      _
    // Predicated region
    $region122: #{tpu_custom_call.1} parent=1 // pred_check
      _
    $region123: #{tpu_custom_call.1} parent=1 // pred_check_branch
      %266 = sbr.rel (0) target = $region125
    $region124: #{tpu_custom_call.1} parent=1 // pred_region
      %267 = dma.done [#allocation19], 32
    $region125: #{tpu_custom_call.1} parent=1 // pred_fallthru
      _
    // Predicated region
    $region126: #{tpu_custom_call.1} parent=1 // pred_check
      _
    $region127: #{tpu_custom_call.1} parent=1 // pred_check_branch
      %269 = sbr.rel (0) target = $region129
    $region128: #{tpu_custom_call.1} parent=1 // pred_region
      %270 = dma.done [#allocation22], 32
    $region129: #{tpu_custom_call.1} parent=1 // pred_fallthru
      _
    // Predicated region
    $region130: #{tpu_custom_call.1} parent=1 // pred_check
      _
    $region131: #{tpu_custom_call.1} parent=1 // pred_check_branch
      %272 = sbr.rel (0) target = $region133
    $region132: #{tpu_custom_call.1} parent=1 // pred_region
      %273 = dma.done [#allocation22], 32
    $region133: #{tpu_custom_call.1} parent=1 // pred_fallthru
      _
    // Predicated region
    $region134: #{tpu_custom_call.1} parent=1 // pred_check
      _
    $region135: #{tpu_custom_call.1} parent=1 // pred_check_branch
      %275 = sbr.rel (0) target = $region137
    $region136: #{tpu_custom_call.1} parent=1 // pred_region
      %276 = dma.done [#allocation25], 32
    $region137: #{tpu_custom_call.1} parent=1 // pred_fallthru
      _
    // Predicated region
    $region138: #{tpu_custom_call.1} parent=1 // pred_check
      _
    $region139: #{tpu_custom_call.1} parent=1 // pred_check_branch
      %278 = sbr.rel (0) target = $region141
    $region140: #{tpu_custom_call.1} parent=1 // pred_region
      %279 = dma.done [#allocation25], 1024
    $region141: #{tpu_custom_call.1} parent=1 // pred_fallthru
      _
    // Predicated region
    $region142: #{tpu_custom_call.1} parent=1 // pred_check
      _
    $region143: #{tpu_custom_call.1} parent=1 // pred_check_branch
      %281 = sbr.rel (0) target = $region145
    $region144: #{tpu_custom_call.1} parent=1 // pred_region
      %282 = dma.done [#allocation28], 32
    $region145: #{tpu_custom_call.1} parent=1 // pred_fallthru
      _
    %v283 = vld [vmem:[#allocation3] sm:$0xff]
    %v284 = vld [vmem:[#allocation3 + $0x8] sm:$0xff]
    %v285 = vld [vmem:[#allocation3 + $0x10] sm:$0xff]
    %v286 = vld [vmem:[#allocation3 + $0x18] sm:$0xff]
    %v287 = vld [vmem:[#allocation6] sm:$0xf]
    %s288 = scalar_lea.vmem [#allocation6], 4
    %v289 = vld [vmem:[%s288] sm:$0xf]
    %v290 = vld [vmem:[#allocation8] sm:$0xff]
    %v291 = vld [vmem:[#allocation8 + $0x8] sm:$0xff]
    %v292 = vld [vmem:[#allocation9] sm:$0xff]
    %v293 = vld [vmem:[#allocation9 + $0x8] sm:$0xff]
    %s294 = scalar_lea.vmem [#allocation8], 16
    %v295 = vld [vmem:[%s294] sm:$0xff]
    %v296 = vld [vmem:[%s294 + $0x8] sm:$0xff]
    %s297 = scalar_lea.vmem [#allocation9], 16
    %v298 = vld [vmem:[%s297] sm:$0xff]
    %v299 = vld [vmem:[%s297 + $0x8] sm:$0xff]
    %v300 = vld [vmem:[#allocation11] sm:$0xff]
    %v301 = vld [vmem:[#allocation11 + $0x8] sm:$0xff]
    %v302 = vld [vmem:[#allocation11 + $0x10] sm:$0xff]
    %v303 = vld [vmem:[#allocation11 + $0x18] sm:$0xff]
    %v304 = vld [vmem:[%s5] sm:$0x1]
    %v306 = vlaneseq
    %v307 = vshrl.u32 %v306, 7
    %v308 = vsub.s32 0, %v307
    %v309 = vrot.slane %v304, %v308
    %vm311 = vcmask 261120
    %v313 = vsel %vm311, %v283, 0
    %v316 = vsel %vm311, %v284, 0
    %v319 = vsel %vm311, %v285, 0
    %v322 = vsel %vm311, %v286, 0
    %324 = vmatprep.subr.mxu0 0.0
    %325 = vmatpush1.msra.mxu0 %v300
    %326 = vmatprep.subr.mxu0 0.0
    %327 = vmatpush1.msra.mxu0 %v301
    %328 = vmatprep.subr.mxu0 0.0
    %329 = vmatpush1.msra.mxu0 %v302
    %330 = vmatprep.subr.mxu0 0.0
    %331 = vmatpush1.msra.mxu0 %v303
    %332 = vmatprep.subr.mxu0 0.0
    %333 = vmatpush1.msra.mxu0 0.0
    %334 = vmatprep.subr.mxu0 0.0
    %335 = vmatpush1.msra.mxu0 0.0
    %336 = vmatprep.subr.mxu0 0.0
    %337 = vmatpush1.msra.mxu0 0.0
    %338 = vmatprep.subr.mxu0 0.0
    %339 = vmatpush1.msra.mxu0 0.0
    %340 = vmatprep.subr.mxu0 0.0
    %341 = vmatpush1.msra.mxu0 0.0
    %342 = vmatprep.subr.mxu0 0.0
    %343 = vmatpush1.msra.mxu0 0.0
    %344 = vmatprep.subr.mxu0 0.0
    %345 = vmatpush1.msra.mxu0 0.0
    %346 = vmatprep.subr.mxu0 0.0
    %347 = vmatpush1.msra.mxu0 0.0
    %348 = vmatprep.subr.mxu0 0.0
    %349 = vmatpush1.msra.mxu0 0.0
    %350 = vmatprep.subr.mxu0 0.0
    %351 = vmatpush1.msra.mxu0 0.0
    %352 = vmatprep.subr.mxu0 0.0
    %353 = vmatpush1.msra.mxu0 0.0
    %354 = vmatprep.subr.mxu0 0.0
    %355 = vmatpush1.msra.mxu0 0.0
    %356 = vmatprep.subr.mxu0 0.0
    %357 = vmatpush1.msra.mxu0 0.0
    %358 = vmatprep.subr.mxu0 0.0
    %359 = vmatpush1.msra.mxu0 0.0
    %360 = vmatprep.subr.mxu0 0.0
    %361 = vmatpush1.msra.mxu0 0.0
    %362 = vmatprep.subr.mxu0 0.0
    %363 = vmatpush1.msra.mxu0 0.0
    %364 = vmatprep.subr.mxu0 0.0
    %365 = vmatpush1.msra.mxu0 0.0
    %366 = vmatprep.subr.mxu0 0.0
    %367 = vmatpush1.msra.mxu0 0.0
    %368 = vmatprep.subr.mxu0 0.0
    %369 = vmatpush1.msra.mxu0 0.0
    %370 = vmatprep.subr.mxu0 0.0
    %371 = vmatpush1.msra.mxu0 0.0
    %372 = vmatprep.subr.mxu0 0.0
    %373 = vmatpush1.msra.mxu0 0.0
    %374 = vmatprep.subr.mxu0 0.0
    %375 = vmatpush1.msra.mxu0 0.0
    %376 = vmatprep.subr.mxu0 0.0
    %377 = vmatpush1.msra.mxu0 0.0
    %378 = vmatprep.subr.mxu0 0.0
    %379 = vmatpush1.msra.mxu0 0.0
    %380 = vmatprep.subr.mxu0 0.0
    %381 = vmatpush1.msra.mxu0 0.0
    %382 = vmatprep.subr.mxu0 0.0
    %383 = vmatpush1.msra.mxu0 0.0
    %384 = vmatprep.subr.mxu0 0.0
    %385 = vmatpush1.msra.mxu0 0.0
    %386 = vmatprep.subr.mxu0 0.0
    %387 = vmatpush1.msra.mxu0 0.0
    %388 = vmatprep.mubr.f32.mxu0 0.0
    %389 = vmatmul.mubr.f32.gmra.mrb[0].mxu0 %v313
    %v390 = vpop.f32.mrb[0].mxu0
    %v391 = vadd.f32 %v309, %v390
    %v392 = vpop.f32.mrb[0].mxu0
    %393 = vmatprep.mubr.f32.mxu0 0.0
    %394 = vmatmul.mubr.f32.gmra.mrb[0].mxu0 %v316
    %v395 = vpop.f32.mrb[0].mxu0
    %v396 = vadd.f32 %v309, %v395
    %v397 = vpop.f32.mrb[0].mxu0
    %398 = vmatprep.mubr.f32.mxu0 0.0
    %399 = vmatmul.mubr.f32.gmra.mrb[0].mxu0 %v319
    %v400 = vpop.f32.mrb[0].mxu0
    %v401 = vadd.f32 %v309, %v400
    %v402 = vpop.f32.mrb[0].mxu0
    %403 = vmatprep.mubr.f32.mxu0 0.0
    %404 = vmatmul.mubr.f32.gmra.mrb[0].mxu0 %v322
    %v405 = vpop.f32.mrb[0].mxu0
    %v406 = vadd.f32 %v309, %v405
    %v407 = vpop.f32.mrb[0].mxu0
    %408 = vdwg.mxu0
    %v409 = vld [vmem:[#allocation12] sm:$0xff]
    %v410 = vld [vmem:[#allocation12 + $0x8] sm:$0xff]
    %v411 = vld [vmem:[%s7] sm:$0x1]
    %v413 = vlaneseq
    %v414 = vshrl.u32 %v413, 7
    %v415 = vsub.s32 0, %v414
    %v416 = vrot.slane %v411, %v415
    %vm418 = vcmask 130048
    %v420 = vsel %vm418, %v287, 0
    %422 = vmatprep.subr.mxu0 0.0
    %423 = vmatpush1.msra.mxu0 %v409
    %424 = vmatprep.subr.mxu0 0.0
    %425 = vmatpush1.msra.mxu0 %v410
    %426 = vmatprep.subr.mxu0 0.0
    %427 = vmatpush1.msra.mxu0 0.0
    %428 = vmatprep.subr.mxu0 0.0
    %429 = vmatpush1.msra.mxu0 0.0
    %430 = vmatprep.subr.mxu0 0.0
    %431 = vmatpush1.msra.mxu0 0.0
    %432 = vmatprep.subr.mxu0 0.0
    %433 = vmatpush1.msra.mxu0 0.0
    %434 = vmatprep.subr.mxu0 0.0
    %435 = vmatpush1.msra.mxu0 0.0
    %436 = vmatprep.subr.mxu0 0.0
    %437 = vmatpush1.msra.mxu0 0.0
    %438 = vmatprep.subr.mxu0 0.0
    %439 = vmatpush1.msra.mxu0 0.0
    %440 = vmatprep.subr.mxu0 0.0
    %441 = vmatpush1.msra.mxu0 0.0
    %442 = vmatprep.subr.mxu0 0.0
    %443 = vmatpush1.msra.mxu0 0.0
    %444 = vmatprep.subr.mxu0 0.0
    %445 = vmatpush1.msra.mxu0 0.0
    %446 = vmatprep.subr.mxu0 0.0
    %447 = vmatpush1.msra.mxu0 0.0
    %448 = vmatprep.subr.mxu0 0.0
    %449 = vmatpush1.msra.mxu0 0.0
    %450 = vmatprep.subr.mxu0 0.0
    %451 = vmatpush1.msra.mxu0 0.0
    %452 = vmatprep.subr.mxu0 0.0
    %453 = vmatpush1.msra.mxu0 0.0
    %454 = vmatprep.subr.mxu0 0.0
    %455 = vmatpush1.msra.mxu0 0.0
    %456 = vmatprep.subr.mxu0 0.0
    %457 = vmatpush1.msra.mxu0 0.0
    %458 = vmatprep.subr.mxu0 0.0
    %459 = vmatpush1.msra.mxu0 0.0
    %460 = vmatprep.subr.mxu0 0.0
    %461 = vmatpush1.msra.mxu0 0.0
    %462 = vmatprep.subr.mxu0 0.0
    %463 = vmatpush1.msra.mxu0 0.0
    %464 = vmatprep.subr.mxu0 0.0
    %465 = vmatpush1.msra.mxu0 0.0
    %466 = vmatprep.subr.mxu0 0.0
    %467 = vmatpush1.msra.mxu0 0.0
    %468 = vmatprep.subr.mxu0 0.0
    %469 = vmatpush1.msra.mxu0 0.0
    %470 = vmatprep.subr.mxu0 0.0
    %471 = vmatpush1.msra.mxu0 0.0
    %472 = vmatprep.subr.mxu0 0.0
    %473 = vmatpush1.msra.mxu0 0.0
    %474 = vmatprep.subr.mxu0 0.0
    %475 = vmatpush1.msra.mxu0 0.0
    %476 = vmatprep.subr.mxu0 0.0
    %477 = vmatpush1.msra.mxu0 0.0
    %478 = vmatprep.subr.mxu0 0.0
    %479 = vmatpush1.msra.mxu0 0.0
    %480 = vmatprep.subr.mxu0 0.0
    %481 = vmatpush1.msra.mxu0 0.0
    %482 = vmatprep.subr.mxu0 0.0
    %483 = vmatpush1.msra.mxu0 0.0
    %484 = vmatprep.subr.mxu0 0.0
    %485 = vmatpush1.msra.mxu0 0.0
    %486 = vmatprep.mubr.f32.mxu0 0.0
    %487 = vmatmul.mubr.f32.gmra.mrb[0].mxu0 %v420
    %v488 = vpop.f32.mrb[0].mxu0
    %v489 = vadd.f32 %v416, %v488
    %v490 = vpop.f32.mrb[0].mxu0
    %491 = vdwg.mxu0
    %v492 = vld [vmem:[#allocation14] sm:$0xff]
    %v493 = vld [vmem:[#allocation14 + $0x8] sm:$0xff]
    %v494 = vld [vmem:[#allocation15] sm:$0x1]
    %v496 = vlaneseq
    %v497 = vshrl.u32 %v496, 7
    %v498 = vsub.s32 0, %v497
    %v499 = vrot.slane %v494, %v498
    %501 = vmatprep.subr.mxu0 0.0
    %502 = vmatpush1.msra.mxu0 %v492
    %503 = vmatprep.subr.mxu0 0.0
    %504 = vmatpush1.msra.mxu0 %v493
    %505 = vmatprep.subr.mxu0 0.0
    %506 = vmatpush1.msra.mxu0 0.0
    %507 = vmatprep.subr.mxu0 0.0
    %508 = vmatpush1.msra.mxu0 0.0
    %509 = vmatprep.subr.mxu0 0.0
    %510 = vmatpush1.msra.mxu0 0.0
    %511 = vmatprep.subr.mxu0 0.0
    %512 = vmatpush1.msra.mxu0 0.0
    %513 = vmatprep.subr.mxu0 0.0
    %514 = vmatpush1.msra.mxu0 0.0
    %515 = vmatprep.subr.mxu0 0.0
    %516 = vmatpush1.msra.mxu0 0.0
    %517 = vmatprep.subr.mxu0 0.0
    %518 = vmatpush1.msra.mxu0 0.0
    %519 = vmatprep.subr.mxu0 0.0
    %520 = vmatpush1.msra.mxu0 0.0
    %521 = vmatprep.subr.mxu0 0.0
    %522 = vmatpush1.msra.mxu0 0.0
    %523 = vmatprep.subr.mxu0 0.0
    %524 = vmatpush1.msra.mxu0 0.0
    %525 = vmatprep.subr.mxu0 0.0
    %526 = vmatpush1.msra.mxu0 0.0
    %527 = vmatprep.subr.mxu0 0.0
    %528 = vmatpush1.msra.mxu0 0.0
    %529 = vmatprep.subr.mxu0 0.0
    %530 = vmatpush1.msra.mxu0 0.0
    %531 = vmatprep.subr.mxu0 0.0
    %532 = vmatpush1.msra.mxu0 0.0
    %533 = vmatprep.subr.mxu0 0.0
    %534 = vmatpush1.msra.mxu0 0.0
    %535 = vmatprep.subr.mxu0 0.0
    %536 = vmatpush1.msra.mxu0 0.0
    %537 = vmatprep.subr.mxu0 0.0
    %538 = vmatpush1.msra.mxu0 0.0
    %539 = vmatprep.subr.mxu0 0.0
    %540 = vmatpush1.msra.mxu0 0.0
    %541 = vmatprep.subr.mxu0 0.0
    %542 = vmatpush1.msra.mxu0 0.0
    %543 = vmatprep.subr.mxu0 0.0
    %544 = vmatpush1.msra.mxu0 0.0
    %545 = vmatprep.subr.mxu0 0.0
    %546 = vmatpush1.msra.mxu0 0.0
    %547 = vmatprep.subr.mxu0 0.0
    %548 = vmatpush1.msra.mxu0 0.0
    %549 = vmatprep.subr.mxu0 0.0
    %550 = vmatpush1.msra.mxu0 0.0
    %551 = vmatprep.subr.mxu0 0.0
    %552 = vmatpush1.msra.mxu0 0.0
    %553 = vmatprep.subr.mxu0 0.0
    %554 = vmatpush1.msra.mxu0 0.0
    %555 = vmatprep.subr.mxu0 0.0
    %556 = vmatpush1.msra.mxu0 0.0
    %557 = vmatprep.subr.mxu0 0.0
    %558 = vmatpush1.msra.mxu0 0.0
    %559 = vmatprep.subr.mxu0 0.0
    %560 = vmatpush1.msra.mxu0 0.0
    %561 = vmatprep.subr.mxu0 0.0
    %562 = vmatpush1.msra.mxu0 0.0
    %563 = vmatprep.subr.mxu0 0.0
    %564 = vmatpush1.msra.mxu0 0.0
    %565 = vmatprep.mubr.f32.mxu0 0.0
    %566 = vmatmul.mubr.f32.gmra.mrb[0].mxu0 %v420
    %v567 = vpop.f32.mrb[0].mxu0
    %v568 = vadd.f32 %v499, %v567
    %v569 = vpop.f32.mrb[0].mxu0
    %570 = vdwg.mxu0
    %v572 = vsel %vm311, %v391, 0
    %v575 = vsel %vm311, %v396, 0
    %v578 = vsel %vm311, %v489, 0
    %580 = vmatprep.subr.mxu0 0.0
    %581 = vmatpush1.xpose.msra.mxu0 %v578
    %582 = vmatprep.subr.mxu0 0.0
    %583 = vmatpush1.xpose.msra.mxu0 0.0
    %584 = vmatprep.subr.mxu0 0.0
    %585 = vmatpush1.xpose.msra.mxu0 0.0
    %586 = vmatprep.subr.mxu0 0.0
    %587 = vmatpush1.xpose.msra.mxu0 0.0
    %588 = vmatprep.subr.mxu0 0.0
    %589 = vmatpush1.xpose.msra.mxu0 0.0
    %590 = vmatprep.subr.mxu0 0.0
    %591 = vmatpush1.xpose.msra.mxu0 0.0
    %592 = vmatprep.subr.mxu0 0.0
    %593 = vmatpush1.xpose.msra.mxu0 0.0
    %594 = vmatprep.subr.mxu0 0.0
    %595 = vmatpush1.xpose.msra.mxu0 0.0
    %596 = vmatprep.subr.mxu0 0.0
    %597 = vmatpush1.xpose.msra.mxu0 0.0
    %598 = vmatprep.subr.mxu0 0.0
    %599 = vmatpush1.xpose.msra.mxu0 0.0
    %600 = vmatprep.subr.mxu0 0.0
    %601 = vmatpush1.xpose.msra.mxu0 0.0
    %602 = vmatprep.subr.mxu0 0.0
    %603 = vmatpush1.xpose.msra.mxu0 0.0
    %604 = vmatprep.subr.mxu0 0.0
    %605 = vmatpush1.xpose.msra.mxu0 0.0
    %606 = vmatprep.subr.mxu0 0.0
    %607 = vmatpush1.xpose.msra.mxu0 0.0
    %608 = vmatprep.subr.mxu0 0.0
    %609 = vmatpush1.xpose.msra.mxu0 0.0
    %610 = vmatprep.subr.mxu0 0.0
    %611 = vmatpush1.xpose.msra.mxu0 0.0
    %612 = vmatprep.subr.mxu0 0.0
    %613 = vmatpush1.xpose.msra.mxu0 0.0
    %614 = vmatprep.subr.mxu0 0.0
    %615 = vmatpush1.xpose.msra.mxu0 0.0
    %616 = vmatprep.subr.mxu0 0.0
    %617 = vmatpush1.xpose.msra.mxu0 0.0
    %618 = vmatprep.subr.mxu0 0.0
    %619 = vmatpush1.xpose.msra.mxu0 0.0
    %620 = vmatprep.subr.mxu0 0.0
    %621 = vmatpush1.xpose.msra.mxu0 0.0
    %622 = vmatprep.subr.mxu0 0.0
    %623 = vmatpush1.xpose.msra.mxu0 0.0
    %624 = vmatprep.subr.mxu0 0.0
    %625 = vmatpush1.xpose.msra.mxu0 0.0
    %626 = vmatprep.subr.mxu0 0.0
    %627 = vmatpush1.xpose.msra.mxu0 0.0
    %628 = vmatprep.subr.mxu0 0.0
    %629 = vmatpush1.xpose.msra.mxu0 0.0
    %630 = vmatprep.subr.mxu0 0.0
    %631 = vmatpush1.xpose.msra.mxu0 0.0
    %632 = vmatprep.subr.mxu0 0.0
    %633 = vmatpush1.xpose.msra.mxu0 0.0
    %634 = vmatprep.subr.mxu0 0.0
    %635 = vmatpush1.xpose.msra.mxu0 0.0
    %636 = vmatprep.subr.mxu0 0.0
    %637 = vmatpush1.xpose.msra.mxu0 0.0
    %638 = vmatprep.subr.mxu0 0.0
    %639 = vmatpush1.xpose.msra.mxu0 0.0
    %640 = vmatprep.subr.mxu0 0.0
    %641 = vmatpush1.xpose.msra.mxu0 0.0
    %642 = vmatprep.subr.mxu0 0.0
    %643 = vmatpush1.xpose.msra.mxu0 0.0
    %644 = vmatprep.mubr.f32.mxu0 0.0
    %645 = vmatmul.mubr.f32.gmra.mrb[0].mxu0 %v572
    %v646 = vpop.f32.mrb[0].mxu0
    %v647 = vadd.f32 0.0, %v646
    %v648 = vpop.f32.mrb[0].mxu0
    %649 = vmatprep.mubr.f32.mxu0 0.0
    %650 = vmatmul.mubr.f32.gmra.mrb[0].mxu0 %v575
    %v651 = vpop.f32.mrb[0].mxu0
    %v652 = vadd.f32 0.0, %v651
    %v653 = vpop.f32.mrb[0].mxu0
    %654 = vdwg.mxu0
    %vm655 = vcmask 31744
    %v656 = vsel %vm655, %v647, -inf
    %657 = vmax.xlane.f32.xlu0 %v656
    %v658 = vpop.xlane.xlu0 %657
    %v659 = vsel %vm655, %v652, -inf
    %660 = vmax.xlane.f32.xlu0 %v659
    %v661 = vpop.xlane.xlu0 %660
    %v662 = vsub.f32 %v647, %v658
    %v663 = vsub.f32 %v652, %v661
    %v664 = vmul.f32 %v662, 1.442695
    %v665 = vpow.pop %v664
    %v666 = vmul.f32 %v663, 1.442695
    %v667 = vpow.pop %v666
    %v668 = vsel %vm655, %v665, 0.0
    %669 = vadd.xlane.f32.xlu0 %v668
    %v670 = vpop.xlane.xlu0 %669
    %v671 = vsel %vm655, %v667, 0.0
    %672 = vadd.xlane.f32.xlu0 %v671
    %v673 = vpop.xlane.xlu0 %672
    %v674 = vrcp.pop %v670
    %v675 = vrcp.pop %v673
    %v676 = vmul.f32 %v665, %v674
    %v677 = vmul.f32 %v667, %v675
    %v679 = vsel %vm655, %v676, 0
    %v682 = vsel %vm655, %v677, 0
    %vm684 = vcmask 1043456
    %v686 = vsel %vm684, %v568, 0
    %688 = vmatprep.subr.mxu0 0.0
    %689 = vmatpush1.msra.mxu0 %v686
    %690 = vmatprep.subr.mxu0 0.0
    %691 = vmatpush1.msra.mxu0 0.0
    %692 = vmatprep.subr.mxu0 0.0
    %693 = vmatpush1.msra.mxu0 0.0
    %694 = vmatprep.subr.mxu0 0.0
    %695 = vmatpush1.msra.mxu0 0.0
    %696 = vmatprep.subr.mxu0 0.0
    %697 = vmatpush1.msra.mxu0 0.0
    %698 = vmatprep.subr.mxu0 0.0
    %699 = vmatpush1.msra.mxu0 0.0
    %700 = vmatprep.subr.mxu0 0.0
    %701 = vmatpush1.msra.mxu0 0.0
    %702 = vmatprep.subr.mxu0 0.0
    %703 = vmatpush1.msra.mxu0 0.0
    %704 = vmatprep.subr.mxu0 0.0
    %705 = vmatpush1.msra.mxu0 0.0
    %706 = vmatprep.subr.mxu0 0.0
    %707 = vmatpush1.msra.mxu0 0.0
    %708 = vmatprep.subr.mxu0 0.0
    %709 = vmatpush1.msra.mxu0 0.0
    %710 = vmatprep.subr.mxu0 0.0
    %711 = vmatpush1.msra.mxu0 0.0
    %712 = vmatprep.subr.mxu0 0.0
    %713 = vmatpush1.msra.mxu0 0.0
    %714 = vmatprep.subr.mxu0 0.0
    %715 = vmatpush1.msra.mxu0 0.0
    %716 = vmatprep.subr.mxu0 0.0
    %717 = vmatpush1.msra.mxu0 0.0
    %718 = vmatprep.subr.mxu0 0.0
    %719 = vmatpush1.msra.mxu0 0.0
    %720 = vmatprep.subr.mxu0 0.0
    %721 = vmatpush1.msra.mxu0 0.0
    %722 = vmatprep.subr.mxu0 0.0
    %723 = vmatpush1.msra.mxu0 0.0
    %724 = vmatprep.subr.mxu0 0.0
    %725 = vmatpush1.msra.mxu0 0.0
    %726 = vmatprep.subr.mxu0 0.0
    %727 = vmatpush1.msra.mxu0 0.0
    %728 = vmatprep.subr.mxu0 0.0
    %729 = vmatpush1.msra.mxu0 0.0
    %730 = vmatprep.subr.mxu0 0.0
    %731 = vmatpush1.msra.mxu0 0.0
    %732 = vmatprep.subr.mxu0 0.0
    %733 = vmatpush1.msra.mxu0 0.0
    %734 = vmatprep.subr.mxu0 0.0
    %735 = vmatpush1.msra.mxu0 0.0
    %736 = vmatprep.subr.mxu0 0.0
    %737 = vmatpush1.msra.mxu0 0.0
    %738 = vmatprep.subr.mxu0 0.0
    %739 = vmatpush1.msra.mxu0 0.0
    %740 = vmatprep.subr.mxu0 0.0
    %741 = vmatpush1.msra.mxu0 0.0
    %742 = vmatprep.subr.mxu0 0.0
    %743 = vmatpush1.msra.mxu0 0.0
    %744 = vmatprep.subr.mxu0 0.0
    %745 = vmatpush1.msra.mxu0 0.0
    %746 = vmatprep.subr.mxu0 0.0
    %747 = vmatpush1.msra.mxu0 0.0
    %748 = vmatprep.subr.mxu0 0.0
    %749 = vmatpush1.msra.mxu0 0.0
    %750 = vmatprep.subr.mxu0 0.0
    %751 = vmatpush1.msra.mxu0 0.0
    %752 = vmatprep.mubr.f32.mxu0 0.0
    %753 = vmatmul.mubr.f32.gmra.mrb[0].mxu0 %v679
    %v754 = vpop.f32.mrb[0].mxu0
    %v755 = vadd.f32 0.0, %v754
    %v756 = vpop.f32.mrb[0].mxu0
    %757 = vmatprep.mubr.f32.mxu0 0.0
    %758 = vmatmul.mubr.f32.gmra.mrb[0].mxu0 %v682
    %v759 = vpop.f32.mrb[0].mxu0
    %v760 = vadd.f32 0.0, %v759
    %v761 = vpop.f32.mrb[0].mxu0
    %762 = vdwg.mxu0
    %v764 = vsel %vm311, %v290, 0
    %v767 = vsel %vm311, %v291, 0
    %v770 = vsel %vm311, %v755, 0
    %v773 = vsel %vm311, %v760, 0
    %775 = vmatprep.subr.mxu0 0.0
    %776 = vmatpush1.xpose.msra.mxu0 %v770
    %777 = vmatprep.subr.mxu0 0.0
    %778 = vmatpush1.xpose.msra.mxu0 %v773
    %779 = vmatprep.subr.mxu0 0.0
    %780 = vmatpush1.xpose.msra.mxu0 0.0
    %781 = vmatprep.subr.mxu0 0.0
    %782 = vmatpush1.xpose.msra.mxu0 0.0
    %783 = vmatprep.subr.mxu0 0.0
    %784 = vmatpush1.xpose.msra.mxu0 0.0
    %785 = vmatprep.subr.mxu0 0.0
    %786 = vmatpush1.xpose.msra.mxu0 0.0
    %787 = vmatprep.subr.mxu0 0.0
    %788 = vmatpush1.xpose.msra.mxu0 0.0
    %789 = vmatprep.subr.mxu0 0.0
    %790 = vmatpush1.xpose.msra.mxu0 0.0
    %791 = vmatprep.subr.mxu0 0.0
    %792 = vmatpush1.xpose.msra.mxu0 0.0
    %793 = vmatprep.subr.mxu0 0.0
    %794 = vmatpush1.xpose.msra.mxu0 0.0
    %795 = vmatprep.subr.mxu0 0.0
    %796 = vmatpush1.xpose.msra.mxu0 0.0
    %797 = vmatprep.subr.mxu0 0.0
    %798 = vmatpush1.xpose.msra.mxu0 0.0
    %799 = vmatprep.subr.mxu0 0.0
    %800 = vmatpush1.xpose.msra.mxu0 0.0
    %801 = vmatprep.subr.mxu0 0.0
    %802 = vmatpush1.xpose.msra.mxu0 0.0
    %803 = vmatprep.subr.mxu0 0.0
    %804 = vmatpush1.xpose.msra.mxu0 0.0
    %805 = vmatprep.subr.mxu0 0.0
    %806 = vmatpush1.xpose.msra.mxu0 0.0
    %807 = vmatprep.subr.mxu0 0.0
    %808 = vmatpush1.xpose.msra.mxu0 0.0
    %809 = vmatprep.subr.mxu0 0.0
    %810 = vmatpush1.xpose.msra.mxu0 0.0
    %811 = vmatprep.subr.mxu0 0.0
    %812 = vmatpush1.xpose.msra.mxu0 0.0
    %813 = vmatprep.subr.mxu0 0.0
    %814 = vmatpush1.xpose.msra.mxu0 0.0
    %815 = vmatprep.subr.mxu0 0.0
    %816 = vmatpush1.xpose.msra.mxu0 0.0
    %817 = vmatprep.subr.mxu0 0.0
    %818 = vmatpush1.xpose.msra.mxu0 0.0
    %819 = vmatprep.subr.mxu0 0.0
    %820 = vmatpush1.xpose.msra.mxu0 0.0
    %821 = vmatprep.subr.mxu0 0.0
    %822 = vmatpush1.xpose.msra.mxu0 0.0
    %823 = vmatprep.subr.mxu0 0.0
    %824 = vmatpush1.xpose.msra.mxu0 0.0
    %825 = vmatprep.subr.mxu0 0.0
    %826 = vmatpush1.xpose.msra.mxu0 0.0
    %827 = vmatprep.subr.mxu0 0.0
    %828 = vmatpush1.xpose.msra.mxu0 0.0
    %829 = vmatprep.subr.mxu0 0.0
    %830 = vmatpush1.xpose.msra.mxu0 0.0
    %831 = vmatprep.subr.mxu0 0.0
    %832 = vmatpush1.xpose.msra.mxu0 0.0
    %833 = vmatprep.subr.mxu0 0.0
    %834 = vmatpush1.xpose.msra.mxu0 0.0
    %835 = vmatprep.subr.mxu0 0.0
    %836 = vmatpush1.xpose.msra.mxu0 0.0
    %837 = vmatprep.subr.mxu0 0.0
    %838 = vmatpush1.xpose.msra.mxu0 0.0
    %839 = vmatprep.mubr.f32.mxu0 0.0
    %840 = vmatmul.mubr.f32.gmra.mrb[0].mxu0 %v764
    %v841 = vpop.f32.mrb[0].mxu0
    %v842 = vadd.f32 0.0, %v841
    %v843 = vpop.f32.mrb[0].mxu0
    %844 = vmatprep.mubr.f32.mxu0 0.0
    %845 = vmatmul.mubr.f32.gmra.mrb[0].mxu0 %v767
    %v846 = vpop.f32.mrb[0].mxu0
    %v847 = vadd.f32 0.0, %v846
    %v848 = vpop.f32.mrb[0].mxu0
    %849 = vdwg.mxu0
    %v851 = vsel %vm311, %v295, 0
    %v854 = vsel %vm311, %v296, 0
    %856 = vmatprep.subr.mxu0 0.0
    %857 = vmatpush1.xpose.msra.mxu0 %v770
    %858 = vmatprep.subr.mxu0 0.0
    %859 = vmatpush1.xpose.msra.mxu0 %v773
    %860 = vmatprep.subr.mxu0 0.0
    %861 = vmatpush1.xpose.msra.mxu0 0.0
    %862 = vmatprep.subr.mxu0 0.0
    %863 = vmatpush1.xpose.msra.mxu0 0.0
    %864 = vmatprep.subr.mxu0 0.0
    %865 = vmatpush1.xpose.msra.mxu0 0.0
    %866 = vmatprep.subr.mxu0 0.0
    %867 = vmatpush1.xpose.msra.mxu0 0.0
    %868 = vmatprep.subr.mxu0 0.0
    %869 = vmatpush1.xpose.msra.mxu0 0.0
    %870 = vmatprep.subr.mxu0 0.0
    %871 = vmatpush1.xpose.msra.mxu0 0.0
    %872 = vmatprep.subr.mxu0 0.0
    %873 = vmatpush1.xpose.msra.mxu0 0.0
    %874 = vmatprep.subr.mxu0 0.0
    %875 = vmatpush1.xpose.msra.mxu0 0.0
    %876 = vmatprep.subr.mxu0 0.0
    %877 = vmatpush1.xpose.msra.mxu0 0.0
    %878 = vmatprep.subr.mxu0 0.0
    %879 = vmatpush1.xpose.msra.mxu0 0.0
    %880 = vmatprep.subr.mxu0 0.0
    %881 = vmatpush1.xpose.msra.mxu0 0.0
    %882 = vmatprep.subr.mxu0 0.0
    %883 = vmatpush1.xpose.msra.mxu0 0.0
    %884 = vmatprep.subr.mxu0 0.0
    %885 = vmatpush1.xpose.msra.mxu0 0.0
    %886 = vmatprep.subr.mxu0 0.0
    %887 = vmatpush1.xpose.msra.mxu0 0.0
    %888 = vmatprep.subr.mxu0 0.0
    %889 = vmatpush1.xpose.msra.mxu0 0.0
    %890 = vmatprep.subr.mxu0 0.0
    %891 = vmatpush1.xpose.msra.mxu0 0.0
    %892 = vmatprep.subr.mxu0 0.0
    %893 = vmatpush1.xpose.msra.mxu0 0.0
    %894 = vmatprep.subr.mxu0 0.0
    %895 = vmatpush1.xpose.msra.mxu0 0.0
    %896 = vmatprep.subr.mxu0 0.0
    %897 = vmatpush1.xpose.msra.mxu0 0.0
    %898 = vmatprep.subr.mxu0 0.0
    %899 = vmatpush1.xpose.msra.mxu0 0.0
    %900 = vmatprep.subr.mxu0 0.0
    %901 = vmatpush1.xpose.msra.mxu0 0.0
    %902 = vmatprep.subr.mxu0 0.0
    %903 = vmatpush1.xpose.msra.mxu0 0.0
    %904 = vmatprep.subr.mxu0 0.0
    %905 = vmatpush1.xpose.msra.mxu0 0.0
    %906 = vmatprep.subr.mxu0 0.0
    %907 = vmatpush1.xpose.msra.mxu0 0.0
    %908 = vmatprep.subr.mxu0 0.0
    %909 = vmatpush1.xpose.msra.mxu0 0.0
    %910 = vmatprep.subr.mxu0 0.0
    %911 = vmatpush1.xpose.msra.mxu0 0.0
    %912 = vmatprep.subr.mxu0 0.0
    %913 = vmatpush1.xpose.msra.mxu0 0.0
    %914 = vmatprep.subr.mxu0 0.0
    %915 = vmatpush1.xpose.msra.mxu0 0.0
    %916 = vmatprep.subr.mxu0 0.0
    %917 = vmatpush1.xpose.msra.mxu0 0.0
    %918 = vmatprep.subr.mxu0 0.0
    %919 = vmatpush1.xpose.msra.mxu0 0.0
    %920 = vmatprep.mubr.f32.mxu0 0.0
    %921 = vmatmul.mubr.f32.gmra.mrb[0].mxu0 %v851
    %v922 = vpop.f32.mrb[0].mxu0
    %v923 = vadd.f32 0.0, %v922
    %v924 = vpop.f32.mrb[0].mxu0
    %925 = vmatprep.mubr.f32.mxu0 0.0
    %926 = vmatmul.mubr.f32.gmra.mrb[0].mxu0 %v854
    %v927 = vpop.f32.mrb[0].mxu0
    %v928 = vadd.f32 0.0, %v927
    %v929 = vpop.f32.mrb[0].mxu0
    %930 = vdwg.mxu0
    %v932 = vsel %vm418, %v923, 0
    %v935 = vsel %vm418, %v928, 0
    %937 = vmatprep.subr.mxu0 0.0
    %938 = vmatpush1.msra.mxu0 %v298
    %939 = vmatprep.subr.mxu0 0.0
    %940 = vmatpush1.msra.mxu0 %v299
    %941 = vmatprep.subr.mxu0 0.0
    %942 = vmatpush1.msra.mxu0 0.0
    %943 = vmatprep.subr.mxu0 0.0
    %944 = vmatpush1.msra.mxu0 0.0
    %945 = vmatprep.subr.mxu0 0.0
    %946 = vmatpush1.msra.mxu0 0.0
    %947 = vmatprep.subr.mxu0 0.0
    %948 = vmatpush1.msra.mxu0 0.0
    %949 = vmatprep.subr.mxu0 0.0
    %950 = vmatpush1.msra.mxu0 0.0
    %951 = vmatprep.subr.mxu0 0.0
    %952 = vmatpush1.msra.mxu0 0.0
    %953 = vmatprep.subr.mxu0 0.0
    %954 = vmatpush1.msra.mxu0 0.0
    %955 = vmatprep.subr.mxu0 0.0
    %956 = vmatpush1.msra.mxu0 0.0
    %957 = vmatprep.subr.mxu0 0.0
    %958 = vmatpush1.msra.mxu0 0.0
    %959 = vmatprep.subr.mxu0 0.0
    %960 = vmatpush1.msra.mxu0 0.0
    %961 = vmatprep.subr.mxu0 0.0
    %962 = vmatpush1.msra.mxu0 0.0
    %963 = vmatprep.subr.mxu0 0.0
    %964 = vmatpush1.msra.mxu0 0.0
    %965 = vmatprep.subr.mxu0 0.0
    %966 = vmatpush1.msra.mxu0 0.0
    %967 = vmatprep.subr.mxu0 0.0
    %968 = vmatpush1.msra.mxu0 0.0
    %969 = vmatprep.subr.mxu0 0.0
    %970 = vmatpush1.msra.mxu0 0.0
    %971 = vmatprep.subr.mxu0 0.0
    %972 = vmatpush1.msra.mxu0 0.0
    %973 = vmatprep.subr.mxu0 0.0
    %974 = vmatpush1.msra.mxu0 0.0
    %975 = vmatprep.subr.mxu0 0.0
    %976 = vmatpush1.msra.mxu0 0.0
    %977 = vmatprep.subr.mxu0 0.0
    %978 = vmatpush1.msra.mxu0 0.0
    %979 = vmatprep.subr.mxu0 0.0
    %980 = vmatpush1.msra.mxu0 0.0
    %981 = vmatprep.subr.mxu0 0.0
    %982 = vmatpush1.msra.mxu0 0.0
    %983 = vmatprep.subr.mxu0 0.0
    %984 = vmatpush1.msra.mxu0 0.0
    %985 = vmatprep.subr.mxu0 0.0
    %986 = vmatpush1.msra.mxu0 0.0
    %987 = vmatprep.subr.mxu0 0.0
    %988 = vmatpush1.msra.mxu0 0.0
    %989 = vmatprep.subr.mxu0 0.0
    %990 = vmatpush1.msra.mxu0 0.0
    %991 = vmatprep.subr.mxu0 0.0
    %992 = vmatpush1.msra.mxu0 0.0
    %993 = vmatprep.subr.mxu0 0.0
    %994 = vmatpush1.msra.mxu0 0.0
    %995 = vmatprep.subr.mxu0 0.0
    %996 = vmatpush1.msra.mxu0 0.0
    %997 = vmatprep.subr.mxu0 0.0
    %998 = vmatpush1.msra.mxu0 0.0
    %999 = vmatprep.subr.mxu0 0.0
    %1000 = vmatpush1.msra.mxu0 0.0
    %1001 = vmatprep.mubr.f32.mxu0 0.0
    %1002 = vmatmul.mubr.f32.gmra.mrb[0].mxu0 %v932
    %v1003 = vpop.f32.mrb[0].mxu0
    %v1004 = vadd.f32 0.0, %v1003
    %v1005 = vpop.f32.mrb[0].mxu0
    %1006 = vmatprep.mubr.f32.mxu0 0.0
    %1007 = vmatmul.mubr.f32.gmra.mrb[0].mxu0 %v935
    %v1008 = vpop.f32.mrb[0].mxu0
    %v1009 = vadd.f32 0.0, %v1008
    %v1010 = vpop.f32.mrb[0].mxu0
    %1011 = vdwg.mxu0
    %v1013 = vsel %vm418, %v842, 0
    %v1016 = vsel %vm418, %v847, 0
    %1018 = vmatprep.subr.mxu0 0.0
    %1019 = vmatpush1.msra.mxu0 %v292
    %1020 = vmatprep.subr.mxu0 0.0
    %1021 = vmatpush1.msra.mxu0 %v293
    %1022 = vmatprep.subr.mxu0 0.0
    %1023 = vmatpush1.msra.mxu0 0.0
    %1024 = vmatprep.subr.mxu0 0.0
    %1025 = vmatpush1.msra.mxu0 0.0
    %1026 = vmatprep.subr.mxu0 0.0
    %1027 = vmatpush1.msra.mxu0 0.0
    %1028 = vmatprep.subr.mxu0 0.0
    %1029 = vmatpush1.msra.mxu0 0.0
    %1030 = vmatprep.subr.mxu0 0.0
    %1031 = vmatpush1.msra.mxu0 0.0
    %1032 = vmatprep.subr.mxu0 0.0
    %1033 = vmatpush1.msra.mxu0 0.0
    %1034 = vmatprep.subr.mxu0 0.0
    %1035 = vmatpush1.msra.mxu0 0.0
    %1036 = vmatprep.subr.mxu0 0.0
    %1037 = vmatpush1.msra.mxu0 0.0
    %1038 = vmatprep.subr.mxu0 0.0
    %1039 = vmatpush1.msra.mxu0 0.0
    %1040 = vmatprep.subr.mxu0 0.0
    %1041 = vmatpush1.msra.mxu0 0.0
    %1042 = vmatprep.subr.mxu0 0.0
    %1043 = vmatpush1.msra.mxu0 0.0
    %1044 = vmatprep.subr.mxu0 0.0
    %1045 = vmatpush1.msra.mxu0 0.0
    %1046 = vmatprep.subr.mxu0 0.0
    %1047 = vmatpush1.msra.mxu0 0.0
    %1048 = vmatprep.subr.mxu0 0.0
    %1049 = vmatpush1.msra.mxu0 0.0
    %1050 = vmatprep.subr.mxu0 0.0
    %1051 = vmatpush1.msra.mxu0 0.0
    %1052 = vmatprep.subr.mxu0 0.0
    %1053 = vmatpush1.msra.mxu0 0.0
    %1054 = vmatprep.subr.mxu0 0.0
    %1055 = vmatpush1.msra.mxu0 0.0
    %1056 = vmatprep.subr.mxu0 0.0
    %1057 = vmatpush1.msra.mxu0 0.0
    %1058 = vmatprep.subr.mxu0 0.0
    %1059 = vmatpush1.msra.mxu0 0.0
    %1060 = vmatprep.subr.mxu0 0.0
    %1061 = vmatpush1.msra.mxu0 0.0
    %1062 = vmatprep.subr.mxu0 0.0
    %1063 = vmatpush1.msra.mxu0 0.0
    %1064 = vmatprep.subr.mxu0 0.0
    %1065 = vmatpush1.msra.mxu0 0.0
    %1066 = vmatprep.subr.mxu0 0.0
    %1067 = vmatpush1.msra.mxu0 0.0
    %1068 = vmatprep.subr.mxu0 0.0
    %1069 = vmatpush1.msra.mxu0 0.0
    %1070 = vmatprep.subr.mxu0 0.0
    %1071 = vmatpush1.msra.mxu0 0.0
    %1072 = vmatprep.subr.mxu0 0.0
    %1073 = vmatpush1.msra.mxu0 0.0
    %1074 = vmatprep.subr.mxu0 0.0
    %1075 = vmatpush1.msra.mxu0 0.0
    %1076 = vmatprep.subr.mxu0 0.0
    %1077 = vmatpush1.msra.mxu0 0.0
    %1078 = vmatprep.subr.mxu0 0.0
    %1079 = vmatpush1.msra.mxu0 0.0
    %1080 = vmatprep.subr.mxu0 0.0
    %1081 = vmatpush1.msra.mxu0 0.0
    %1082 = vmatprep.mubr.f32.mxu0 0.0
    %1083 = vmatmul.mubr.f32.gmra.mrb[0].mxu0 %v1013
    %v1084 = vpop.f32.mrb[0].mxu0
    %v1085 = vadd.f32 %v1004, %v1084
    %v1086 = vpop.f32.mrb[0].mxu0
    %1087 = vmatprep.mubr.f32.mxu0 0.0
    %1088 = vmatmul.mubr.f32.gmra.mrb[0].mxu0 %v1016
    %v1089 = vpop.f32.mrb[0].mxu0
    %v1090 = vadd.f32 %v1009, %v1089
    %v1091 = vpop.f32.mrb[0].mxu0
    %1092 = vdwg.mxu0
    %1093 = vst.msk [vmem:[#allocation2] sm:$0xff] %vm311, %v1085
    %1094 = vst.msk [vmem:[#allocation2 + $0x8] sm:$0xff] %vm311, %v1090
    %v1095 = vld [vmem:[#allocation12] sm:$0xff]
    %v1096 = vld [vmem:[#allocation12 + $0x8] sm:$0xff]
    %v1097 = vld [vmem:[%s7] sm:$0x1]
    %v1099 = vlaneseq
    %v1100 = vshrl.u32 %v1099, 7
    %v1101 = vsub.s32 0, %v1100
    %v1102 = vrot.slane %v1097, %v1101
    %v1105 = vsel %vm418, %v289, 0
    %1107 = vmatprep.subr.mxu0 0.0
    %1108 = vmatpush1.msra.mxu0 %v1095
    %1109 = vmatprep.subr.mxu0 0.0
    %1110 = vmatpush1.msra.mxu0 %v1096
    %1111 = vmatprep.subr.mxu0 0.0
    %1112 = vmatpush1.msra.mxu0 0.0
    %1113 = vmatprep.subr.mxu0 0.0
    %1114 = vmatpush1.msra.mxu0 0.0
    %1115 = vmatprep.subr.mxu0 0.0
    %1116 = vmatpush1.msra.mxu0 0.0
    %1117 = vmatprep.subr.mxu0 0.0
    %1118 = vmatpush1.msra.mxu0 0.0
    %1119 = vmatprep.subr.mxu0 0.0
    %1120 = vmatpush1.msra.mxu0 0.0
    %1121 = vmatprep.subr.mxu0 0.0
    %1122 = vmatpush1.msra.mxu0 0.0
    %1123 = vmatprep.subr.mxu0 0.0
    %1124 = vmatpush1.msra.mxu0 0.0
    %1125 = vmatprep.subr.mxu0 0.0
    %1126 = vmatpush1.msra.mxu0 0.0
    %1127 = vmatprep.subr.mxu0 0.0
    %1128 = vmatpush1.msra.mxu0 0.0
    %1129 = vmatprep.subr.mxu0 0.0
    %1130 = vmatpush1.msra.mxu0 0.0
    %1131 = vmatprep.subr.mxu0 0.0
    %1132 = vmatpush1.msra.mxu0 0.0
    %1133 = vmatprep.subr.mxu0 0.0
    %1134 = vmatpush1.msra.mxu0 0.0
    %1135 = vmatprep.subr.mxu0 0.0
    %1136 = vmatpush1.msra.mxu0 0.0
    %1137 = vmatprep.subr.mxu0 0.0
    %1138 = vmatpush1.msra.mxu0 0.0
    %1139 = vmatprep.subr.mxu0 0.0
    %1140 = vmatpush1.msra.mxu0 0.0
    %1141 = vmatprep.subr.mxu0 0.0
    %1142 = vmatpush1.msra.mxu0 0.0
    %1143 = vmatprep.subr.mxu0 0.0
    %1144 = vmatpush1.msra.mxu0 0.0
    %1145 = vmatprep.subr.mxu0 0.0
    %1146 = vmatpush1.msra.mxu0 0.0
    %1147 = vmatprep.subr.mxu0 0.0
    %1148 = vmatpush1.msra.mxu0 0.0
    %1149 = vmatprep.subr.mxu0 0.0
    %1150 = vmatpush1.msra.mxu0 0.0
    %1151 = vmatprep.subr.mxu0 0.0
    %1152 = vmatpush1.msra.mxu0 0.0
    %1153 = vmatprep.subr.mxu0 0.0
    %1154 = vmatpush1.msra.mxu0 0.0
    %1155 = vmatprep.subr.mxu0 0.0
    %1156 = vmatpush1.msra.mxu0 0.0
    %1157 = vmatprep.subr.mxu0 0.0
    %1158 = vmatpush1.msra.mxu0 0.0
    %1159 = vmatprep.subr.mxu0 0.0
    %1160 = vmatpush1.msra.mxu0 0.0
    %1161 = vmatprep.subr.mxu0 0.0
    %1162 = vmatpush1.msra.mxu0 0.0
    %1163 = vmatprep.subr.mxu0 0.0
    %1164 = vmatpush1.msra.mxu0 0.0
    %1165 = vmatprep.subr.mxu0 0.0
    %1166 = vmatpush1.msra.mxu0 0.0
    %1167 = vmatprep.subr.mxu0 0.0
    %1168 = vmatpush1.msra.mxu0 0.0
    %1169 = vmatprep.subr.mxu0 0.0
    %1170 = vmatpush1.msra.mxu0 0.0
    %1171 = vmatprep.mubr.f32.mxu0 0.0
    %1172 = vmatmul.mubr.f32.gmra.mrb[0].mxu0 %v1105
    %v1173 = vpop.f32.mrb[0].mxu0
    %v1174 = vadd.f32 %v1102, %v1173
    %v1175 = vpop.f32.mrb[0].mxu0
    %1176 = vdwg.mxu0
    %v1177 = vld [vmem:[#allocation14] sm:$0xff]
    %v1178 = vld [vmem:[#allocation14 + $0x8] sm:$0xff]
    %v1179 = vld [vmem:[#allocation15] sm:$0x1]
    %v1181 = vlaneseq
    %v1182 = vshrl.u32 %v1181, 7
    %v1183 = vsub.s32 0, %v1182
    %v1184 = vrot.slane %v1179, %v1183
    %1186 = vmatprep.subr.mxu0 0.0
    %1187 = vmatpush1.msra.mxu0 %v1177
    %1188 = vmatprep.subr.mxu0 0.0
    %1189 = vmatpush1.msra.mxu0 %v1178
    %1190 = vmatprep.subr.mxu0 0.0
    %1191 = vmatpush1.msra.mxu0 0.0
    %1192 = vmatprep.subr.mxu0 0.0
    %1193 = vmatpush1.msra.mxu0 0.0
    %1194 = vmatprep.subr.mxu0 0.0
    %1195 = vmatpush1.msra.mxu0 0.0
    %1196 = vmatprep.subr.mxu0 0.0
    %1197 = vmatpush1.msra.mxu0 0.0
    %1198 = vmatprep.subr.mxu0 0.0
    %1199 = vmatpush1.msra.mxu0 0.0
    %1200 = vmatprep.subr.mxu0 0.0
    %1201 = vmatpush1.msra.mxu0 0.0
    %1202 = vmatprep.subr.mxu0 0.0
    %1203 = vmatpush1.msra.mxu0 0.0
    %1204 = vmatprep.subr.mxu0 0.0
    %1205 = vmatpush1.msra.mxu0 0.0
    %1206 = vmatprep.subr.mxu0 0.0
    %1207 = vmatpush1.msra.mxu0 0.0
    %1208 = vmatprep.subr.mxu0 0.0
    %1209 = vmatpush1.msra.mxu0 0.0
    %1210 = vmatprep.subr.mxu0 0.0
    %1211 = vmatpush1.msra.mxu0 0.0
    %1212 = vmatprep.subr.mxu0 0.0
    %1213 = vmatpush1.msra.mxu0 0.0
    %1214 = vmatprep.subr.mxu0 0.0
    %1215 = vmatpush1.msra.mxu0 0.0
    %1216 = vmatprep.subr.mxu0 0.0
    %1217 = vmatpush1.msra.mxu0 0.0
    %1218 = vmatprep.subr.mxu0 0.0
    %1219 = vmatpush1.msra.mxu0 0.0
    %1220 = vmatprep.subr.mxu0 0.0
    %1221 = vmatpush1.msra.mxu0 0.0
    %1222 = vmatprep.subr.mxu0 0.0
    %1223 = vmatpush1.msra.mxu0 0.0
    %1224 = vmatprep.subr.mxu0 0.0
    %1225 = vmatpush1.msra.mxu0 0.0
    %1226 = vmatprep.subr.mxu0 0.0
    %1227 = vmatpush1.msra.mxu0 0.0
    %1228 = vmatprep.subr.mxu0 0.0
    %1229 = vmatpush1.msra.mxu0 0.0
    %1230 = vmatprep.subr.mxu0 0.0
    %1231 = vmatpush1.msra.mxu0 0.0
    %1232 = vmatprep.subr.mxu0 0.0
    %1233 = vmatpush1.msra.mxu0 0.0
    %1234 = vmatprep.subr.mxu0 0.0
    %1235 = vmatpush1.msra.mxu0 0.0
    %1236 = vmatprep.subr.mxu0 0.0
    %1237 = vmatpush1.msra.mxu0 0.0
    %1238 = vmatprep.subr.mxu0 0.0
    %1239 = vmatpush1.msra.mxu0 0.0
    %1240 = vmatprep.subr.mxu0 0.0
    %1241 = vmatpush1.msra.mxu0 0.0
    %1242 = vmatprep.subr.mxu0 0.0
    %1243 = vmatpush1.msra.mxu0 0.0
    %1244 = vmatprep.subr.mxu0 0.0
    %1245 = vmatpush1.msra.mxu0 0.0
    %1246 = vmatprep.subr.mxu0 0.0
    %1247 = vmatpush1.msra.mxu0 0.0
    %1248 = vmatprep.subr.mxu0 0.0
    %1249 = vmatpush1.msra.mxu0 0.0
    %1250 = vmatprep.mubr.f32.mxu0 0.0
    %1251 = vmatmul.mubr.f32.gmra.mrb[0].mxu0 %v1105
    %v1252 = vpop.f32.mrb[0].mxu0
    %v1253 = vadd.f32 %v1184, %v1252
    %v1254 = vpop.f32.mrb[0].mxu0
    %1255 = vdwg.mxu0
    %v1257 = vsel %vm311, %v401, 0
    %v1260 = vsel %vm311, %v406, 0
    %v1263 = vsel %vm311, %v1174, 0
    %1265 = vmatprep.subr.mxu0 0.0
    %1266 = vmatpush1.xpose.msra.mxu0 %v1263
    %1267 = vmatprep.subr.mxu0 0.0
    %1268 = vmatpush1.xpose.msra.mxu0 0.0
    %1269 = vmatprep.subr.mxu0 0.0
    %1270 = vmatpush1.xpose.msra.mxu0 0.0
    %1271 = vmatprep.subr.mxu0 0.0
    %1272 = vmatpush1.xpose.msra.mxu0 0.0
    %1273 = vmatprep.subr.mxu0 0.0
    %1274 = vmatpush1.xpose.msra.mxu0 0.0
    %1275 = vmatprep.subr.mxu0 0.0
    %1276 = vmatpush1.xpose.msra.mxu0 0.0
    %1277 = vmatprep.subr.mxu0 0.0
    %1278 = vmatpush1.xpose.msra.mxu0 0.0
    %1279 = vmatprep.subr.mxu0 0.0
    %1280 = vmatpush1.xpose.msra.mxu0 0.0
    %1281 = vmatprep.subr.mxu0 0.0
    %1282 = vmatpush1.xpose.msra.mxu0 0.0
    %1283 = vmatprep.subr.mxu0 0.0
    %1284 = vmatpush1.xpose.msra.mxu0 0.0
    %1285 = vmatprep.subr.mxu0 0.0
    %1286 = vmatpush1.xpose.msra.mxu0 0.0
    %1287 = vmatprep.subr.mxu0 0.0
    %1288 = vmatpush1.xpose.msra.mxu0 0.0
    %1289 = vmatprep.subr.mxu0 0.0
    %1290 = vmatpush1.xpose.msra.mxu0 0.0
    %1291 = vmatprep.subr.mxu0 0.0
    %1292 = vmatpush1.xpose.msra.mxu0 0.0
    %1293 = vmatprep.subr.mxu0 0.0
    %1294 = vmatpush1.xpose.msra.mxu0 0.0
    %1295 = vmatprep.subr.mxu0 0.0
    %1296 = vmatpush1.xpose.msra.mxu0 0.0
    %1297 = vmatprep.subr.mxu0 0.0
    %1298 = vmatpush1.xpose.msra.mxu0 0.0
    %1299 = vmatprep.subr.mxu0 0.0
    %1300 = vmatpush1.xpose.msra.mxu0 0.0
    %1301 = vmatprep.subr.mxu0 0.0
    %1302 = vmatpush1.xpose.msra.mxu0 0.0
    %1303 = vmatprep.subr.mxu0 0.0
    %1304 = vmatpush1.xpose.msra.mxu0 0.0
    %1305 = vmatprep.subr.mxu0 0.0
    %1306 = vmatpush1.xpose.msra.mxu0 0.0
    %1307 = vmatprep.subr.mxu0 0.0
    %1308 = vmatpush1.xpose.msra.mxu0 0.0
    %1309 = vmatprep.subr.mxu0 0.0
    %1310 = vmatpush1.xpose.msra.mxu0 0.0
    %1311 = vmatprep.subr.mxu0 0.0
    %1312 = vmatpush1.xpose.msra.mxu0 0.0
    %1313 = vmatprep.subr.mxu0 0.0
    %1314 = vmatpush1.xpose.msra.mxu0 0.0
    %1315 = vmatprep.subr.mxu0 0.0
    %1316 = vmatpush1.xpose.msra.mxu0 0.0
    %1317 = vmatprep.subr.mxu0 0.0
    %1318 = vmatpush1.xpose.msra.mxu0 0.0
    %1319 = vmatprep.subr.mxu0 0.0
    %1320 = vmatpush1.xpose.msra.mxu0 0.0
    %1321 = vmatprep.subr.mxu0 0.0
    %1322 = vmatpush1.xpose.msra.mxu0 0.0
    %1323 = vmatprep.subr.mxu0 0.0
    %1324 = vmatpush1.xpose.msra.mxu0 0.0
    %1325 = vmatprep.subr.mxu0 0.0
    %1326 = vmatpush1.xpose.msra.mxu0 0.0
    %1327 = vmatprep.subr.mxu0 0.0
    %1328 = vmatpush1.xpose.msra.mxu0 0.0
    %1329 = vmatprep.mubr.f32.mxu0 0.0
    %1330 = vmatmul.mubr.f32.gmra.mrb[0].mxu0 %v1257
    %v1331 = vpop.f32.mrb[0].mxu0
    %v1332 = vadd.f32 0.0, %v1331
    %v1333 = vpop.f32.mrb[0].mxu0
    %1334 = vmatprep.mubr.f32.mxu0 0.0
    %1335 = vmatmul.mubr.f32.gmra.mrb[0].mxu0 %v1260
    %v1336 = vpop.f32.mrb[0].mxu0
    %v1337 = vadd.f32 0.0, %v1336
    %v1338 = vpop.f32.mrb[0].mxu0
    %1339 = vdwg.mxu0
    %v1340 = vsel %vm655, %v1332, -inf
    %1341 = vmax.xlane.f32.xlu0 %v1340
    %v1342 = vpop.xlane.xlu0 %1341
    %v1343 = vsel %vm655, %v1337, -inf
    %1344 = vmax.xlane.f32.xlu0 %v1343
    %v1345 = vpop.xlane.xlu0 %1344
    %v1346 = vsub.f32 %v1332, %v1342
    %v1347 = vsub.f32 %v1337, %v1345
    %v1348 = vmul.f32 %v1346, 1.442695
    %v1349 = vpow.pop %v1348
    %v1350 = vmul.f32 %v1347, 1.442695
    %v1351 = vpow.pop %v1350
    %v1352 = vsel %vm655, %v1349, 0.0
    %1353 = vadd.xlane.f32.xlu0 %v1352
    %v1354 = vpop.xlane.xlu0 %1353
    %v1355 = vsel %vm655, %v1351, 0.0
    %1356 = vadd.xlane.f32.xlu0 %v1355
    %v1357 = vpop.xlane.xlu0 %1356
    %v1358 = vrcp.pop %v1354
    %v1359 = vrcp.pop %v1357
    %v1360 = vmul.f32 %v1349, %v1358
    %v1361 = vmul.f32 %v1351, %v1359
    %v1363 = vsel %vm655, %v1360, 0
    %v1366 = vsel %vm655, %v1361, 0
    %v1369 = vsel %vm684, %v1253, 0
    %1371 = vmatprep.subr.mxu0 0.0
    %1372 = vmatpush1.msra.mxu0 %v1369
    %1373 = vmatprep.subr.mxu0 0.0
    %1374 = vmatpush1.msra.mxu0 0.0
    %1375 = vmatprep.subr.mxu0 0.0
    %1376 = vmatpush1.msra.mxu0 0.0
    %1377 = vmatprep.subr.mxu0 0.0
    %1378 = vmatpush1.msra.mxu0 0.0
    %1379 = vmatprep.subr.mxu0 0.0
    %1380 = vmatpush1.msra.mxu0 0.0
    %1381 = vmatprep.subr.mxu0 0.0
    %1382 = vmatpush1.msra.mxu0 0.0
    %1383 = vmatprep.subr.mxu0 0.0
    %1384 = vmatpush1.msra.mxu0 0.0
    %1385 = vmatprep.subr.mxu0 0.0
    %1386 = vmatpush1.msra.mxu0 0.0
    %1387 = vmatprep.subr.mxu0 0.0
    %1388 = vmatpush1.msra.mxu0 0.0
    %1389 = vmatprep.subr.mxu0 0.0
    %1390 = vmatpush1.msra.mxu0 0.0
    %1391 = vmatprep.subr.mxu0 0.0
    %1392 = vmatpush1.msra.mxu0 0.0
    %1393 = vmatprep.subr.mxu0 0.0
    %1394 = vmatpush1.msra.mxu0 0.0
    %1395 = vmatprep.subr.mxu0 0.0
    %1396 = vmatpush1.msra.mxu0 0.0
    %1397 = vmatprep.subr.mxu0 0.0
    %1398 = vmatpush1.msra.mxu0 0.0
    %1399 = vmatprep.subr.mxu0 0.0
    %1400 = vmatpush1.msra.mxu0 0.0
    %1401 = vmatprep.subr.mxu0 0.0
    %1402 = vmatpush1.msra.mxu0 0.0
    %1403 = vmatprep.subr.mxu0 0.0
    %1404 = vmatpush1.msra.mxu0 0.0
    %1405 = vmatprep.subr.mxu0 0.0
    %1406 = vmatpush1.msra.mxu0 0.0
    %1407 = vmatprep.subr.mxu0 0.0
    %1408 = vmatpush1.msra.mxu0 0.0
    %1409 = vmatprep.subr.mxu0 0.0
    %1410 = vmatpush1.msra.mxu0 0.0
    %1411 = vmatprep.subr.mxu0 0.0
    %1412 = vmatpush1.msra.mxu0 0.0
    %1413 = vmatprep.subr.mxu0 0.0
    %1414 = vmatpush1.msra.mxu0 0.0
    %1415 = vmatprep.subr.mxu0 0.0
    %1416 = vmatpush1.msra.mxu0 0.0
    %1417 = vmatprep.subr.mxu0 0.0
    %1418 = vmatpush1.msra.mxu0 0.0
    %1419 = vmatprep.subr.mxu0 0.0
    %1420 = vmatpush1.msra.mxu0 0.0
    %1421 = vmatprep.subr.mxu0 0.0
    %1422 = vmatpush1.msra.mxu0 0.0
    %1423 = vmatprep.subr.mxu0 0.0
    %1424 = vmatpush1.msra.mxu0 0.0
    %1425 = vmatprep.subr.mxu0 0.0
    %1426 = vmatpush1.msra.mxu0 0.0
    %1427 = vmatprep.subr.mxu0 0.0
    %1428 = vmatpush1.msra.mxu0 0.0
    %1429 = vmatprep.subr.mxu0 0.0
    %1430 = vmatpush1.msra.mxu0 0.0
    %1431 = vmatprep.subr.mxu0 0.0
    %1432 = vmatpush1.msra.mxu0 0.0
    %1433 = vmatprep.subr.mxu0 0.0
    %1434 = vmatpush1.msra.mxu0 0.0
    %1435 = vmatprep.mubr.f32.mxu0 0.0
    %1436 = vmatmul.mubr.f32.gmra.mrb[0].mxu0 %v1363
    %v1437 = vpop.f32.mrb[0].mxu0
    %v1438 = vadd.f32 0.0, %v1437
    %v1439 = vpop.f32.mrb[0].mxu0
    %1440 = vmatprep.mubr.f32.mxu0 0.0
    %1441 = vmatmul.mubr.f32.gmra.mrb[0].mxu0 %v1366
    %v1442 = vpop.f32.mrb[0].mxu0
    %v1443 = vadd.f32 0.0, %v1442
    %v1444 = vpop.f32.mrb[0].mxu0
    %1445 = vdwg.mxu0
    %v1447 = vsel %vm311, %v1438, 0
    %v1450 = vsel %vm311, %v1443, 0
    %1452 = vmatprep.subr.mxu0 0.0
    %1453 = vmatpush1.xpose.msra.mxu0 %v1447
    %1454 = vmatprep.subr.mxu0 0.0
    %1455 = vmatpush1.xpose.msra.mxu0 %v1450
    %1456 = vmatprep.subr.mxu0 0.0
    %1457 = vmatpush1.xpose.msra.mxu0 0.0
    %1458 = vmatprep.subr.mxu0 0.0
    %1459 = vmatpush1.xpose.msra.mxu0 0.0
    %1460 = vmatprep.subr.mxu0 0.0
    %1461 = vmatpush1.xpose.msra.mxu0 0.0
    %1462 = vmatprep.subr.mxu0 0.0
    %1463 = vmatpush1.xpose.msra.mxu0 0.0
    %1464 = vmatprep.subr.mxu0 0.0
    %1465 = vmatpush1.xpose.msra.mxu0 0.0
    %1466 = vmatprep.subr.mxu0 0.0
    %1467 = vmatpush1.xpose.msra.mxu0 0.0
    %1468 = vmatprep.subr.mxu0 0.0
    %1469 = vmatpush1.xpose.msra.mxu0 0.0
    %1470 = vmatprep.subr.mxu0 0.0
    %1471 = vmatpush1.xpose.msra.mxu0 0.0
    %1472 = vmatprep.subr.mxu0 0.0
    %1473 = vmatpush1.xpose.msra.mxu0 0.0
    %1474 = vmatprep.subr.mxu0 0.0
    %1475 = vmatpush1.xpose.msra.mxu0 0.0
    %1476 = vmatprep.subr.mxu0 0.0
    %1477 = vmatpush1.xpose.msra.mxu0 0.0
    %1478 = vmatprep.subr.mxu0 0.0
    %1479 = vmatpush1.xpose.msra.mxu0 0.0
    %1480 = vmatprep.subr.mxu0 0.0
    %1481 = vmatpush1.xpose.msra.mxu0 0.0
    %1482 = vmatprep.subr.mxu0 0.0
    %1483 = vmatpush1.xpose.msra.mxu0 0.0
    %1484 = vmatprep.subr.mxu0 0.0
    %1485 = vmatpush1.xpose.msra.mxu0 0.0
    %1486 = vmatprep.subr.mxu0 0.0
    %1487 = vmatpush1.xpose.msra.mxu0 0.0
    %1488 = vmatprep.subr.mxu0 0.0
    %1489 = vmatpush1.xpose.msra.mxu0 0.0
    %1490 = vmatprep.subr.mxu0 0.0
    %1491 = vmatpush1.xpose.msra.mxu0 0.0
    %1492 = vmatprep.subr.mxu0 0.0
    %1493 = vmatpush1.xpose.msra.mxu0 0.0
    %1494 = vmatprep.subr.mxu0 0.0
    %1495 = vmatpush1.xpose.msra.mxu0 0.0
    %1496 = vmatprep.subr.mxu0 0.0
    %1497 = vmatpush1.xpose.msra.mxu0 0.0
    %1498 = vmatprep.subr.mxu0 0.0
    %1499 = vmatpush1.xpose.msra.mxu0 0.0
    %1500 = vmatprep.subr.mxu0 0.0
    %1501 = vmatpush1.xpose.msra.mxu0 0.0
    %1502 = vmatprep.subr.mxu0 0.0
    %1503 = vmatpush1.xpose.msra.mxu0 0.0
    %1504 = vmatprep.subr.mxu0 0.0
    %1505 = vmatpush1.xpose.msra.mxu0 0.0
    %1506 = vmatprep.subr.mxu0 0.0
    %1507 = vmatpush1.xpose.msra.mxu0 0.0
    %1508 = vmatprep.subr.mxu0 0.0
    %1509 = vmatpush1.xpose.msra.mxu0 0.0
    %1510 = vmatprep.subr.mxu0 0.0
    %1511 = vmatpush1.xpose.msra.mxu0 0.0
    %1512 = vmatprep.subr.mxu0 0.0
    %1513 = vmatpush1.xpose.msra.mxu0 0.0
    %1514 = vmatprep.subr.mxu0 0.0
    %1515 = vmatpush1.xpose.msra.mxu0 0.0
    %1516 = vmatprep.mubr.f32.mxu0 0.0
    %1517 = vmatmul.mubr.f32.gmra.mrb[0].mxu0 %v764
    %v1518 = vpop.f32.mrb[0].mxu0
    %v1519 = vadd.f32 0.0, %v1518
    %v1520 = vpop.f32.mrb[0].mxu0
    %1521 = vmatprep.mubr.f32.mxu0 0.0
    %1522 = vmatmul.mubr.f32.gmra.mrb[0].mxu0 %v767
    %v1523 = vpop.f32.mrb[0].mxu0
    %v1524 = vadd.f32 0.0, %v1523
    %v1525 = vpop.f32.mrb[0].mxu0
    %1526 = vdwg.mxu0
    %1527 = vmatprep.subr.mxu0 0.0
    %1528 = vmatpush1.xpose.msra.mxu0 %v1447
    %1529 = vmatprep.subr.mxu0 0.0
    %1530 = vmatpush1.xpose.msra.mxu0 %v1450
    %1531 = vmatprep.subr.mxu0 0.0
    %1532 = vmatpush1.xpose.msra.mxu0 0.0
    %1533 = vmatprep.subr.mxu0 0.0
    %1534 = vmatpush1.xpose.msra.mxu0 0.0
    %1535 = vmatprep.subr.mxu0 0.0
    %1536 = vmatpush1.xpose.msra.mxu0 0.0
    %1537 = vmatprep.subr.mxu0 0.0
    %1538 = vmatpush1.xpose.msra.mxu0 0.0
    %1539 = vmatprep.subr.mxu0 0.0
    %1540 = vmatpush1.xpose.msra.mxu0 0.0
    %1541 = vmatprep.subr.mxu0 0.0
    %1542 = vmatpush1.xpose.msra.mxu0 0.0
    %1543 = vmatprep.subr.mxu0 0.0
    %1544 = vmatpush1.xpose.msra.mxu0 0.0
    %1545 = vmatprep.subr.mxu0 0.0
    %1546 = vmatpush1.xpose.msra.mxu0 0.0
    %1547 = vmatprep.subr.mxu0 0.0
    %1548 = vmatpush1.xpose.msra.mxu0 0.0
    %1549 = vmatprep.subr.mxu0 0.0
    %1550 = vmatpush1.xpose.msra.mxu0 0.0
    %1551 = vmatprep.subr.mxu0 0.0
    %1552 = vmatpush1.xpose.msra.mxu0 0.0
    %1553 = vmatprep.subr.mxu0 0.0
    %1554 = vmatpush1.xpose.msra.mxu0 0.0
    %1555 = vmatprep.subr.mxu0 0.0
    %1556 = vmatpush1.xpose.msra.mxu0 0.0
    %1557 = vmatprep.subr.mxu0 0.0
    %1558 = vmatpush1.xpose.msra.mxu0 0.0
    %1559 = vmatprep.subr.mxu0 0.0
    %1560 = vmatpush1.xpose.msra.mxu0 0.0
    %1561 = vmatprep.subr.mxu0 0.0
    %1562 = vmatpush1.xpose.msra.mxu0 0.0
    %1563 = vmatprep.subr.mxu0 0.0
    %1564 = vmatpush1.xpose.msra.mxu0 0.0
    %1565 = vmatprep.subr.mxu0 0.0
    %1566 = vmatpush1.xpose.msra.mxu0 0.0
    %1567 = vmatprep.subr.mxu0 0.0
    %1568 = vmatpush1.xpose.msra.mxu0 0.0
    %1569 = vmatprep.subr.mxu0 0.0
    %1570 = vmatpush1.xpose.msra.mxu0 0.0
    %1571 = vmatprep.subr.mxu0 0.0
    %1572 = vmatpush1.xpose.msra.mxu0 0.0
    %1573 = vmatprep.subr.mxu0 0.0
    %1574 = vmatpush1.xpose.msra.mxu0 0.0
    %1575 = vmatprep.subr.mxu0 0.0
    %1576 = vmatpush1.xpose.msra.mxu0 0.0
    %1577 = vmatprep.subr.mxu0 0.0
    %1578 = vmatpush1.xpose.msra.mxu0 0.0
    %1579 = vmatprep.subr.mxu0 0.0
    %1580 = vmatpush1.xpose.msra.mxu0 0.0
    %1581 = vmatprep.subr.mxu0 0.0
    %1582 = vmatpush1.xpose.msra.mxu0 0.0
    %1583 = vmatprep.subr.mxu0 0.0
    %1584 = vmatpush1.xpose.msra.mxu0 0.0
    %1585 = vmatprep.subr.mxu0 0.0
    %1586 = vmatpush1.xpose.msra.mxu0 0.0
    %1587 = vmatprep.subr.mxu0 0.0
    %1588 = vmatpush1.xpose.msra.mxu0 0.0
    %1589 = vmatprep.subr.mxu0 0.0
    %1590 = vmatpush1.xpose.msra.mxu0 0.0
    %1591 = vmatprep.mubr.f32.mxu0 0.0
    %1592 = vmatmul.mubr.f32.gmra.mrb[0].mxu0 %v851
    %v1593 = vpop.f32.mrb[0].mxu0
    %v1594 = vadd.f32 0.0, %v1593
    %v1595 = vpop.f32.mrb[0].mxu0
    %1596 = vmatprep.mubr.f32.mxu0 0.0
    %1597 = vmatmul.mubr.f32.gmra.mrb[0].mxu0 %v854
    %v1598 = vpop.f32.mrb[0].mxu0
    %v1599 = vadd.f32 0.0, %v1598
    %v1600 = vpop.f32.mrb[0].mxu0
    %1601 = vdwg.mxu0
    %v1603 = vsel %vm418, %v1594, 0
    %v1606 = vsel %vm418, %v1599, 0
    %1608 = vmatprep.subr.mxu0 0.0
    %1609 = vmatpush1.msra.mxu0 %v298
    %1610 = vmatprep.subr.mxu0 0.0
    %1611 = vmatpush1.msra.mxu0 %v299
    %1612 = vmatprep.subr.mxu0 0.0
    %1613 = vmatpush1.msra.mxu0 0.0
    %1614 = vmatprep.subr.mxu0 0.0
    %1615 = vmatpush1.msra.mxu0 0.0
    %1616 = vmatprep.subr.mxu0 0.0
    %1617 = vmatpush1.msra.mxu0 0.0
    %1618 = vmatprep.subr.mxu0 0.0
    %1619 = vmatpush1.msra.mxu0 0.0
    %1620 = vmatprep.subr.mxu0 0.0
    %1621 = vmatpush1.msra.mxu0 0.0
    %1622 = vmatprep.subr.mxu0 0.0
    %1623 = vmatpush1.msra.mxu0 0.0
    %1624 = vmatprep.subr.mxu0 0.0
    %1625 = vmatpush1.msra.mxu0 0.0
    %1626 = vmatprep.subr.mxu0 0.0
    %1627 = vmatpush1.msra.mxu0 0.0
    %1628 = vmatprep.subr.mxu0 0.0
    %1629 = vmatpush1.msra.mxu0 0.0
    %1630 = vmatprep.subr.mxu0 0.0
    %1631 = vmatpush1.msra.mxu0 0.0
    %1632 = vmatprep.subr.mxu0 0.0
    %1633 = vmatpush1.msra.mxu0 0.0
    %1634 = vmatprep.subr.mxu0 0.0
    %1635 = vmatpush1.msra.mxu0 0.0
    %1636 = vmatprep.subr.mxu0 0.0
    %1637 = vmatpush1.msra.mxu0 0.0
    %1638 = vmatprep.subr.mxu0 0.0
    %1639 = vmatpush1.msra.mxu0 0.0
    %1640 = vmatprep.subr.mxu0 0.0
    %1641 = vmatpush1.msra.mxu0 0.0
    %1642 = vmatprep.subr.mxu0 0.0
    %1643 = vmatpush1.msra.mxu0 0.0
    %1644 = vmatprep.subr.mxu0 0.0
    %1645 = vmatpush1.msra.mxu0 0.0
    %1646 = vmatprep.subr.mxu0 0.0
    %1647 = vmatpush1.msra.mxu0 0.0
    %1648 = vmatprep.subr.mxu0 0.0
    %1649 = vmatpush1.msra.mxu0 0.0
    %1650 = vmatprep.subr.mxu0 0.0
    %1651 = vmatpush1.msra.mxu0 0.0
    %1652 = vmatprep.subr.mxu0 0.0
    %1653 = vmatpush1.msra.mxu0 0.0
    %1654 = vmatprep.subr.mxu0 0.0
    %1655 = vmatpush1.msra.mxu0 0.0
    %1656 = vmatprep.subr.mxu0 0.0
    %1657 = vmatpush1.msra.mxu0 0.0
    %1658 = vmatprep.subr.mxu0 0.0
    %1659 = vmatpush1.msra.mxu0 0.0
    %1660 = vmatprep.subr.mxu0 0.0
    %1661 = vmatpush1.msra.mxu0 0.0
    %1662 = vmatprep.subr.mxu0 0.0
    %1663 = vmatpush1.msra.mxu0 0.0
    %1664 = vmatprep.subr.mxu0 0.0
    %1665 = vmatpush1.msra.mxu0 0.0
    %1666 = vmatprep.subr.mxu0 0.0
    %1667 = vmatpush1.msra.mxu0 0.0
    %1668 = vmatprep.subr.mxu0 0.0
    %1669 = vmatpush1.msra.mxu0 0.0
    %1670 = vmatprep.subr.mxu0 0.0
    %1671 = vmatpush1.msra.mxu0 0.0
    %1672 = vmatprep.mubr.f32.mxu0 0.0
    %1673 = vmatmul.mubr.f32.gmra.mrb[0].mxu0 %v1603
    %v1674 = vpop.f32.mrb[0].mxu0
    %v1675 = vadd.f32 0.0, %v1674
    %v1676 = vpop.f32.mrb[0].mxu0
    %1677 = vmatprep.mubr.f32.mxu0 0.0
    %1678 = vmatmul.mubr.f32.gmra.mrb[0].mxu0 %v1606
    %v1679 = vpop.f32.mrb[0].mxu0
    %v1680 = vadd.f32 0.0, %v1679
    %v1681 = vpop.f32.mrb[0].mxu0
    %1682 = vdwg.mxu0
    %v1684 = vsel %vm418, %v1519, 0
    %v1687 = vsel %vm418, %v1524, 0
    %1689 = vmatprep.subr.mxu0 0.0
    %1690 = vmatpush1.msra.mxu0 %v292
    %1691 = vmatprep.subr.mxu0 0.0
    %1692 = vmatpush1.msra.mxu0 %v293
    %1693 = vmatprep.subr.mxu0 0.0
    %1694 = vmatpush1.msra.mxu0 0.0
    %1695 = vmatprep.subr.mxu0 0.0
    %1696 = vmatpush1.msra.mxu0 0.0
    %1697 = vmatprep.subr.mxu0 0.0
    %1698 = vmatpush1.msra.mxu0 0.0
    %1699 = vmatprep.subr.mxu0 0.0
    %1700 = vmatpush1.msra.mxu0 0.0
    %1701 = vmatprep.subr.mxu0 0.0
    %1702 = vmatpush1.msra.mxu0 0.0
    %1703 = vmatprep.subr.mxu0 0.0
    %1704 = vmatpush1.msra.mxu0 0.0
    %1705 = vmatprep.subr.mxu0 0.0
    %1706 = vmatpush1.msra.mxu0 0.0
    %1707 = vmatprep.subr.mxu0 0.0
    %1708 = vmatpush1.msra.mxu0 0.0
    %1709 = vmatprep.subr.mxu0 0.0
    %1710 = vmatpush1.msra.mxu0 0.0
    %1711 = vmatprep.subr.mxu0 0.0
    %1712 = vmatpush1.msra.mxu0 0.0
    %1713 = vmatprep.subr.mxu0 0.0
    %1714 = vmatpush1.msra.mxu0 0.0
    %1715 = vmatprep.subr.mxu0 0.0
    %1716 = vmatpush1.msra.mxu0 0.0
    %1717 = vmatprep.subr.mxu0 0.0
    %1718 = vmatpush1.msra.mxu0 0.0
    %1719 = vmatprep.subr.mxu0 0.0
    %1720 = vmatpush1.msra.mxu0 0.0
    %1721 = vmatprep.subr.mxu0 0.0
    %1722 = vmatpush1.msra.mxu0 0.0
    %1723 = vmatprep.subr.mxu0 0.0
    %1724 = vmatpush1.msra.mxu0 0.0
    %1725 = vmatprep.subr.mxu0 0.0
    %1726 = vmatpush1.msra.mxu0 0.0
    %1727 = vmatprep.subr.mxu0 0.0
    %1728 = vmatpush1.msra.mxu0 0.0
    %1729 = vmatprep.subr.mxu0 0.0
    %1730 = vmatpush1.msra.mxu0 0.0
    %1731 = vmatprep.subr.mxu0 0.0
    %1732 = vmatpush1.msra.mxu0 0.0
    %1733 = vmatprep.subr.mxu0 0.0
    %1734 = vmatpush1.msra.mxu0 0.0
    %1735 = vmatprep.subr.mxu0 0.0
    %1736 = vmatpush1.msra.mxu0 0.0
    %1737 = vmatprep.subr.mxu0 0.0
    %1738 = vmatpush1.msra.mxu0 0.0
    %1739 = vmatprep.subr.mxu0 0.0
    %1740 = vmatpush1.msra.mxu0 0.0
    %1741 = vmatprep.subr.mxu0 0.0
    %1742 = vmatpush1.msra.mxu0 0.0
    %1743 = vmatprep.subr.mxu0 0.0
    %1744 = vmatpush1.msra.mxu0 0.0
    %1745 = vmatprep.subr.mxu0 0.0
    %1746 = vmatpush1.msra.mxu0 0.0
    %1747 = vmatprep.subr.mxu0 0.0
    %1748 = vmatpush1.msra.mxu0 0.0
    %1749 = vmatprep.subr.mxu0 0.0
    %1750 = vmatpush1.msra.mxu0 0.0
    %1751 = vmatprep.subr.mxu0 0.0
    %1752 = vmatpush1.msra.mxu0 0.0
    %1753 = vmatprep.mubr.f32.mxu0 0.0
    %1754 = vmatmul.mubr.f32.gmra.mrb[0].mxu0 %v1684
    %v1755 = vpop.f32.mrb[0].mxu0
    %v1756 = vadd.f32 %v1675, %v1755
    %v1757 = vpop.f32.mrb[0].mxu0
    %1758 = vmatprep.mubr.f32.mxu0 0.0
    %1759 = vmatmul.mubr.f32.gmra.mrb[0].mxu0 %v1687
    %v1760 = vpop.f32.mrb[0].mxu0
    %v1761 = vadd.f32 %v1680, %v1760
    %v1762 = vpop.f32.mrb[0].mxu0
    %1763 = vdwg.mxu0
    %1764 = vst.msk [vmem:[#allocation2 + $0x10] sm:$0xff] %vm311, %v1756
    %1765 = vst.msk [vmem:[#allocation2 + $0x18] sm:$0xff] %vm311, %v1761
    %v1766 = vld [vmem:[#allocation2] sm:$0xff]
    %v1767 = vld [vmem:[#allocation2 + $0x8] sm:$0xff]
    %v1768 = vld [vmem:[#allocation2 + $0x10] sm:$0xff]
    %v1769 = vld [vmem:[#allocation2 + $0x18] sm:$0xff]
    %v1770 = vld [vmem:[#allocation17] sm:$0xff]
    %v1771 = vld [vmem:[#allocation17 + $0x8] sm:$0xff]
    %v1772 = vld [vmem:[#allocation17 + $0x10] sm:$0xff]
    %v1773 = vld [vmem:[#allocation17 + $0x18] sm:$0xff]
    %v1774 = vld [vmem:[#allocation18] sm:$0x1]
    %v1776 = vlaneseq
    %v1777 = vshrl.u32 %v1776, 7
    %v1778 = vsub.s32 0, %v1777
    %v1779 = vrot.slane %v1774, %v1778
    %v1782 = vsel %vm311, %v1766, 0
    %v1785 = vsel %vm311, %v1767, 0
    %v1788 = vsel %vm311, %v1768, 0
    %v1791 = vsel %vm311, %v1769, 0
    %1793 = vmatprep.subr.mxu0 0.0
    %1794 = vmatpush1.msra.mxu0 %v1770
    %1795 = vmatprep.subr.mxu0 0.0
    %1796 = vmatpush1.msra.mxu0 %v1771
    %1797 = vmatprep.subr.mxu0 0.0
    %1798 = vmatpush1.msra.mxu0 %v1772
    %1799 = vmatprep.subr.mxu0 0.0
    %1800 = vmatpush1.msra.mxu0 %v1773
    %1801 = vmatprep.subr.mxu0 0.0
    %1802 = vmatpush1.msra.mxu0 0.0
    %1803 = vmatprep.subr.mxu0 0.0
    %1804 = vmatpush1.msra.mxu0 0.0
    %1805 = vmatprep.subr.mxu0 0.0
    %1806 = vmatpush1.msra.mxu0 0.0
    %1807 = vmatprep.subr.mxu0 0.0
    %1808 = vmatpush1.msra.mxu0 0.0
    %1809 = vmatprep.subr.mxu0 0.0
    %1810 = vmatpush1.msra.mxu0 0.0
    %1811 = vmatprep.subr.mxu0 0.0
    %1812 = vmatpush1.msra.mxu0 0.0
    %1813 = vmatprep.subr.mxu0 0.0
    %1814 = vmatpush1.msra.mxu0 0.0
    %1815 = vmatprep.subr.mxu0 0.0
    %1816 = vmatpush1.msra.mxu0 0.0
    %1817 = vmatprep.subr.mxu0 0.0
    %1818 = vmatpush1.msra.mxu0 0.0
    %1819 = vmatprep.subr.mxu0 0.0
    %1820 = vmatpush1.msra.mxu0 0.0
    %1821 = vmatprep.subr.mxu0 0.0
    %1822 = vmatpush1.msra.mxu0 0.0
    %1823 = vmatprep.subr.mxu0 0.0
    %1824 = vmatpush1.msra.mxu0 0.0
    %1825 = vmatprep.subr.mxu0 0.0
    %1826 = vmatpush1.msra.mxu0 0.0
    %1827 = vmatprep.subr.mxu0 0.0
    %1828 = vmatpush1.msra.mxu0 0.0
    %1829 = vmatprep.subr.mxu0 0.0
    %1830 = vmatpush1.msra.mxu0 0.0
    %1831 = vmatprep.subr.mxu0 0.0
    %1832 = vmatpush1.msra.mxu0 0.0
    %1833 = vmatprep.subr.mxu0 0.0
    %1834 = vmatpush1.msra.mxu0 0.0
    %1835 = vmatprep.subr.mxu0 0.0
    %1836 = vmatpush1.msra.mxu0 0.0
    %1837 = vmatprep.subr.mxu0 0.0
    %1838 = vmatpush1.msra.mxu0 0.0
    %1839 = vmatprep.subr.mxu0 0.0
    %1840 = vmatpush1.msra.mxu0 0.0
    %1841 = vmatprep.subr.mxu0 0.0
    %1842 = vmatpush1.msra.mxu0 0.0
    %1843 = vmatprep.subr.mxu0 0.0
    %1844 = vmatpush1.msra.mxu0 0.0
    %1845 = vmatprep.subr.mxu0 0.0
    %1846 = vmatpush1.msra.mxu0 0.0
    %1847 = vmatprep.subr.mxu0 0.0
    %1848 = vmatpush1.msra.mxu0 0.0
    %1849 = vmatprep.subr.mxu0 0.0
    %1850 = vmatpush1.msra.mxu0 0.0
    %1851 = vmatprep.subr.mxu0 0.0
    %1852 = vmatpush1.msra.mxu0 0.0
    %1853 = vmatprep.subr.mxu0 0.0
    %1854 = vmatpush1.msra.mxu0 0.0
    %1855 = vmatprep.subr.mxu0 0.0
    %1856 = vmatpush1.msra.mxu0 0.0
    %1857 = vmatprep.mubr.f32.mxu0 0.0
    %1858 = vmatmul.mubr.f32.gmra.mrb[0].mxu0 %v1782
    %v1859 = vpop.f32.mrb[0].mxu0
    %v1860 = vadd.f32 %v1779, %v1859
    %v1861 = vpop.f32.mrb[0].mxu0
    %1862 = vmatprep.mubr.f32.mxu0 0.0
    %1863 = vmatmul.mubr.f32.gmra.mrb[0].mxu0 %v1785
    %v1864 = vpop.f32.mrb[0].mxu0
    %v1865 = vadd.f32 %v1779, %v1864
    %v1866 = vpop.f32.mrb[0].mxu0
    %1867 = vmatprep.mubr.f32.mxu0 0.0
    %1868 = vmatmul.mubr.f32.gmra.mrb[0].mxu0 %v1788
    %v1869 = vpop.f32.mrb[0].mxu0
    %v1870 = vadd.f32 %v1779, %v1869
    %v1871 = vpop.f32.mrb[0].mxu0
    %1872 = vmatprep.mubr.f32.mxu0 0.0
    %1873 = vmatmul.mubr.f32.gmra.mrb[0].mxu0 %v1791
    %v1874 = vpop.f32.mrb[0].mxu0
    %v1875 = vadd.f32 %v1779, %v1874
    %v1876 = vpop.f32.mrb[0].mxu0
    %1877 = vdwg.mxu0
    %v1878 = vadd.f32 %v283, %v1860
    %v1879 = vadd.f32 %v284, %v1865
    %v1880 = vadd.f32 %v285, %v1870
    %v1881 = vadd.f32 %v286, %v1875
    %v1882 = vsel %vm311, %v1878, 0.0
    %v1883 = vsel %vm311, %v1879, 0.0
    %v1884 = vadd.f32 %v1882, %v1883
    %v1885 = vsel %vm311, %v1880, 0.0
    %v1886 = vadd.f32 %v1884, %v1885
    %v1887 = vsel %vm311, %v1881, 0.0
    %v1888 = vadd.f32 %v1886, %v1887
    %v1889 = vrot.slane %v1888, 4
    %v1890 = vadd.f32 %v1888, %v1889
    %v1891 = vrot.slane %v1890, 2
    %v1892 = vadd.f32 %v1890, %v1891
    %v1893 = vrot.slane %v1892, 1
    %v1894 = vadd.f32 %v1892, %v1893
    %v1895 = vrcp.pop 32.0
    %v1896 = vmul.f32 %v1894, %v1895
    %v1897 = vsub.f32 %v1878, %v1896
    %v1898 = vsub.f32 %v1879, %v1896
    %v1899 = vsub.f32 %v1880, %v1896
    %v1900 = vsub.f32 %v1881, %v1896
    %v1901 = vmul.f32 %v1897, %v1897
    %v1902 = vmul.f32 %v1898, %v1898
    %v1903 = vmul.f32 %v1899, %v1899
    %v1904 = vmul.f32 %v1900, %v1900
    %v1905 = vsel %vm311, %v1901, 0.0
    %v1906 = vsel %vm311, %v1902, 0.0
    %v1907 = vadd.f32 %v1905, %v1906
    %v1908 = vsel %vm311, %v1903, 0.0
    %v1909 = vadd.f32 %v1907, %v1908
    %v1910 = vsel %vm311, %v1904, 0.0
    %v1911 = vadd.f32 %v1909, %v1910
    %v1912 = vrot.slane %v1911, 4
    %v1913 = vadd.f32 %v1911, %v1912
    %v1914 = vrot.slane %v1913, 2
    %v1915 = vadd.f32 %v1913, %v1914
    %v1916 = vrot.slane %v1915, 1
    %v1917 = vadd.f32 %v1915, %v1916
    %v1918 = vmul.f32 %v1917, %v1895
    %v1919 = vadd.f32 %v1918, 1e-05
    %v1920 = vrsqrt.pop %v1919
    %v1921 = vmul.f32 %v1897, %v1920
    %v1922 = vmul.f32 %v1898, %v1920
    %v1923 = vmul.f32 %v1899, %v1920
    %v1924 = vmul.f32 %v1900, %v1920
    %v1925 = vld [vmem:[#allocation20] sm:$0x1]
    %v1927 = vlaneseq
    %v1928 = vshrl.u32 %v1927, 7
    %v1929 = vsub.s32 0, %v1928
    %v1930 = vrot.slane %v1925, %v1929
    %v1932 = vmul.f32 %v1921, %v1930
    %v1933 = vmul.f32 %v1922, %v1930
    %v1934 = vmul.f32 %v1923, %v1930
    %v1935 = vmul.f32 %v1924, %v1930
    %v1936 = vld [vmem:[#allocation21] sm:$0x1]
    %v1938 = vlaneseq
    %v1939 = vshrl.u32 %v1938, 7
    %v1940 = vsub.s32 0, %v1939
    %v1941 = vrot.slane %v1936, %v1940
    %v1943 = vadd.f32 %v1932, %v1941
    %v1944 = vadd.f32 %v1933, %v1941
    %v1945 = vadd.f32 %v1934, %v1941
    %v1946 = vadd.f32 %v1935, %v1941
    %v1947 = vld [vmem:[#allocation23] sm:$0x1]
    %v1949 = vlaneseq
    %v1950 = vshrl.u32 %v1949, 7
    %v1951 = vsub.s32 0, %v1950
    %v1952 = vrot.slane %v1947, %v1951
    %v1954 = vmul.f32 %v1952, %v1943
    %v1955 = vmul.f32 %v1952, %v1944
    %v1956 = vmul.f32 %v1952, %v1945
    %v1957 = vmul.f32 %v1952, %v1946
    %v1958 = vld [vmem:[#allocation24] sm:$0x1]
    %v1960 = vlaneseq
    %v1961 = vshrl.u32 %v1960, 7
    %v1962 = vsub.s32 0, %v1961
    %v1963 = vrot.slane %v1958, %v1962
    %v1965 = vadd.f32 %v1954, %v1963
    %v1966 = vadd.f32 %v1955, %v1963
    %v1967 = vadd.f32 %v1956, %v1963
    %v1968 = vadd.f32 %v1957, %v1963
    %v1969 = vld [vmem:[#allocation26] sm:$0xff]
    %v1970 = vld [vmem:[#allocation26 + $0x8] sm:$0xff]
    %v1971 = vld [vmem:[#allocation26 + $0x10] sm:$0xff]
    %v1972 = vld [vmem:[#allocation26 + $0x18] sm:$0xff]
    %v1973 = vld [vmem:[#allocation27] sm:$0x1]
    %v1975 = vlaneseq
    %v1976 = vshrl.u32 %v1975, 7
    %v1977 = vsub.s32 0, %v1976
    %v1978 = vrot.slane %v1973, %v1977
    %v1981 = vsel %vm311, %v1965, 0
    %v1984 = vsel %vm311, %v1966, 0
    %v1987 = vsel %vm311, %v1967, 0
    %v1990 = vsel %vm311, %v1968, 0
    %1992 = vmatprep.subr.mxu0 0.0
    %1993 = vmatpush1.msra.mxu0 %v1969
    %1994 = vmatprep.subr.mxu0 0.0
    %1995 = vmatpush1.msra.mxu0 %v1970
    %1996 = vmatprep.subr.mxu0 0.0
    %1997 = vmatpush1.msra.mxu0 %v1971
    %1998 = vmatprep.subr.mxu0 0.0
    %1999 = vmatpush1.msra.mxu0 %v1972
    %2000 = vmatprep.subr.mxu0 0.0
    %2001 = vmatpush1.msra.mxu0 0.0
    %2002 = vmatprep.subr.mxu0 0.0
    %2003 = vmatpush1.msra.mxu0 0.0
    %2004 = vmatprep.subr.mxu0 0.0
    %2005 = vmatpush1.msra.mxu0 0.0
    %2006 = vmatprep.subr.mxu0 0.0
    %2007 = vmatpush1.msra.mxu0 0.0
    %2008 = vmatprep.subr.mxu0 0.0
    %2009 = vmatpush1.msra.mxu0 0.0
    %2010 = vmatprep.subr.mxu0 0.0
    %2011 = vmatpush1.msra.mxu0 0.0
    %2012 = vmatprep.subr.mxu0 0.0
    %2013 = vmatpush1.msra.mxu0 0.0
    %2014 = vmatprep.subr.mxu0 0.0
    %2015 = vmatpush1.msra.mxu0 0.0
    %2016 = vmatprep.subr.mxu0 0.0
    %2017 = vmatpush1.msra.mxu0 0.0
    %2018 = vmatprep.subr.mxu0 0.0
    %2019 = vmatpush1.msra.mxu0 0.0
    %2020 = vmatprep.subr.mxu0 0.0
    %2021 = vmatpush1.msra.mxu0 0.0
    %2022 = vmatprep.subr.mxu0 0.0
    %2023 = vmatpush1.msra.mxu0 0.0
    %2024 = vmatprep.subr.mxu0 0.0
    %2025 = vmatpush1.msra.mxu0 0.0
    %2026 = vmatprep.subr.mxu0 0.0
    %2027 = vmatpush1.msra.mxu0 0.0
    %2028 = vmatprep.subr.mxu0 0.0
    %2029 = vmatpush1.msra.mxu0 0.0
    %2030 = vmatprep.subr.mxu0 0.0
    %2031 = vmatpush1.msra.mxu0 0.0
    %2032 = vmatprep.subr.mxu0 0.0
    %2033 = vmatpush1.msra.mxu0 0.0
    %2034 = vmatprep.subr.mxu0 0.0
    %2035 = vmatpush1.msra.mxu0 0.0
    %2036 = vmatprep.subr.mxu0 0.0
    %2037 = vmatpush1.msra.mxu0 0.0
    %2038 = vmatprep.subr.mxu0 0.0
    %2039 = vmatpush1.msra.mxu0 0.0
    %2040 = vmatprep.subr.mxu0 0.0
    %2041 = vmatpush1.msra.mxu0 0.0
    %2042 = vmatprep.subr.mxu0 0.0
    %2043 = vmatpush1.msra.mxu0 0.0
    %2044 = vmatprep.subr.mxu0 0.0
    %2045 = vmatpush1.msra.mxu0 0.0
    %2046 = vmatprep.subr.mxu0 0.0
    %2047 = vmatpush1.msra.mxu0 0.0
    %2048 = vmatprep.subr.mxu0 0.0
    %2049 = vmatpush1.msra.mxu0 0.0
    %2050 = vmatprep.subr.mxu0 0.0
    %2051 = vmatpush1.msra.mxu0 0.0
    %2052 = vmatprep.subr.mxu0 0.0
    %2053 = vmatpush1.msra.mxu0 0.0
    %2054 = vmatprep.subr.mxu0 0.0
    %2055 = vmatpush1.msra.mxu0 0.0
    %2056 = vmatprep.mubr.f32.mxu0 0.0
    %2057 = vmatmul.mubr.f32.gmra.mrb[0].mxu0 %v1981
    %v2058 = vpop.f32.mrb[0].mxu0
    %v2059 = vadd.f32 %v1978, %v2058
    %v2060 = vpop.f32.mrb[0].mxu0
    %2061 = vmatprep.mubr.f32.mxu0 0.0
    %2062 = vmatmul.mubr.f32.gmra.mrb[0].mxu0 %v1984
    %v2063 = vpop.f32.mrb[0].mxu0
    %v2064 = vadd.f32 %v1978, %v2063
    %v2065 = vpop.f32.mrb[0].mxu0
    %2066 = vmatprep.mubr.f32.mxu0 0.0
    %2067 = vmatmul.mubr.f32.gmra.mrb[0].mxu0 %v1987
    %v2068 = vpop.f32.mrb[0].mxu0
    %v2069 = vadd.f32 %v1978, %v2068
    %v2070 = vpop.f32.mrb[0].mxu0
    %2071 = vmatprep.mubr.f32.mxu0 0.0
    %2072 = vmatmul.mubr.f32.gmra.mrb[0].mxu0 %v1990
    %v2073 = vpop.f32.mrb[0].mxu0
    %v2074 = vadd.f32 %v1978, %v2073
    %v2075 = vpop.f32.mrb[0].mxu0
    %2076 = vdwg.mxu0
    %v2077 = vmax.f32 %v2059, 0.0
    %v2078 = vmax.f32 %v2064, 0.0
    %v2079 = vmax.f32 %v2069, 0.0
    %v2080 = vmax.f32 %v2074, 0.0
    %v2081 = vld [vmem:[%s18] sm:$0xff]
    %v2082 = vld [vmem:[%s18 + $0x8] sm:$0xff]
    %v2083 = vld [vmem:[%s18 + $0x10] sm:$0xff]
    %v2084 = vld [vmem:[%s18 + $0x18] sm:$0xff]
    %v2085 = vld [vmem:[%s19] sm:$0x1]
    %v2087 = vlaneseq
    %v2088 = vshrl.u32 %v2087, 7
    %v2089 = vsub.s32 0, %v2088
    %v2090 = vrot.slane %v2085, %v2089
    %v2093 = vsel %vm311, %v2077, 0
    %v2096 = vsel %vm311, %v2078, 0
    %v2099 = vsel %vm311, %v2079, 0
    %v2102 = vsel %vm311, %v2080, 0
    %2104 = vmatprep.subr.mxu0 0.0
    %2105 = vmatpush1.msra.mxu0 %v2081
    %2106 = vmatprep.subr.mxu0 0.0
    %2107 = vmatpush1.msra.mxu0 %v2082
    %2108 = vmatprep.subr.mxu0 0.0
    %2109 = vmatpush1.msra.mxu0 %v2083
    %2110 = vmatprep.subr.mxu0 0.0
    %2111 = vmatpush1.msra.mxu0 %v2084
    %2112 = vmatprep.subr.mxu0 0.0
    %2113 = vmatpush1.msra.mxu0 0.0
    %2114 = vmatprep.subr.mxu0 0.0
    %2115 = vmatpush1.msra.mxu0 0.0
    %2116 = vmatprep.subr.mxu0 0.0
    %2117 = vmatpush1.msra.mxu0 0.0
    %2118 = vmatprep.subr.mxu0 0.0
    %2119 = vmatpush1.msra.mxu0 0.0
    %2120 = vmatprep.subr.mxu0 0.0
    %2121 = vmatpush1.msra.mxu0 0.0
    %2122 = vmatprep.subr.mxu0 0.0
    %2123 = vmatpush1.msra.mxu0 0.0
    %2124 = vmatprep.subr.mxu0 0.0
    %2125 = vmatpush1.msra.mxu0 0.0
    %2126 = vmatprep.subr.mxu0 0.0
    %2127 = vmatpush1.msra.mxu0 0.0
    %2128 = vmatprep.subr.mxu0 0.0
    %2129 = vmatpush1.msra.mxu0 0.0
    %2130 = vmatprep.subr.mxu0 0.0
    %2131 = vmatpush1.msra.mxu0 0.0
    %2132 = vmatprep.subr.mxu0 0.0
    %2133 = vmatpush1.msra.mxu0 0.0
    %2134 = vmatprep.subr.mxu0 0.0
    %2135 = vmatpush1.msra.mxu0 0.0
    %2136 = vmatprep.subr.mxu0 0.0
    %2137 = vmatpush1.msra.mxu0 0.0
    %2138 = vmatprep.subr.mxu0 0.0
    %2139 = vmatpush1.msra.mxu0 0.0
    %2140 = vmatprep.subr.mxu0 0.0
    %2141 = vmatpush1.msra.mxu0 0.0
    %2142 = vmatprep.subr.mxu0 0.0
    %2143 = vmatpush1.msra.mxu0 0.0
    %2144 = vmatprep.subr.mxu0 0.0
    %2145 = vmatpush1.msra.mxu0 0.0
    %2146 = vmatprep.subr.mxu0 0.0
    %2147 = vmatpush1.msra.mxu0 0.0
    %2148 = vmatprep.subr.mxu0 0.0
    %2149 = vmatpush1.msra.mxu0 0.0
    %2150 = vmatprep.subr.mxu0 0.0
    %2151 = vmatpush1.msra.mxu0 0.0
    %2152 = vmatprep.subr.mxu0 0.0
    %2153 = vmatpush1.msra.mxu0 0.0
    %2154 = vmatprep.subr.mxu0 0.0
    %2155 = vmatpush1.msra.mxu0 0.0
    %2156 = vmatprep.subr.mxu0 0.0
    %2157 = vmatpush1.msra.mxu0 0.0
    %2158 = vmatprep.subr.mxu0 0.0
    %2159 = vmatpush1.msra.mxu0 0.0
    %2160 = vmatprep.subr.mxu0 0.0
    %2161 = vmatpush1.msra.mxu0 0.0
    %2162 = vmatprep.subr.mxu0 0.0
    %2163 = vmatpush1.msra.mxu0 0.0
    %2164 = vmatprep.subr.mxu0 0.0
    %2165 = vmatpush1.msra.mxu0 0.0
    %2166 = vmatprep.subr.mxu0 0.0
    %2167 = vmatpush1.msra.mxu0 0.0
    %2168 = vmatprep.mubr.f32.mxu0 0.0
    %2169 = vmatmul.mubr.f32.gmra.mrb[0].mxu0 %v2093
    %v2170 = vpop.f32.mrb[0].mxu0
    %v2171 = vadd.f32 %v2090, %v2170
    %v2172 = vpop.f32.mrb[0].mxu0
    %2173 = vmatprep.mubr.f32.mxu0 0.0
    %2174 = vmatmul.mubr.f32.gmra.mrb[0].mxu0 %v2096
    %v2175 = vpop.f32.mrb[0].mxu0
    %v2176 = vadd.f32 %v2090, %v2175
    %v2177 = vpop.f32.mrb[0].mxu0
    %2178 = vmatprep.mubr.f32.mxu0 0.0
    %2179 = vmatmul.mubr.f32.gmra.mrb[0].mxu0 %v2099
    %v2180 = vpop.f32.mrb[0].mxu0
    %v2181 = vadd.f32 %v2090, %v2180
    %v2182 = vpop.f32.mrb[0].mxu0
    %2183 = vmatprep.mubr.f32.mxu0 0.0
    %2184 = vmatmul.mubr.f32.gmra.mrb[0].mxu0 %v2102
    %v2185 = vpop.f32.mrb[0].mxu0
    %v2186 = vadd.f32 %v2090, %v2185
    %v2187 = vpop.f32.mrb[0].mxu0
    %2188 = vdwg.mxu0
    %s2189 = scalar_lea.vmem [#allocation11], 32
    %v2190 = vld [vmem:[%s2189] sm:$0xff]
    %v2191 = vld [vmem:[%s2189 + $0x8] sm:$0xff]
    %v2192 = vld [vmem:[%s2189 + $0x10] sm:$0xff]
    %v2193 = vld [vmem:[%s2189 + $0x18] sm:$0xff]
    %s2194 = scalar_lea.vmem %s5, 1
    %v2195 = vld [vmem:[%s2194] sm:$0x1]
    %v2197 = vlaneseq
    %v2198 = vshrl.u32 %v2197, 7
    %v2199 = vsub.s32 0, %v2198
    %v2200 = vrot.slane %v2195, %v2199
    %v2203 = vsel %vm311, %v2171, 0
    %v2206 = vsel %vm311, %v2176, 0
    %v2209 = vsel %vm311, %v2181, 0
    %v2212 = vsel %vm311, %v2186, 0
    %2214 = vmatprep.subr.mxu0 0.0
    %2215 = vmatpush1.msra.mxu0 %v2190
    %2216 = vmatprep.subr.mxu0 0.0
    %2217 = vmatpush1.msra.mxu0 %v2191
    %2218 = vmatprep.subr.mxu0 0.0
    %2219 = vmatpush1.msra.mxu0 %v2192
    %2220 = vmatprep.subr.mxu0 0.0
    %2221 = vmatpush1.msra.mxu0 %v2193
    %2222 = vmatprep.subr.mxu0 0.0
    %2223 = vmatpush1.msra.mxu0 0.0
    %2224 = vmatprep.subr.mxu0 0.0
    %2225 = vmatpush1.msra.mxu0 0.0
    %2226 = vmatprep.subr.mxu0 0.0
    %2227 = vmatpush1.msra.mxu0 0.0
    %2228 = vmatprep.subr.mxu0 0.0
    %2229 = vmatpush1.msra.mxu0 0.0
    %2230 = vmatprep.subr.mxu0 0.0
    %2231 = vmatpush1.msra.mxu0 0.0
    %2232 = vmatprep.subr.mxu0 0.0
    %2233 = vmatpush1.msra.mxu0 0.0
    %2234 = vmatprep.subr.mxu0 0.0
    %2235 = vmatpush1.msra.mxu0 0.0
    %2236 = vmatprep.subr.mxu0 0.0
    %2237 = vmatpush1.msra.mxu0 0.0
    %2238 = vmatprep.subr.mxu0 0.0
    %2239 = vmatpush1.msra.mxu0 0.0
    %2240 = vmatprep.subr.mxu0 0.0
    %2241 = vmatpush1.msra.mxu0 0.0
    %2242 = vmatprep.subr.mxu0 0.0
    %2243 = vmatpush1.msra.mxu0 0.0
    %2244 = vmatprep.subr.mxu0 0.0
    %2245 = vmatpush1.msra.mxu0 0.0
    %2246 = vmatprep.subr.mxu0 0.0
    %2247 = vmatpush1.msra.mxu0 0.0
    %2248 = vmatprep.subr.mxu0 0.0
    %2249 = vmatpush1.msra.mxu0 0.0
    %2250 = vmatprep.subr.mxu0 0.0
    %2251 = vmatpush1.msra.mxu0 0.0
    %2252 = vmatprep.subr.mxu0 0.0
    %2253 = vmatpush1.msra.mxu0 0.0
    %2254 = vmatprep.subr.mxu0 0.0
    %2255 = vmatpush1.msra.mxu0 0.0
    %2256 = vmatprep.subr.mxu0 0.0
    %2257 = vmatpush1.msra.mxu0 0.0
    %2258 = vmatprep.subr.mxu0 0.0
    %2259 = vmatpush1.msra.mxu0 0.0
    %2260 = vmatprep.subr.mxu0 0.0
    %2261 = vmatpush1.msra.mxu0 0.0
    %2262 = vmatprep.subr.mxu0 0.0
    %2263 = vmatpush1.msra.mxu0 0.0
    %2264 = vmatprep.subr.mxu0 0.0
    %2265 = vmatpush1.msra.mxu0 0.0
    %2266 = vmatprep.subr.mxu0 0.0
    %2267 = vmatpush1.msra.mxu0 0.0
    %2268 = vmatprep.subr.mxu0 0.0
    %2269 = vmatpush1.msra.mxu0 0.0
    %2270 = vmatprep.subr.mxu0 0.0
    %2271 = vmatpush1.msra.mxu0 0.0
    %2272 = vmatprep.subr.mxu0 0.0
    %2273 = vmatpush1.msra.mxu0 0.0
    %2274 = vmatprep.subr.mxu0 0.0
    %2275 = vmatpush1.msra.mxu0 0.0
    %2276 = vmatprep.subr.mxu0 0.0
    %2277 = vmatpush1.msra.mxu0 0.0
    %2278 = vmatprep.mubr.f32.mxu0 0.0
    %2279 = vmatmul.mubr.f32.gmra.mrb[0].mxu0 %v2203
    %v2280 = vpop.f32.mrb[0].mxu0
    %v2281 = vadd.f32 %v2200, %v2280
    %v2282 = vpop.f32.mrb[0].mxu0
    %2283 = vmatprep.mubr.f32.mxu0 0.0
    %2284 = vmatmul.mubr.f32.gmra.mrb[0].mxu0 %v2206
    %v2285 = vpop.f32.mrb[0].mxu0
    %v2286 = vadd.f32 %v2200, %v2285
    %v2287 = vpop.f32.mrb[0].mxu0
    %2288 = vmatprep.mubr.f32.mxu0 0.0
    %2289 = vmatmul.mubr.f32.gmra.mrb[0].mxu0 %v2209
    %v2290 = vpop.f32.mrb[0].mxu0
    %v2291 = vadd.f32 %v2200, %v2290
    %v2292 = vpop.f32.mrb[0].mxu0
    %2293 = vmatprep.mubr.f32.mxu0 0.0
    %2294 = vmatmul.mubr.f32.gmra.mrb[0].mxu0 %v2212
    %v2295 = vpop.f32.mrb[0].mxu0
    %v2296 = vadd.f32 %v2200, %v2295
    %v2297 = vpop.f32.mrb[0].mxu0
    %2298 = vdwg.mxu0
    %s2299 = scalar_lea.vmem [#allocation12], 16
    %v2300 = vld [vmem:[%s2299] sm:$0xff]
    %v2301 = vld [vmem:[%s2299 + $0x8] sm:$0xff]
    %s2302 = scalar_lea.vmem %s7, 1
    %v2303 = vld [vmem:[%s2302] sm:$0x1]
    %v2305 = vlaneseq
    %v2306 = vshrl.u32 %v2305, 7
    %v2307 = vsub.s32 0, %v2306
    %v2308 = vrot.slane %v2303, %v2307
    %2310 = vmatprep.subr.mxu0 0.0
    %2311 = vmatpush1.msra.mxu0 %v2300
    %2312 = vmatprep.subr.mxu0 0.0
    %2313 = vmatpush1.msra.mxu0 %v2301
    %2314 = vmatprep.subr.mxu0 0.0
    %2315 = vmatpush1.msra.mxu0 0.0
    %2316 = vmatprep.subr.mxu0 0.0
    %2317 = vmatpush1.msra.mxu0 0.0
    %2318 = vmatprep.subr.mxu0 0.0
    %2319 = vmatpush1.msra.mxu0 0.0
    %2320 = vmatprep.subr.mxu0 0.0
    %2321 = vmatpush1.msra.mxu0 0.0
    %2322 = vmatprep.subr.mxu0 0.0
    %2323 = vmatpush1.msra.mxu0 0.0
    %2324 = vmatprep.subr.mxu0 0.0
    %2325 = vmatpush1.msra.mxu0 0.0
    %2326 = vmatprep.subr.mxu0 0.0
    %2327 = vmatpush1.msra.mxu0 0.0
    %2328 = vmatprep.subr.mxu0 0.0
    %2329 = vmatpush1.msra.mxu0 0.0
    %2330 = vmatprep.subr.mxu0 0.0
    %2331 = vmatpush1.msra.mxu0 0.0
    %2332 = vmatprep.subr.mxu0 0.0
    %2333 = vmatpush1.msra.mxu0 0.0
    %2334 = vmatprep.subr.mxu0 0.0
    %2335 = vmatpush1.msra.mxu0 0.0
    %2336 = vmatprep.subr.mxu0 0.0
    %2337 = vmatpush1.msra.mxu0 0.0
    %2338 = vmatprep.subr.mxu0 0.0
    %2339 = vmatpush1.msra.mxu0 0.0
    %2340 = vmatprep.subr.mxu0 0.0
    %2341 = vmatpush1.msra.mxu0 0.0
    %2342 = vmatprep.subr.mxu0 0.0
    %2343 = vmatpush1.msra.mxu0 0.0
    %2344 = vmatprep.subr.mxu0 0.0
    %2345 = vmatpush1.msra.mxu0 0.0
    %2346 = vmatprep.subr.mxu0 0.0
    %2347 = vmatpush1.msra.mxu0 0.0
    %2348 = vmatprep.subr.mxu0 0.0
    %2349 = vmatpush1.msra.mxu0 0.0
    %2350 = vmatprep.subr.mxu0 0.0
    %2351 = vmatpush1.msra.mxu0 0.0
    %2352 = vmatprep.subr.mxu0 0.0
    %2353 = vmatpush1.msra.mxu0 0.0
    %2354 = vmatprep.subr.mxu0 0.0
    %2355 = vmatpush1.msra.mxu0 0.0
    %2356 = vmatprep.subr.mxu0 0.0
    %2357 = vmatpush1.msra.mxu0 0.0
    %2358 = vmatprep.subr.mxu0 0.0
    %2359 = vmatpush1.msra.mxu0 0.0
    %2360 = vmatprep.subr.mxu0 0.0
    %2361 = vmatpush1.msra.mxu0 0.0
    %2362 = vmatprep.subr.mxu0 0.0
    %2363 = vmatpush1.msra.mxu0 0.0
    %2364 = vmatprep.subr.mxu0 0.0
    %2365 = vmatpush1.msra.mxu0 0.0
    %2366 = vmatprep.subr.mxu0 0.0
    %2367 = vmatpush1.msra.mxu0 0.0
    %2368 = vmatprep.subr.mxu0 0.0
    %2369 = vmatpush1.msra.mxu0 0.0
    %2370 = vmatprep.subr.mxu0 0.0
    %2371 = vmatpush1.msra.mxu0 0.0
    %2372 = vmatprep.subr.mxu0 0.0
    %2373 = vmatpush1.msra.mxu0 0.0
    %2374 = vmatprep.mubr.f32.mxu0 0.0
    %2375 = vmatmul.mubr.f32.gmra.mrb[0].mxu0 %v420
    %v2376 = vpop.f32.mrb[0].mxu0
    %v2377 = vadd.f32 %v2308, %v2376
    %v2378 = vpop.f32.mrb[0].mxu0
    %2379 = vdwg.mxu0
    %s2380 = scalar_lea.vmem [#allocation14], 16
    %v2381 = vld [vmem:[%s2380] sm:$0xff]
    %v2382 = vld [vmem:[%s2380 + $0x8] sm:$0xff]
    %s2383 = scalar_lea.vmem [#allocation15], 1
    %v2384 = vld [vmem:[%s2383] sm:$0x1]
    %v2386 = vlaneseq
    %v2387 = vshrl.u32 %v2386, 7
    %v2388 = vsub.s32 0, %v2387
    %v2389 = vrot.slane %v2384, %v2388
    %2391 = vmatprep.subr.mxu0 0.0
    %2392 = vmatpush1.msra.mxu0 %v2381
    %2393 = vmatprep.subr.mxu0 0.0
    %2394 = vmatpush1.msra.mxu0 %v2382
    %2395 = vmatprep.subr.mxu0 0.0
    %2396 = vmatpush1.msra.mxu0 0.0
    %2397 = vmatprep.subr.mxu0 0.0
    %2398 = vmatpush1.msra.mxu0 0.0
    %2399 = vmatprep.subr.mxu0 0.0
    %2400 = vmatpush1.msra.mxu0 0.0
    %2401 = vmatprep.subr.mxu0 0.0
    %2402 = vmatpush1.msra.mxu0 0.0
    %2403 = vmatprep.subr.mxu0 0.0
    %2404 = vmatpush1.msra.mxu0 0.0
    %2405 = vmatprep.subr.mxu0 0.0
    %2406 = vmatpush1.msra.mxu0 0.0
    %2407 = vmatprep.subr.mxu0 0.0
    %2408 = vmatpush1.msra.mxu0 0.0
    %2409 = vmatprep.subr.mxu0 0.0
    %2410 = vmatpush1.msra.mxu0 0.0
    %2411 = vmatprep.subr.mxu0 0.0
    %2412 = vmatpush1.msra.mxu0 0.0
    %2413 = vmatprep.subr.mxu0 0.0
    %2414 = vmatpush1.msra.mxu0 0.0
    %2415 = vmatprep.subr.mxu0 0.0
    %2416 = vmatpush1.msra.mxu0 0.0
    %2417 = vmatprep.subr.mxu0 0.0
    %2418 = vmatpush1.msra.mxu0 0.0
    %2419 = vmatprep.subr.mxu0 0.0
    %2420 = vmatpush1.msra.mxu0 0.0
    %2421 = vmatprep.subr.mxu0 0.0
    %2422 = vmatpush1.msra.mxu0 0.0
    %2423 = vmatprep.subr.mxu0 0.0
    %2424 = vmatpush1.msra.mxu0 0.0
    %2425 = vmatprep.subr.mxu0 0.0
    %2426 = vmatpush1.msra.mxu0 0.0
    %2427 = vmatprep.subr.mxu0 0.0
    %2428 = vmatpush1.msra.mxu0 0.0
    %2429 = vmatprep.subr.mxu0 0.0
    %2430 = vmatpush1.msra.mxu0 0.0
    %2431 = vmatprep.subr.mxu0 0.0
    %2432 = vmatpush1.msra.mxu0 0.0
    %2433 = vmatprep.subr.mxu0 0.0
    %2434 = vmatpush1.msra.mxu0 0.0
    %2435 = vmatprep.subr.mxu0 0.0
    %2436 = vmatpush1.msra.mxu0 0.0
    %2437 = vmatprep.subr.mxu0 0.0
    %2438 = vmatpush1.msra.mxu0 0.0
    %2439 = vmatprep.subr.mxu0 0.0
    %2440 = vmatpush1.msra.mxu0 0.0
    %2441 = vmatprep.subr.mxu0 0.0
    %2442 = vmatpush1.msra.mxu0 0.0
    %2443 = vmatprep.subr.mxu0 0.0
    %2444 = vmatpush1.msra.mxu0 0.0
    %2445 = vmatprep.subr.mxu0 0.0
    %2446 = vmatpush1.msra.mxu0 0.0
    %2447 = vmatprep.subr.mxu0 0.0
    %2448 = vmatpush1.msra.mxu0 0.0
    %2449 = vmatprep.subr.mxu0 0.0
    %2450 = vmatpush1.msra.mxu0 0.0
    %2451 = vmatprep.subr.mxu0 0.0
    %2452 = vmatpush1.msra.mxu0 0.0
    %2453 = vmatprep.subr.mxu0 0.0
    %2454 = vmatpush1.msra.mxu0 0.0
    %2455 = vmatprep.mubr.f32.mxu0 0.0
    %2456 = vmatmul.mubr.f32.gmra.mrb[0].mxu0 %v420
    %v2457 = vpop.f32.mrb[0].mxu0
    %v2458 = vadd.f32 %v2389, %v2457
    %v2459 = vpop.f32.mrb[0].mxu0
    %2460 = vdwg.mxu0
    %v2462 = vsel %vm311, %v2281, 0
    %v2465 = vsel %vm311, %v2286, 0
    %v2468 = vsel %vm311, %v2377, 0
    %2470 = vmatprep.subr.mxu0 0.0
    %2471 = vmatpush1.xpose.msra.mxu0 %v2468
    %2472 = vmatprep.subr.mxu0 0.0
    %2473 = vmatpush1.xpose.msra.mxu0 0.0
    %2474 = vmatprep.subr.mxu0 0.0
    %2475 = vmatpush1.xpose.msra.mxu0 0.0
    %2476 = vmatprep.subr.mxu0 0.0
    %2477 = vmatpush1.xpose.msra.mxu0 0.0
    %2478 = vmatprep.subr.mxu0 0.0
    %2479 = vmatpush1.xpose.msra.mxu0 0.0
    %2480 = vmatprep.subr.mxu0 0.0
    %2481 = vmatpush1.xpose.msra.mxu0 0.0
    %2482 = vmatprep.subr.mxu0 0.0
    %2483 = vmatpush1.xpose.msra.mxu0 0.0
    %2484 = vmatprep.subr.mxu0 0.0
    %2485 = vmatpush1.xpose.msra.mxu0 0.0
    %2486 = vmatprep.subr.mxu0 0.0
    %2487 = vmatpush1.xpose.msra.mxu0 0.0
    %2488 = vmatprep.subr.mxu0 0.0
    %2489 = vmatpush1.xpose.msra.mxu0 0.0
    %2490 = vmatprep.subr.mxu0 0.0
    %2491 = vmatpush1.xpose.msra.mxu0 0.0
    %2492 = vmatprep.subr.mxu0 0.0
    %2493 = vmatpush1.xpose.msra.mxu0 0.0
    %2494 = vmatprep.subr.mxu0 0.0
    %2495 = vmatpush1.xpose.msra.mxu0 0.0
    %2496 = vmatprep.subr.mxu0 0.0
    %2497 = vmatpush1.xpose.msra.mxu0 0.0
    %2498 = vmatprep.subr.mxu0 0.0
    %2499 = vmatpush1.xpose.msra.mxu0 0.0
    %2500 = vmatprep.subr.mxu0 0.0
    %2501 = vmatpush1.xpose.msra.mxu0 0.0
    %2502 = vmatprep.subr.mxu0 0.0
    %2503 = vmatpush1.xpose.msra.mxu0 0.0
    %2504 = vmatprep.subr.mxu0 0.0
    %2505 = vmatpush1.xpose.msra.mxu0 0.0
    %2506 = vmatprep.subr.mxu0 0.0
    %2507 = vmatpush1.xpose.msra.mxu0 0.0
    %2508 = vmatprep.subr.mxu0 0.0
    %2509 = vmatpush1.xpose.msra.mxu0 0.0
    %2510 = vmatprep.subr.mxu0 0.0
    %2511 = vmatpush1.xpose.msra.mxu0 0.0
    %2512 = vmatprep.subr.mxu0 0.0
    %2513 = vmatpush1.xpose.msra.mxu0 0.0
    %2514 = vmatprep.subr.mxu0 0.0
    %2515 = vmatpush1.xpose.msra.mxu0 0.0
    %2516 = vmatprep.subr.mxu0 0.0
    %2517 = vmatpush1.xpose.msra.mxu0 0.0
    %2518 = vmatprep.subr.mxu0 0.0
    %2519 = vmatpush1.xpose.msra.mxu0 0.0
    %2520 = vmatprep.subr.mxu0 0.0
    %2521 = vmatpush1.xpose.msra.mxu0 0.0
    %2522 = vmatprep.subr.mxu0 0.0
    %2523 = vmatpush1.xpose.msra.mxu0 0.0
    %2524 = vmatprep.subr.mxu0 0.0
    %2525 = vmatpush1.xpose.msra.mxu0 0.0
    %2526 = vmatprep.subr.mxu0 0.0
    %2527 = vmatpush1.xpose.msra.mxu0 0.0
    %2528 = vmatprep.subr.mxu0 0.0
    %2529 = vmatpush1.xpose.msra.mxu0 0.0
    %2530 = vmatprep.subr.mxu0 0.0
    %2531 = vmatpush1.xpose.msra.mxu0 0.0
    %2532 = vmatprep.subr.mxu0 0.0
    %2533 = vmatpush1.xpose.msra.mxu0 0.0
    %2534 = vmatprep.mubr.f32.mxu0 0.0
    %2535 = vmatmul.mubr.f32.gmra.mrb[0].mxu0 %v2462
    %v2536 = vpop.f32.mrb[0].mxu0
    %v2537 = vadd.f32 0.0, %v2536
    %v2538 = vpop.f32.mrb[0].mxu0
    %2539 = vmatprep.mubr.f32.mxu0 0.0
    %2540 = vmatmul.mubr.f32.gmra.mrb[0].mxu0 %v2465
    %v2541 = vpop.f32.mrb[0].mxu0
    %v2542 = vadd.f32 0.0, %v2541
    %v2543 = vpop.f32.mrb[0].mxu0
    %2544 = vdwg.mxu0
    %v2545 = vsel %vm655, %v2537, -inf
    %2546 = vmax.xlane.f32.xlu0 %v2545
    %v2547 = vpop.xlane.xlu0 %2546
    %v2548 = vsel %vm655, %v2542, -inf
    %2549 = vmax.xlane.f32.xlu0 %v2548
    %v2550 = vpop.xlane.xlu0 %2549
    %v2551 = vsub.f32 %v2537, %v2547
    %v2552 = vsub.f32 %v2542, %v2550
    %v2553 = vmul.f32 %v2551, 1.442695
    %v2554 = vpow.pop %v2553
    %v2555 = vmul.f32 %v2552, 1.442695
    %v2556 = vpow.pop %v2555
    %v2557 = vsel %vm655, %v2554, 0.0
    %2558 = vadd.xlane.f32.xlu0 %v2557
    %v2559 = vpop.xlane.xlu0 %2558
    %v2560 = vsel %vm655, %v2556, 0.0
    %2561 = vadd.xlane.f32.xlu0 %v2560
    %v2562 = vpop.xlane.xlu0 %2561
    %v2563 = vrcp.pop %v2559
    %v2564 = vrcp.pop %v2562
    %v2565 = vmul.f32 %v2554, %v2563
    %v2566 = vmul.f32 %v2556, %v2564
    %v2568 = vsel %vm655, %v2565, 0
    %v2571 = vsel %vm655, %v2566, 0
    %v2574 = vsel %vm684, %v2458, 0
    %2576 = vmatprep.subr.mxu0 0.0
    %2577 = vmatpush1.msra.mxu0 %v2574
    %2578 = vmatprep.subr.mxu0 0.0
    %2579 = vmatpush1.msra.mxu0 0.0
    %2580 = vmatprep.subr.mxu0 0.0
    %2581 = vmatpush1.msra.mxu0 0.0
    %2582 = vmatprep.subr.mxu0 0.0
    %2583 = vmatpush1.msra.mxu0 0.0
    %2584 = vmatprep.subr.mxu0 0.0
    %2585 = vmatpush1.msra.mxu0 0.0
    %2586 = vmatprep.subr.mxu0 0.0
    %2587 = vmatpush1.msra.mxu0 0.0
    %2588 = vmatprep.subr.mxu0 0.0
    %2589 = vmatpush1.msra.mxu0 0.0
    %2590 = vmatprep.subr.mxu0 0.0
    %2591 = vmatpush1.msra.mxu0 0.0
    %2592 = vmatprep.subr.mxu0 0.0
    %2593 = vmatpush1.msra.mxu0 0.0
    %2594 = vmatprep.subr.mxu0 0.0
    %2595 = vmatpush1.msra.mxu0 0.0
    %2596 = vmatprep.subr.mxu0 0.0
    %2597 = vmatpush1.msra.mxu0 0.0
    %2598 = vmatprep.subr.mxu0 0.0
    %2599 = vmatpush1.msra.mxu0 0.0
    %2600 = vmatprep.subr.mxu0 0.0
    %2601 = vmatpush1.msra.mxu0 0.0
    %2602 = vmatprep.subr.mxu0 0.0
    %2603 = vmatpush1.msra.mxu0 0.0
    %2604 = vmatprep.subr.mxu0 0.0
    %2605 = vmatpush1.msra.mxu0 0.0
    %2606 = vmatprep.subr.mxu0 0.0
    %2607 = vmatpush1.msra.mxu0 0.0
    %2608 = vmatprep.subr.mxu0 0.0
    %2609 = vmatpush1.msra.mxu0 0.0
    %2610 = vmatprep.subr.mxu0 0.0
    %2611 = vmatpush1.msra.mxu0 0.0
    %2612 = vmatprep.subr.mxu0 0.0
    %2613 = vmatpush1.msra.mxu0 0.0
    %2614 = vmatprep.subr.mxu0 0.0
    %2615 = vmatpush1.msra.mxu0 0.0
    %2616 = vmatprep.subr.mxu0 0.0
    %2617 = vmatpush1.msra.mxu0 0.0
    %2618 = vmatprep.subr.mxu0 0.0
    %2619 = vmatpush1.msra.mxu0 0.0
    %2620 = vmatprep.subr.mxu0 0.0
    %2621 = vmatpush1.msra.mxu0 0.0
    %2622 = vmatprep.subr.mxu0 0.0
    %2623 = vmatpush1.msra.mxu0 0.0
    %2624 = vmatprep.subr.mxu0 0.0
    %2625 = vmatpush1.msra.mxu0 0.0
    %2626 = vmatprep.subr.mxu0 0.0
    %2627 = vmatpush1.msra.mxu0 0.0
    %2628 = vmatprep.subr.mxu0 0.0
    %2629 = vmatpush1.msra.mxu0 0.0
    %2630 = vmatprep.subr.mxu0 0.0
    %2631 = vmatpush1.msra.mxu0 0.0
    %2632 = vmatprep.subr.mxu0 0.0
    %2633 = vmatpush1.msra.mxu0 0.0
    %2634 = vmatprep.subr.mxu0 0.0
    %2635 = vmatpush1.msra.mxu0 0.0
    %2636 = vmatprep.subr.mxu0 0.0
    %2637 = vmatpush1.msra.mxu0 0.0
    %2638 = vmatprep.subr.mxu0 0.0
    %2639 = vmatpush1.msra.mxu0 0.0
    %2640 = vmatprep.mubr.f32.mxu0 0.0
    %2641 = vmatmul.mubr.f32.gmra.mrb[0].mxu0 %v2568
    %v2642 = vpop.f32.mrb[0].mxu0
    %v2643 = vadd.f32 0.0, %v2642
    %v2644 = vpop.f32.mrb[0].mxu0
    %2645 = vmatprep.mubr.f32.mxu0 0.0
    %2646 = vmatmul.mubr.f32.gmra.mrb[0].mxu0 %v2571
    %v2647 = vpop.f32.mrb[0].mxu0
    %v2648 = vadd.f32 0.0, %v2647
    %v2649 = vpop.f32.mrb[0].mxu0
    %2650 = vdwg.mxu0
    %v2652 = vsel %vm311, %v2643, 0
    %v2655 = vsel %vm311, %v2648, 0
    %2657 = vmatprep.subr.mxu0 0.0
    %2658 = vmatpush1.xpose.msra.mxu0 %v2652
    %2659 = vmatprep.subr.mxu0 0.0
    %2660 = vmatpush1.xpose.msra.mxu0 %v2655
    %2661 = vmatprep.subr.mxu0 0.0
    %2662 = vmatpush1.xpose.msra.mxu0 0.0
    %2663 = vmatprep.subr.mxu0 0.0
    %2664 = vmatpush1.xpose.msra.mxu0 0.0
    %2665 = vmatprep.subr.mxu0 0.0
    %2666 = vmatpush1.xpose.msra.mxu0 0.0
    %2667 = vmatprep.subr.mxu0 0.0
    %2668 = vmatpush1.xpose.msra.mxu0 0.0
    %2669 = vmatprep.subr.mxu0 0.0
    %2670 = vmatpush1.xpose.msra.mxu0 0.0
    %2671 = vmatprep.subr.mxu0 0.0
    %2672 = vmatpush1.xpose.msra.mxu0 0.0
    %2673 = vmatprep.subr.mxu0 0.0
    %2674 = vmatpush1.xpose.msra.mxu0 0.0
    %2675 = vmatprep.subr.mxu0 0.0
    %2676 = vmatpush1.xpose.msra.mxu0 0.0
    %2677 = vmatprep.subr.mxu0 0.0
    %2678 = vmatpush1.xpose.msra.mxu0 0.0
    %2679 = vmatprep.subr.mxu0 0.0
    %2680 = vmatpush1.xpose.msra.mxu0 0.0
    %2681 = vmatprep.subr.mxu0 0.0
    %2682 = vmatpush1.xpose.msra.mxu0 0.0
    %2683 = vmatprep.subr.mxu0 0.0
    %2684 = vmatpush1.xpose.msra.mxu0 0.0
    %2685 = vmatprep.subr.mxu0 0.0
    %2686 = vmatpush1.xpose.msra.mxu0 0.0
    %2687 = vmatprep.subr.mxu0 0.0
    %2688 = vmatpush1.xpose.msra.mxu0 0.0
    %2689 = vmatprep.subr.mxu0 0.0
    %2690 = vmatpush1.xpose.msra.mxu0 0.0
    %2691 = vmatprep.subr.mxu0 0.0
    %2692 = vmatpush1.xpose.msra.mxu0 0.0
    %2693 = vmatprep.subr.mxu0 0.0
    %2694 = vmatpush1.xpose.msra.mxu0 0.0
    %2695 = vmatprep.subr.mxu0 0.0
    %2696 = vmatpush1.xpose.msra.mxu0 0.0
    %2697 = vmatprep.subr.mxu0 0.0
    %2698 = vmatpush1.xpose.msra.mxu0 0.0
    %2699 = vmatprep.subr.mxu0 0.0
    %2700 = vmatpush1.xpose.msra.mxu0 0.0
    %2701 = vmatprep.subr.mxu0 0.0
    %2702 = vmatpush1.xpose.msra.mxu0 0.0
    %2703 = vmatprep.subr.mxu0 0.0
    %2704 = vmatpush1.xpose.msra.mxu0 0.0
    %2705 = vmatprep.subr.mxu0 0.0
    %2706 = vmatpush1.xpose.msra.mxu0 0.0
    %2707 = vmatprep.subr.mxu0 0.0
    %2708 = vmatpush1.xpose.msra.mxu0 0.0
    %2709 = vmatprep.subr.mxu0 0.0
    %2710 = vmatpush1.xpose.msra.mxu0 0.0
    %2711 = vmatprep.subr.mxu0 0.0
    %2712 = vmatpush1.xpose.msra.mxu0 0.0
    %2713 = vmatprep.subr.mxu0 0.0
    %2714 = vmatpush1.xpose.msra.mxu0 0.0
    %2715 = vmatprep.subr.mxu0 0.0
    %2716 = vmatpush1.xpose.msra.mxu0 0.0
    %2717 = vmatprep.subr.mxu0 0.0
    %2718 = vmatpush1.xpose.msra.mxu0 0.0
    %2719 = vmatprep.subr.mxu0 0.0
    %2720 = vmatpush1.xpose.msra.mxu0 0.0
    %2721 = vmatprep.mubr.f32.mxu0 0.0
    %2722 = vmatmul.mubr.f32.gmra.mrb[0].mxu0 %v764
    %v2723 = vpop.f32.mrb[0].mxu0
    %v2724 = vadd.f32 0.0, %v2723
    %v2725 = vpop.f32.mrb[0].mxu0
    %2726 = vmatprep.mubr.f32.mxu0 0.0
    %2727 = vmatmul.mubr.f32.gmra.mrb[0].mxu0 %v767
    %v2728 = vpop.f32.mrb[0].mxu0
    %v2729 = vadd.f32 0.0, %v2728
    %v2730 = vpop.f32.mrb[0].mxu0
    %2731 = vdwg.mxu0
    %2732 = vmatprep.subr.mxu0 0.0
    %2733 = vmatpush1.xpose.msra.mxu0 %v2652
    %2734 = vmatprep.subr.mxu0 0.0
    %2735 = vmatpush1.xpose.msra.mxu0 %v2655
    %2736 = vmatprep.subr.mxu0 0.0
    %2737 = vmatpush1.xpose.msra.mxu0 0.0
    %2738 = vmatprep.subr.mxu0 0.0
    %2739 = vmatpush1.xpose.msra.mxu0 0.0
    %2740 = vmatprep.subr.mxu0 0.0
    %2741 = vmatpush1.xpose.msra.mxu0 0.0
    %2742 = vmatprep.subr.mxu0 0.0
    %2743 = vmatpush1.xpose.msra.mxu0 0.0
    %2744 = vmatprep.subr.mxu0 0.0
    %2745 = vmatpush1.xpose.msra.mxu0 0.0
    %2746 = vmatprep.subr.mxu0 0.0
    %2747 = vmatpush1.xpose.msra.mxu0 0.0
    %2748 = vmatprep.subr.mxu0 0.0
    %2749 = vmatpush1.xpose.msra.mxu0 0.0
    %2750 = vmatprep.subr.mxu0 0.0
    %2751 = vmatpush1.xpose.msra.mxu0 0.0
    %2752 = vmatprep.subr.mxu0 0.0
    %2753 = vmatpush1.xpose.msra.mxu0 0.0
    %2754 = vmatprep.subr.mxu0 0.0
    %2755 = vmatpush1.xpose.msra.mxu0 0.0
    %2756 = vmatprep.subr.mxu0 0.0
    %2757 = vmatpush1.xpose.msra.mxu0 0.0
    %2758 = vmatprep.subr.mxu0 0.0
    %2759 = vmatpush1.xpose.msra.mxu0 0.0
    %2760 = vmatprep.subr.mxu0 0.0
    %2761 = vmatpush1.xpose.msra.mxu0 0.0
    %2762 = vmatprep.subr.mxu0 0.0
    %2763 = vmatpush1.xpose.msra.mxu0 0.0
    %2764 = vmatprep.subr.mxu0 0.0
    %2765 = vmatpush1.xpose.msra.mxu0 0.0
    %2766 = vmatprep.subr.mxu0 0.0
    %2767 = vmatpush1.xpose.msra.mxu0 0.0
    %2768 = vmatprep.subr.mxu0 0.0
    %2769 = vmatpush1.xpose.msra.mxu0 0.0
    %2770 = vmatprep.subr.mxu0 0.0
    %2771 = vmatpush1.xpose.msra.mxu0 0.0
    %2772 = vmatprep.subr.mxu0 0.0
    %2773 = vmatpush1.xpose.msra.mxu0 0.0
    %2774 = vmatprep.subr.mxu0 0.0
    %2775 = vmatpush1.xpose.msra.mxu0 0.0
    %2776 = vmatprep.subr.mxu0 0.0
    %2777 = vmatpush1.xpose.msra.mxu0 0.0
    %2778 = vmatprep.subr.mxu0 0.0
    %2779 = vmatpush1.xpose.msra.mxu0 0.0
    %2780 = vmatprep.subr.mxu0 0.0
    %2781 = vmatpush1.xpose.msra.mxu0 0.0
    %2782 = vmatprep.subr.mxu0 0.0
    %2783 = vmatpush1.xpose.msra.mxu0 0.0
    %2784 = vmatprep.subr.mxu0 0.0
    %2785 = vmatpush1.xpose.msra.mxu0 0.0
    %2786 = vmatprep.subr.mxu0 0.0
    %2787 = vmatpush1.xpose.msra.mxu0 0.0
    %2788 = vmatprep.subr.mxu0 0.0
    %2789 = vmatpush1.xpose.msra.mxu0 0.0
    %2790 = vmatprep.subr.mxu0 0.0
    %2791 = vmatpush1.xpose.msra.mxu0 0.0
    %2792 = vmatprep.subr.mxu0 0.0
    %2793 = vmatpush1.xpose.msra.mxu0 0.0
    %2794 = vmatprep.subr.mxu0 0.0
    %2795 = vmatpush1.xpose.msra.mxu0 0.0
    %2796 = vmatprep.mubr.f32.mxu0 0.0
    %2797 = vmatmul.mubr.f32.gmra.mrb[0].mxu0 %v851
    %v2798 = vpop.f32.mrb[0].mxu0
    %v2799 = vadd.f32 0.0, %v2798
    %v2800 = vpop.f32.mrb[0].mxu0
    %2801 = vmatprep.mubr.f32.mxu0 0.0
    %2802 = vmatmul.mubr.f32.gmra.mrb[0].mxu0 %v854
    %v2803 = vpop.f32.mrb[0].mxu0
    %v2804 = vadd.f32 0.0, %v2803
    %v2805 = vpop.f32.mrb[0].mxu0
    %2806 = vdwg.mxu0
    %v2808 = vsel %vm418, %v2799, 0
    %v2811 = vsel %vm418, %v2804, 0
    %2813 = vmatprep.subr.mxu0 0.0
    %2814 = vmatpush1.msra.mxu0 %v298
    %2815 = vmatprep.subr.mxu0 0.0
    %2816 = vmatpush1.msra.mxu0 %v299
    %2817 = vmatprep.subr.mxu0 0.0
    %2818 = vmatpush1.msra.mxu0 0.0
    %2819 = vmatprep.subr.mxu0 0.0
    %2820 = vmatpush1.msra.mxu0 0.0
    %2821 = vmatprep.subr.mxu0 0.0
    %2822 = vmatpush1.msra.mxu0 0.0
    %2823 = vmatprep.subr.mxu0 0.0
    %2824 = vmatpush1.msra.mxu0 0.0
    %2825 = vmatprep.subr.mxu0 0.0
    %2826 = vmatpush1.msra.mxu0 0.0
    %2827 = vmatprep.subr.mxu0 0.0
    %2828 = vmatpush1.msra.mxu0 0.0
    %2829 = vmatprep.subr.mxu0 0.0
    %2830 = vmatpush1.msra.mxu0 0.0
    %2831 = vmatprep.subr.mxu0 0.0
    %2832 = vmatpush1.msra.mxu0 0.0
    %2833 = vmatprep.subr.mxu0 0.0
    %2834 = vmatpush1.msra.mxu0 0.0
    %2835 = vmatprep.subr.mxu0 0.0
    %2836 = vmatpush1.msra.mxu0 0.0
    %2837 = vmatprep.subr.mxu0 0.0
    %2838 = vmatpush1.msra.mxu0 0.0
    %2839 = vmatprep.subr.mxu0 0.0
    %2840 = vmatpush1.msra.mxu0 0.0
    %2841 = vmatprep.subr.mxu0 0.0
    %2842 = vmatpush1.msra.mxu0 0.0
    %2843 = vmatprep.subr.mxu0 0.0
    %2844 = vmatpush1.msra.mxu0 0.0
    %2845 = vmatprep.subr.mxu0 0.0
    %2846 = vmatpush1.msra.mxu0 0.0
    %2847 = vmatprep.subr.mxu0 0.0
    %2848 = vmatpush1.msra.mxu0 0.0
    %2849 = vmatprep.subr.mxu0 0.0
    %2850 = vmatpush1.msra.mxu0 0.0
    %2851 = vmatprep.subr.mxu0 0.0
    %2852 = vmatpush1.msra.mxu0 0.0
    %2853 = vmatprep.subr.mxu0 0.0
    %2854 = vmatpush1.msra.mxu0 0.0
    %2855 = vmatprep.subr.mxu0 0.0
    %2856 = vmatpush1.msra.mxu0 0.0
    %2857 = vmatprep.subr.mxu0 0.0
    %2858 = vmatpush1.msra.mxu0 0.0
    %2859 = vmatprep.subr.mxu0 0.0
    %2860 = vmatpush1.msra.mxu0 0.0
    %2861 = vmatprep.subr.mxu0 0.0
    %2862 = vmatpush1.msra.mxu0 0.0
    %2863 = vmatprep.subr.mxu0 0.0
    %2864 = vmatpush1.msra.mxu0 0.0
    %2865 = vmatprep.subr.mxu0 0.0
    %2866 = vmatpush1.msra.mxu0 0.0
    %2867 = vmatprep.subr.mxu0 0.0
    %2868 = vmatpush1.msra.mxu0 0.0
    %2869 = vmatprep.subr.mxu0 0.0
    %2870 = vmatpush1.msra.mxu0 0.0
    %2871 = vmatprep.subr.mxu0 0.0
    %2872 = vmatpush1.msra.mxu0 0.0
    %2873 = vmatprep.subr.mxu0 0.0
    %2874 = vmatpush1.msra.mxu0 0.0
    %2875 = vmatprep.subr.mxu0 0.0
    %2876 = vmatpush1.msra.mxu0 0.0
    %2877 = vmatprep.mubr.f32.mxu0 0.0
    %2878 = vmatmul.mubr.f32.gmra.mrb[0].mxu0 %v2808
    %v2879 = vpop.f32.mrb[0].mxu0
    %v2880 = vadd.f32 0.0, %v2879
    %v2881 = vpop.f32.mrb[0].mxu0
    %2882 = vmatprep.mubr.f32.mxu0 0.0
    %2883 = vmatmul.mubr.f32.gmra.mrb[0].mxu0 %v2811
    %v2884 = vpop.f32.mrb[0].mxu0
    %v2885 = vadd.f32 0.0, %v2884
    %v2886 = vpop.f32.mrb[0].mxu0
    %2887 = vdwg.mxu0
    %v2889 = vsel %vm418, %v2724, 0
    %v2892 = vsel %vm418, %v2729, 0
    %2894 = vmatprep.subr.mxu0 0.0
    %2895 = vmatpush1.msra.mxu0 %v292
    %2896 = vmatprep.subr.mxu0 0.0
    %2897 = vmatpush1.msra.mxu0 %v293
    %2898 = vmatprep.subr.mxu0 0.0
    %2899 = vmatpush1.msra.mxu0 0.0
    %2900 = vmatprep.subr.mxu0 0.0
    %2901 = vmatpush1.msra.mxu0 0.0
    %2902 = vmatprep.subr.mxu0 0.0
    %2903 = vmatpush1.msra.mxu0 0.0
    %2904 = vmatprep.subr.mxu0 0.0
    %2905 = vmatpush1.msra.mxu0 0.0
    %2906 = vmatprep.subr.mxu0 0.0
    %2907 = vmatpush1.msra.mxu0 0.0
    %2908 = vmatprep.subr.mxu0 0.0
    %2909 = vmatpush1.msra.mxu0 0.0
    %2910 = vmatprep.subr.mxu0 0.0
    %2911 = vmatpush1.msra.mxu0 0.0
    %2912 = vmatprep.subr.mxu0 0.0
    %2913 = vmatpush1.msra.mxu0 0.0
    %2914 = vmatprep.subr.mxu0 0.0
    %2915 = vmatpush1.msra.mxu0 0.0
    %2916 = vmatprep.subr.mxu0 0.0
    %2917 = vmatpush1.msra.mxu0 0.0
    %2918 = vmatprep.subr.mxu0 0.0
    %2919 = vmatpush1.msra.mxu0 0.0
    %2920 = vmatprep.subr.mxu0 0.0
    %2921 = vmatpush1.msra.mxu0 0.0
    %2922 = vmatprep.subr.mxu0 0.0
    %2923 = vmatpush1.msra.mxu0 0.0
    %2924 = vmatprep.subr.mxu0 0.0
    %2925 = vmatpush1.msra.mxu0 0.0
    %2926 = vmatprep.subr.mxu0 0.0
    %2927 = vmatpush1.msra.mxu0 0.0
    %2928 = vmatprep.subr.mxu0 0.0
    %2929 = vmatpush1.msra.mxu0 0.0
    %2930 = vmatprep.subr.mxu0 0.0
    %2931 = vmatpush1.msra.mxu0 0.0
    %2932 = vmatprep.subr.mxu0 0.0
    %2933 = vmatpush1.msra.mxu0 0.0
    %2934 = vmatprep.subr.mxu0 0.0
    %2935 = vmatpush1.msra.mxu0 0.0
    %2936 = vmatprep.subr.mxu0 0.0
    %2937 = vmatpush1.msra.mxu0 0.0
    %2938 = vmatprep.subr.mxu0 0.0
    %2939 = vmatpush1.msra.mxu0 0.0
    %2940 = vmatprep.subr.mxu0 0.0
    %2941 = vmatpush1.msra.mxu0 0.0
    %2942 = vmatprep.subr.mxu0 0.0
    %2943 = vmatpush1.msra.mxu0 0.0
    %2944 = vmatprep.subr.mxu0 0.0
    %2945 = vmatpush1.msra.mxu0 0.0
    %2946 = vmatprep.subr.mxu0 0.0
    %2947 = vmatpush1.msra.mxu0 0.0
    %2948 = vmatprep.subr.mxu0 0.0
    %2949 = vmatpush1.msra.mxu0 0.0
    %2950 = vmatprep.subr.mxu0 0.0
    %2951 = vmatpush1.msra.mxu0 0.0
    %2952 = vmatprep.subr.mxu0 0.0
    %2953 = vmatpush1.msra.mxu0 0.0
    %2954 = vmatprep.subr.mxu0 0.0
    %2955 = vmatpush1.msra.mxu0 0.0
    %2956 = vmatprep.subr.mxu0 0.0
    %2957 = vmatpush1.msra.mxu0 0.0
    %2958 = vmatprep.mubr.f32.mxu0 0.0
    %2959 = vmatmul.mubr.f32.gmra.mrb[0].mxu0 %v2889
    %v2960 = vpop.f32.mrb[0].mxu0
    %v2961 = vadd.f32 %v2880, %v2960
    %v2962 = vpop.f32.mrb[0].mxu0
    %2963 = vmatprep.mubr.f32.mxu0 0.0
    %2964 = vmatmul.mubr.f32.gmra.mrb[0].mxu0 %v2892
    %v2965 = vpop.f32.mrb[0].mxu0
    %v2966 = vadd.f32 %v2885, %v2965
    %v2967 = vpop.f32.mrb[0].mxu0
    %2968 = vdwg.mxu0
    %2969 = vst.msk [vmem:[#allocation2] sm:$0xff] %vm311, %v2961
    %2970 = vst.msk [vmem:[#allocation2 + $0x8] sm:$0xff] %vm311, %v2966
    %v2971 = vld [vmem:[%s2299] sm:$0xff]
    %v2972 = vld [vmem:[%s2299 + $0x8] sm:$0xff]
    %v2973 = vld [vmem:[%s2302] sm:$0x1]
    %v2975 = vlaneseq
    %v2976 = vshrl.u32 %v2975, 7
    %v2977 = vsub.s32 0, %v2976
    %v2978 = vrot.slane %v2973, %v2977
    %2980 = vmatprep.subr.mxu0 0.0
    %2981 = vmatpush1.msra.mxu0 %v2971
    %2982 = vmatprep.subr.mxu0 0.0
    %2983 = vmatpush1.msra.mxu0 %v2972
    %2984 = vmatprep.subr.mxu0 0.0
    %2985 = vmatpush1.msra.mxu0 0.0
    %2986 = vmatprep.subr.mxu0 0.0
    %2987 = vmatpush1.msra.mxu0 0.0
    %2988 = vmatprep.subr.mxu0 0.0
    %2989 = vmatpush1.msra.mxu0 0.0
    %2990 = vmatprep.subr.mxu0 0.0
    %2991 = vmatpush1.msra.mxu0 0.0
    %2992 = vmatprep.subr.mxu0 0.0
    %2993 = vmatpush1.msra.mxu0 0.0
    %2994 = vmatprep.subr.mxu0 0.0
    %2995 = vmatpush1.msra.mxu0 0.0
    %2996 = vmatprep.subr.mxu0 0.0
    %2997 = vmatpush1.msra.mxu0 0.0
    %2998 = vmatprep.subr.mxu0 0.0
    %2999 = vmatpush1.msra.mxu0 0.0
    %3000 = vmatprep.subr.mxu0 0.0
    %3001 = vmatpush1.msra.mxu0 0.0
    %3002 = vmatprep.subr.mxu0 0.0
    %3003 = vmatpush1.msra.mxu0 0.0
    %3004 = vmatprep.subr.mxu0 0.0
    %3005 = vmatpush1.msra.mxu0 0.0
    %3006 = vmatprep.subr.mxu0 0.0
    %3007 = vmatpush1.msra.mxu0 0.0
    %3008 = vmatprep.subr.mxu0 0.0
    %3009 = vmatpush1.msra.mxu0 0.0
    %3010 = vmatprep.subr.mxu0 0.0
    %3011 = vmatpush1.msra.mxu0 0.0
    %3012 = vmatprep.subr.mxu0 0.0
    %3013 = vmatpush1.msra.mxu0 0.0
    %3014 = vmatprep.subr.mxu0 0.0
    %3015 = vmatpush1.msra.mxu0 0.0
    %3016 = vmatprep.subr.mxu0 0.0
    %3017 = vmatpush1.msra.mxu0 0.0
    %3018 = vmatprep.subr.mxu0 0.0
    %3019 = vmatpush1.msra.mxu0 0.0
    %3020 = vmatprep.subr.mxu0 0.0
    %3021 = vmatpush1.msra.mxu0 0.0
    %3022 = vmatprep.subr.mxu0 0.0
    %3023 = vmatpush1.msra.mxu0 0.0
    %3024 = vmatprep.subr.mxu0 0.0
    %3025 = vmatpush1.msra.mxu0 0.0
    %3026 = vmatprep.subr.mxu0 0.0
    %3027 = vmatpush1.msra.mxu0 0.0
    %3028 = vmatprep.subr.mxu0 0.0
    %3029 = vmatpush1.msra.mxu0 0.0
    %3030 = vmatprep.subr.mxu0 0.0
    %3031 = vmatpush1.msra.mxu0 0.0
    %3032 = vmatprep.subr.mxu0 0.0
    %3033 = vmatpush1.msra.mxu0 0.0
    %3034 = vmatprep.subr.mxu0 0.0
    %3035 = vmatpush1.msra.mxu0 0.0
    %3036 = vmatprep.subr.mxu0 0.0
    %3037 = vmatpush1.msra.mxu0 0.0
    %3038 = vmatprep.subr.mxu0 0.0
    %3039 = vmatpush1.msra.mxu0 0.0
    %3040 = vmatprep.subr.mxu0 0.0
    %3041 = vmatpush1.msra.mxu0 0.0
    %3042 = vmatprep.subr.mxu0 0.0
    %3043 = vmatpush1.msra.mxu0 0.0
    %3044 = vmatprep.mubr.f32.mxu0 0.0
    %3045 = vmatmul.mubr.f32.gmra.mrb[0].mxu0 %v1105
    %v3046 = vpop.f32.mrb[0].mxu0
    %v3047 = vadd.f32 %v2978, %v3046
    %v3048 = vpop.f32.mrb[0].mxu0
    %3049 = vdwg.mxu0
    %v3050 = vld [vmem:[%s2380] sm:$0xff]
    %v3051 = vld [vmem:[%s2380 + $0x8] sm:$0xff]
    %v3052 = vld [vmem:[%s2383] sm:$0x1]
    %v3054 = vlaneseq
    %v3055 = vshrl.u32 %v3054, 7
    %v3056 = vsub.s32 0, %v3055
    %v3057 = vrot.slane %v3052, %v3056
    %3059 = vmatprep.subr.mxu0 0.0
    %3060 = vmatpush1.msra.mxu0 %v3050
    %3061 = vmatprep.subr.mxu0 0.0
    %3062 = vmatpush1.msra.mxu0 %v3051
    %3063 = vmatprep.subr.mxu0 0.0
    %3064 = vmatpush1.msra.mxu0 0.0
    %3065 = vmatprep.subr.mxu0 0.0
    %3066 = vmatpush1.msra.mxu0 0.0
    %3067 = vmatprep.subr.mxu0 0.0
    %3068 = vmatpush1.msra.mxu0 0.0
    %3069 = vmatprep.subr.mxu0 0.0
    %3070 = vmatpush1.msra.mxu0 0.0
    %3071 = vmatprep.subr.mxu0 0.0
    %3072 = vmatpush1.msra.mxu0 0.0
    %3073 = vmatprep.subr.mxu0 0.0
    %3074 = vmatpush1.msra.mxu0 0.0
    %3075 = vmatprep.subr.mxu0 0.0
    %3076 = vmatpush1.msra.mxu0 0.0
    %3077 = vmatprep.subr.mxu0 0.0
    %3078 = vmatpush1.msra.mxu0 0.0
    %3079 = vmatprep.subr.mxu0 0.0
    %3080 = vmatpush1.msra.mxu0 0.0
    %3081 = vmatprep.subr.mxu0 0.0
    %3082 = vmatpush1.msra.mxu0 0.0
    %3083 = vmatprep.subr.mxu0 0.0
    %3084 = vmatpush1.msra.mxu0 0.0
    %3085 = vmatprep.subr.mxu0 0.0
    %3086 = vmatpush1.msra.mxu0 0.0
    %3087 = vmatprep.subr.mxu0 0.0
    %3088 = vmatpush1.msra.mxu0 0.0
    %3089 = vmatprep.subr.mxu0 0.0
    %3090 = vmatpush1.msra.mxu0 0.0
    %3091 = vmatprep.subr.mxu0 0.0
    %3092 = vmatpush1.msra.mxu0 0.0
    %3093 = vmatprep.subr.mxu0 0.0
    %3094 = vmatpush1.msra.mxu0 0.0
    %3095 = vmatprep.subr.mxu0 0.0
    %3096 = vmatpush1.msra.mxu0 0.0
    %3097 = vmatprep.subr.mxu0 0.0
    %3098 = vmatpush1.msra.mxu0 0.0
    %3099 = vmatprep.subr.mxu0 0.0
    %3100 = vmatpush1.msra.mxu0 0.0
    %3101 = vmatprep.subr.mxu0 0.0
    %3102 = vmatpush1.msra.mxu0 0.0
    %3103 = vmatprep.subr.mxu0 0.0
    %3104 = vmatpush1.msra.mxu0 0.0
    %3105 = vmatprep.subr.mxu0 0.0
    %3106 = vmatpush1.msra.mxu0 0.0
    %3107 = vmatprep.subr.mxu0 0.0
    %3108 = vmatpush1.msra.mxu0 0.0
    %3109 = vmatprep.subr.mxu0 0.0
    %3110 = vmatpush1.msra.mxu0 0.0
    %3111 = vmatprep.subr.mxu0 0.0
    %3112 = vmatpush1.msra.mxu0 0.0
    %3113 = vmatprep.subr.mxu0 0.0
    %3114 = vmatpush1.msra.mxu0 0.0
    %3115 = vmatprep.subr.mxu0 0.0
    %3116 = vmatpush1.msra.mxu0 0.0
    %3117 = vmatprep.subr.mxu0 0.0
    %3118 = vmatpush1.msra.mxu0 0.0
    %3119 = vmatprep.subr.mxu0 0.0
    %3120 = vmatpush1.msra.mxu0 0.0
    %3121 = vmatprep.subr.mxu0 0.0
    %3122 = vmatpush1.msra.mxu0 0.0
    %3123 = vmatprep.mubr.f32.mxu0 0.0
    %3124 = vmatmul.mubr.f32.gmra.mrb[0].mxu0 %v1105
    %v3125 = vpop.f32.mrb[0].mxu0
    %v3126 = vadd.f32 %v3057, %v3125
    %v3127 = vpop.f32.mrb[0].mxu0
    %3128 = vdwg.mxu0
    %v3130 = vsel %vm311, %v2291, 0
    %v3133 = vsel %vm311, %v2296, 0
    %v3136 = vsel %vm311, %v3047, 0
    %3138 = vmatprep.subr.mxu0 0.0
    %3139 = vmatpush1.xpose.msra.mxu0 %v3136
    %3140 = vmatprep.subr.mxu0 0.0
    %3141 = vmatpush1.xpose.msra.mxu0 0.0
    %3142 = vmatprep.subr.mxu0 0.0
    %3143 = vmatpush1.xpose.msra.mxu0 0.0
    %3144 = vmatprep.subr.mxu0 0.0
    %3145 = vmatpush1.xpose.msra.mxu0 0.0
    %3146 = vmatprep.subr.mxu0 0.0
    %3147 = vmatpush1.xpose.msra.mxu0 0.0
    %3148 = vmatprep.subr.mxu0 0.0
    %3149 = vmatpush1.xpose.msra.mxu0 0.0
    %3150 = vmatprep.subr.mxu0 0.0
    %3151 = vmatpush1.xpose.msra.mxu0 0.0
    %3152 = vmatprep.subr.mxu0 0.0
    %3153 = vmatpush1.xpose.msra.mxu0 0.0
    %3154 = vmatprep.subr.mxu0 0.0
    %3155 = vmatpush1.xpose.msra.mxu0 0.0
    %3156 = vmatprep.subr.mxu0 0.0
    %3157 = vmatpush1.xpose.msra.mxu0 0.0
    %3158 = vmatprep.subr.mxu0 0.0
    %3159 = vmatpush1.xpose.msra.mxu0 0.0
    %3160 = vmatprep.subr.mxu0 0.0
    %3161 = vmatpush1.xpose.msra.mxu0 0.0
    %3162 = vmatprep.subr.mxu0 0.0
    %3163 = vmatpush1.xpose.msra.mxu0 0.0
    %3164 = vmatprep.subr.mxu0 0.0
    %3165 = vmatpush1.xpose.msra.mxu0 0.0
    %3166 = vmatprep.subr.mxu0 0.0
    %3167 = vmatpush1.xpose.msra.mxu0 0.0
    %3168 = vmatprep.subr.mxu0 0.0
    %3169 = vmatpush1.xpose.msra.mxu0 0.0
    %3170 = vmatprep.subr.mxu0 0.0
    %3171 = vmatpush1.xpose.msra.mxu0 0.0
    %3172 = vmatprep.subr.mxu0 0.0
    %3173 = vmatpush1.xpose.msra.mxu0 0.0
    %3174 = vmatprep.subr.mxu0 0.0
    %3175 = vmatpush1.xpose.msra.mxu0 0.0
    %3176 = vmatprep.subr.mxu0 0.0
    %3177 = vmatpush1.xpose.msra.mxu0 0.0
    %3178 = vmatprep.subr.mxu0 0.0
    %3179 = vmatpush1.xpose.msra.mxu0 0.0
    %3180 = vmatprep.subr.mxu0 0.0
    %3181 = vmatpush1.xpose.msra.mxu0 0.0
    %3182 = vmatprep.subr.mxu0 0.0
    %3183 = vmatpush1.xpose.msra.mxu0 0.0
    %3184 = vmatprep.subr.mxu0 0.0
    %3185 = vmatpush1.xpose.msra.mxu0 0.0
    %3186 = vmatprep.subr.mxu0 0.0
    %3187 = vmatpush1.xpose.msra.mxu0 0.0
    %3188 = vmatprep.subr.mxu0 0.0
    %3189 = vmatpush1.xpose.msra.mxu0 0.0
    %3190 = vmatprep.subr.mxu0 0.0
    %3191 = vmatpush1.xpose.msra.mxu0 0.0
    %3192 = vmatprep.subr.mxu0 0.0
    %3193 = vmatpush1.xpose.msra.mxu0 0.0
    %3194 = vmatprep.subr.mxu0 0.0
    %3195 = vmatpush1.xpose.msra.mxu0 0.0
    %3196 = vmatprep.subr.mxu0 0.0
    %3197 = vmatpush1.xpose.msra.mxu0 0.0
    %3198 = vmatprep.subr.mxu0 0.0
    %3199 = vmatpush1.xpose.msra.mxu0 0.0
    %3200 = vmatprep.subr.mxu0 0.0
    %3201 = vmatpush1.xpose.msra.mxu0 0.0
    %3202 = vmatprep.mubr.f32.mxu0 0.0
    %3203 = vmatmul.mubr.f32.gmra.mrb[0].mxu0 %v3130
    %v3204 = vpop.f32.mrb[0].mxu0
    %v3205 = vadd.f32 0.0, %v3204
    %v3206 = vpop.f32.mrb[0].mxu0
    %3207 = vmatprep.mubr.f32.mxu0 0.0
    %3208 = vmatmul.mubr.f32.gmra.mrb[0].mxu0 %v3133
    %v3209 = vpop.f32.mrb[0].mxu0
    %v3210 = vadd.f32 0.0, %v3209
    %v3211 = vpop.f32.mrb[0].mxu0
    %3212 = vdwg.mxu0
    %v3213 = vsel %vm655, %v3205, -inf
    %3214 = vmax.xlane.f32.xlu0 %v3213
    %v3215 = vpop.xlane.xlu0 %3214
    %v3216 = vsel %vm655, %v3210, -inf
    %3217 = vmax.xlane.f32.xlu0 %v3216
    %v3218 = vpop.xlane.xlu0 %3217
    %v3219 = vsub.f32 %v3205, %v3215
    %v3220 = vsub.f32 %v3210, %v3218
    %v3221 = vmul.f32 %v3219, 1.442695
    %v3222 = vpow.pop %v3221
    %v3223 = vmul.f32 %v3220, 1.442695
    %v3224 = vpow.pop %v3223
    %v3225 = vsel %vm655, %v3222, 0.0
    %3226 = vadd.xlane.f32.xlu0 %v3225
    %v3227 = vpop.xlane.xlu0 %3226
    %v3228 = vsel %vm655, %v3224, 0.0
    %3229 = vadd.xlane.f32.xlu0 %v3228
    %v3230 = vpop.xlane.xlu0 %3229
    %v3231 = vrcp.pop %v3227
    %v3232 = vrcp.pop %v3230
    %v3233 = vmul.f32 %v3222, %v3231
    %v3234 = vmul.f32 %v3224, %v3232
    %v3236 = vsel %vm655, %v3233, 0
    %v3239 = vsel %vm655, %v3234, 0
    %v3242 = vsel %vm684, %v3126, 0
    %3244 = vmatprep.subr.mxu0 0.0
    %3245 = vmatpush1.msra.mxu0 %v3242
    %3246 = vmatprep.subr.mxu0 0.0
    %3247 = vmatpush1.msra.mxu0 0.0
    %3248 = vmatprep.subr.mxu0 0.0
    %3249 = vmatpush1.msra.mxu0 0.0
    %3250 = vmatprep.subr.mxu0 0.0
    %3251 = vmatpush1.msra.mxu0 0.0
    %3252 = vmatprep.subr.mxu0 0.0
    %3253 = vmatpush1.msra.mxu0 0.0
    %3254 = vmatprep.subr.mxu0 0.0
    %3255 = vmatpush1.msra.mxu0 0.0
    %3256 = vmatprep.subr.mxu0 0.0
    %3257 = vmatpush1.msra.mxu0 0.0
    %3258 = vmatprep.subr.mxu0 0.0
    %3259 = vmatpush1.msra.mxu0 0.0
    %3260 = vmatprep.subr.mxu0 0.0
    %3261 = vmatpush1.msra.mxu0 0.0
    %3262 = vmatprep.subr.mxu0 0.0
    %3263 = vmatpush1.msra.mxu0 0.0
    %3264 = vmatprep.subr.mxu0 0.0
    %3265 = vmatpush1.msra.mxu0 0.0
    %3266 = vmatprep.subr.mxu0 0.0
    %3267 = vmatpush1.msra.mxu0 0.0
    %3268 = vmatprep.subr.mxu0 0.0
    %3269 = vmatpush1.msra.mxu0 0.0
    %3270 = vmatprep.subr.mxu0 0.0
    %3271 = vmatpush1.msra.mxu0 0.0
    %3272 = vmatprep.subr.mxu0 0.0
    %3273 = vmatpush1.msra.mxu0 0.0
    %3274 = vmatprep.subr.mxu0 0.0
    %3275 = vmatpush1.msra.mxu0 0.0
    %3276 = vmatprep.subr.mxu0 0.0
    %3277 = vmatpush1.msra.mxu0 0.0
    %3278 = vmatprep.subr.mxu0 0.0
    %3279 = vmatpush1.msra.mxu0 0.0
    %3280 = vmatprep.subr.mxu0 0.0
    %3281 = vmatpush1.msra.mxu0 0.0
    %3282 = vmatprep.subr.mxu0 0.0
    %3283 = vmatpush1.msra.mxu0 0.0
    %3284 = vmatprep.subr.mxu0 0.0
    %3285 = vmatpush1.msra.mxu0 0.0
    %3286 = vmatprep.subr.mxu0 0.0
    %3287 = vmatpush1.msra.mxu0 0.0
    %3288 = vmatprep.subr.mxu0 0.0
    %3289 = vmatpush1.msra.mxu0 0.0
    %3290 = vmatprep.subr.mxu0 0.0
    %3291 = vmatpush1.msra.mxu0 0.0
    %3292 = vmatprep.subr.mxu0 0.0
    %3293 = vmatpush1.msra.mxu0 0.0
    %3294 = vmatprep.subr.mxu0 0.0
    %3295 = vmatpush1.msra.mxu0 0.0
    %3296 = vmatprep.subr.mxu0 0.0
    %3297 = vmatpush1.msra.mxu0 0.0
    %3298 = vmatprep.subr.mxu0 0.0
    %3299 = vmatpush1.msra.mxu0 0.0
    %3300 = vmatprep.subr.mxu0 0.0
    %3301 = vmatpush1.msra.mxu0 0.0
    %3302 = vmatprep.subr.mxu0 0.0
    %3303 = vmatpush1.msra.mxu0 0.0
    %3304 = vmatprep.subr.mxu0 0.0
    %3305 = vmatpush1.msra.mxu0 0.0
    %3306 = vmatprep.subr.mxu0 0.0
    %3307 = vmatpush1.msra.mxu0 0.0
    %3308 = vmatprep.mubr.f32.mxu0 0.0
    %3309 = vmatmul.mubr.f32.gmra.mrb[0].mxu0 %v3236
    %v3310 = vpop.f32.mrb[0].mxu0
    %v3311 = vadd.f32 0.0, %v3310
    %v3312 = vpop.f32.mrb[0].mxu0
    %3313 = vmatprep.mubr.f32.mxu0 0.0
    %3314 = vmatmul.mubr.f32.gmra.mrb[0].mxu0 %v3239
    %v3315 = vpop.f32.mrb[0].mxu0
    %v3316 = vadd.f32 0.0, %v3315
    %v3317 = vpop.f32.mrb[0].mxu0
    %3318 = vdwg.mxu0
    %v3320 = vsel %vm311, %v3311, 0
    %v3323 = vsel %vm311, %v3316, 0
    %3325 = vmatprep.subr.mxu0 0.0
    %3326 = vmatpush1.xpose.msra.mxu0 %v3320
    %3327 = vmatprep.subr.mxu0 0.0
    %3328 = vmatpush1.xpose.msra.mxu0 %v3323
    %3329 = vmatprep.subr.mxu0 0.0
    %3330 = vmatpush1.xpose.msra.mxu0 0.0
    %3331 = vmatprep.subr.mxu0 0.0
    %3332 = vmatpush1.xpose.msra.mxu0 0.0
    %3333 = vmatprep.subr.mxu0 0.0
    %3334 = vmatpush1.xpose.msra.mxu0 0.0
    %3335 = vmatprep.subr.mxu0 0.0
    %3336 = vmatpush1.xpose.msra.mxu0 0.0
    %3337 = vmatprep.subr.mxu0 0.0
    %3338 = vmatpush1.xpose.msra.mxu0 0.0
    %3339 = vmatprep.subr.mxu0 0.0
    %3340 = vmatpush1.xpose.msra.mxu0 0.0
    %3341 = vmatprep.subr.mxu0 0.0
    %3342 = vmatpush1.xpose.msra.mxu0 0.0
    %3343 = vmatprep.subr.mxu0 0.0
    %3344 = vmatpush1.xpose.msra.mxu0 0.0
    %3345 = vmatprep.subr.mxu0 0.0
    %3346 = vmatpush1.xpose.msra.mxu0 0.0
    %3347 = vmatprep.subr.mxu0 0.0
    %3348 = vmatpush1.xpose.msra.mxu0 0.0
    %3349 = vmatprep.subr.mxu0 0.0
    %3350 = vmatpush1.xpose.msra.mxu0 0.0
    %3351 = vmatprep.subr.mxu0 0.0
    %3352 = vmatpush1.xpose.msra.mxu0 0.0
    %3353 = vmatprep.subr.mxu0 0.0
    %3354 = vmatpush1.xpose.msra.mxu0 0.0
    %3355 = vmatprep.subr.mxu0 0.0
    %3356 = vmatpush1.xpose.msra.mxu0 0.0
    %3357 = vmatprep.subr.mxu0 0.0
    %3358 = vmatpush1.xpose.msra.mxu0 0.0
    %3359 = vmatprep.subr.mxu0 0.0
    %3360 = vmatpush1.xpose.msra.mxu0 0.0
    %3361 = vmatprep.subr.mxu0 0.0
    %3362 = vmatpush1.xpose.msra.mxu0 0.0
    %3363 = vmatprep.subr.mxu0 0.0
    %3364 = vmatpush1.xpose.msra.mxu0 0.0
    %3365 = vmatprep.subr.mxu0 0.0
    %3366 = vmatpush1.xpose.msra.mxu0 0.0
    %3367 = vmatprep.subr.mxu0 0.0
    %3368 = vmatpush1.xpose.msra.mxu0 0.0
    %3369 = vmatprep.subr.mxu0 0.0
    %3370 = vmatpush1.xpose.msra.mxu0 0.0
    %3371 = vmatprep.subr.mxu0 0.0
    %3372 = vmatpush1.xpose.msra.mxu0 0.0
    %3373 = vmatprep.subr.mxu0 0.0
    %3374 = vmatpush1.xpose.msra.mxu0 0.0
    %3375 = vmatprep.subr.mxu0 0.0
    %3376 = vmatpush1.xpose.msra.mxu0 0.0
    %3377 = vmatprep.subr.mxu0 0.0
    %3378 = vmatpush1.xpose.msra.mxu0 0.0
    %3379 = vmatprep.subr.mxu0 0.0
    %3380 = vmatpush1.xpose.msra.mxu0 0.0
    %3381 = vmatprep.subr.mxu0 0.0
    %3382 = vmatpush1.xpose.msra.mxu0 0.0
    %3383 = vmatprep.subr.mxu0 0.0
    %3384 = vmatpush1.xpose.msra.mxu0 0.0
    %3385 = vmatprep.subr.mxu0 0.0
    %3386 = vmatpush1.xpose.msra.mxu0 0.0
    %3387 = vmatprep.subr.mxu0 0.0
    %3388 = vmatpush1.xpose.msra.mxu0 0.0
    %3389 = vmatprep.mubr.f32.mxu0 0.0
    %3390 = vmatmul.mubr.f32.gmra.mrb[0].mxu0 %v764
    %v3391 = vpop.f32.mrb[0].mxu0
    %v3392 = vadd.f32 0.0, %v3391
    %v3393 = vpop.f32.mrb[0].mxu0
    %3394 = vmatprep.mubr.f32.mxu0 0.0
    %3395 = vmatmul.mubr.f32.gmra.mrb[0].mxu0 %v767
    %v3396 = vpop.f32.mrb[0].mxu0
    %v3397 = vadd.f32 0.0, %v3396
    %v3398 = vpop.f32.mrb[0].mxu0
    %3399 = vdwg.mxu0
    %3400 = vmatprep.subr.mxu0 0.0
    %3401 = vmatpush1.xpose.msra.mxu0 %v3320
    %3402 = vmatprep.subr.mxu0 0.0
    %3403 = vmatpush1.xpose.msra.mxu0 %v3323
    %3404 = vmatprep.subr.mxu0 0.0
    %3405 = vmatpush1.xpose.msra.mxu0 0.0
    %3406 = vmatprep.subr.mxu0 0.0
    %3407 = vmatpush1.xpose.msra.mxu0 0.0
    %3408 = vmatprep.subr.mxu0 0.0
    %3409 = vmatpush1.xpose.msra.mxu0 0.0
    %3410 = vmatprep.subr.mxu0 0.0
    %3411 = vmatpush1.xpose.msra.mxu0 0.0
    %3412 = vmatprep.subr.mxu0 0.0
    %3413 = vmatpush1.xpose.msra.mxu0 0.0
    %3414 = vmatprep.subr.mxu0 0.0
    %3415 = vmatpush1.xpose.msra.mxu0 0.0
    %3416 = vmatprep.subr.mxu0 0.0
    %3417 = vmatpush1.xpose.msra.mxu0 0.0
    %3418 = vmatprep.subr.mxu0 0.0
    %3419 = vmatpush1.xpose.msra.mxu0 0.0
    %3420 = vmatprep.subr.mxu0 0.0
    %3421 = vmatpush1.xpose.msra.mxu0 0.0
    %3422 = vmatprep.subr.mxu0 0.0
    %3423 = vmatpush1.xpose.msra.mxu0 0.0
    %3424 = vmatprep.subr.mxu0 0.0
    %3425 = vmatpush1.xpose.msra.mxu0 0.0
    %3426 = vmatprep.subr.mxu0 0.0
    %3427 = vmatpush1.xpose.msra.mxu0 0.0
    %3428 = vmatprep.subr.mxu0 0.0
    %3429 = vmatpush1.xpose.msra.mxu0 0.0
    %3430 = vmatprep.subr.mxu0 0.0
    %3431 = vmatpush1.xpose.msra.mxu0 0.0
    %3432 = vmatprep.subr.mxu0 0.0
    %3433 = vmatpush1.xpose.msra.mxu0 0.0
    %3434 = vmatprep.subr.mxu0 0.0
    %3435 = vmatpush1.xpose.msra.mxu0 0.0
    %3436 = vmatprep.subr.mxu0 0.0
    %3437 = vmatpush1.xpose.msra.mxu0 0.0
    %3438 = vmatprep.subr.mxu0 0.0
    %3439 = vmatpush1.xpose.msra.mxu0 0.0
    %3440 = vmatprep.subr.mxu0 0.0
    %3441 = vmatpush1.xpose.msra.mxu0 0.0
    %3442 = vmatprep.subr.mxu0 0.0
    %3443 = vmatpush1.xpose.msra.mxu0 0.0
    %3444 = vmatprep.subr.mxu0 0.0
    %3445 = vmatpush1.xpose.msra.mxu0 0.0
    %3446 = vmatprep.subr.mxu0 0.0
    %3447 = vmatpush1.xpose.msra.mxu0 0.0
    %3448 = vmatprep.subr.mxu0 0.0
    %3449 = vmatpush1.xpose.msra.mxu0 0.0
    %3450 = vmatprep.subr.mxu0 0.0
    %3451 = vmatpush1.xpose.msra.mxu0 0.0
    %3452 = vmatprep.subr.mxu0 0.0
    %3453 = vmatpush1.xpose.msra.mxu0 0.0
    %3454 = vmatprep.subr.mxu0 0.0
    %3455 = vmatpush1.xpose.msra.mxu0 0.0
    %3456 = vmatprep.subr.mxu0 0.0
    %3457 = vmatpush1.xpose.msra.mxu0 0.0
    %3458 = vmatprep.subr.mxu0 0.0
    %3459 = vmatpush1.xpose.msra.mxu0 0.0
    %3460 = vmatprep.subr.mxu0 0.0
    %3461 = vmatpush1.xpose.msra.mxu0 0.0
    %3462 = vmatprep.subr.mxu0 0.0
    %3463 = vmatpush1.xpose.msra.mxu0 0.0
    %3464 = vmatprep.mubr.f32.mxu0 0.0
    %3465 = vmatmul.mubr.f32.gmra.mrb[0].mxu0 %v851
    %v3466 = vpop.f32.mrb[0].mxu0
    %v3467 = vadd.f32 0.0, %v3466
    %v3468 = vpop.f32.mrb[0].mxu0
    %3469 = vmatprep.mubr.f32.mxu0 0.0
    %3470 = vmatmul.mubr.f32.gmra.mrb[0].mxu0 %v854
    %v3471 = vpop.f32.mrb[0].mxu0
    %v3472 = vadd.f32 0.0, %v3471
    %v3473 = vpop.f32.mrb[0].mxu0
    %3474 = vdwg.mxu0
    %v3476 = vsel %vm418, %v3467, 0
    %v3479 = vsel %vm418, %v3472, 0
    %3481 = vmatprep.subr.mxu0 0.0
    %3482 = vmatpush1.msra.mxu0 %v298
    %3483 = vmatprep.subr.mxu0 0.0
    %3484 = vmatpush1.msra.mxu0 %v299
    %3485 = vmatprep.subr.mxu0 0.0
    %3486 = vmatpush1.msra.mxu0 0.0
    %3487 = vmatprep.subr.mxu0 0.0
    %3488 = vmatpush1.msra.mxu0 0.0
    %3489 = vmatprep.subr.mxu0 0.0
    %3490 = vmatpush1.msra.mxu0 0.0
    %3491 = vmatprep.subr.mxu0 0.0
    %3492 = vmatpush1.msra.mxu0 0.0
    %3493 = vmatprep.subr.mxu0 0.0
    %3494 = vmatpush1.msra.mxu0 0.0
    %3495 = vmatprep.subr.mxu0 0.0
    %3496 = vmatpush1.msra.mxu0 0.0
    %3497 = vmatprep.subr.mxu0 0.0
    %3498 = vmatpush1.msra.mxu0 0.0
    %3499 = vmatprep.subr.mxu0 0.0
    %3500 = vmatpush1.msra.mxu0 0.0
    %3501 = vmatprep.subr.mxu0 0.0
    %3502 = vmatpush1.msra.mxu0 0.0
    %3503 = vmatprep.subr.mxu0 0.0
    %3504 = vmatpush1.msra.mxu0 0.0
    %3505 = vmatprep.subr.mxu0 0.0
    %3506 = vmatpush1.msra.mxu0 0.0
    %3507 = vmatprep.subr.mxu0 0.0
    %3508 = vmatpush1.msra.mxu0 0.0
    %3509 = vmatprep.subr.mxu0 0.0
    %3510 = vmatpush1.msra.mxu0 0.0
    %3511 = vmatprep.subr.mxu0 0.0
    %3512 = vmatpush1.msra.mxu0 0.0
    %3513 = vmatprep.subr.mxu0 0.0
    %3514 = vmatpush1.msra.mxu0 0.0
    %3515 = vmatprep.subr.mxu0 0.0
    %3516 = vmatpush1.msra.mxu0 0.0
    %3517 = vmatprep.subr.mxu0 0.0
    %3518 = vmatpush1.msra.mxu0 0.0
    %3519 = vmatprep.subr.mxu0 0.0
    %3520 = vmatpush1.msra.mxu0 0.0
    %3521 = vmatprep.subr.mxu0 0.0
    %3522 = vmatpush1.msra.mxu0 0.0
    %3523 = vmatprep.subr.mxu0 0.0
    %3524 = vmatpush1.msra.mxu0 0.0
    %3525 = vmatprep.subr.mxu0 0.0
    %3526 = vmatpush1.msra.mxu0 0.0
    %3527 = vmatprep.subr.mxu0 0.0
    %3528 = vmatpush1.msra.mxu0 0.0
    %3529 = vmatprep.subr.mxu0 0.0
    %3530 = vmatpush1.msra.mxu0 0.0
    %3531 = vmatprep.subr.mxu0 0.0
    %3532 = vmatpush1.msra.mxu0 0.0
    %3533 = vmatprep.subr.mxu0 0.0
    %3534 = vmatpush1.msra.mxu0 0.0
    %3535 = vmatprep.subr.mxu0 0.0
    %3536 = vmatpush1.msra.mxu0 0.0
    %3537 = vmatprep.subr.mxu0 0.0
    %3538 = vmatpush1.msra.mxu0 0.0
    %3539 = vmatprep.subr.mxu0 0.0
    %3540 = vmatpush1.msra.mxu0 0.0
    %3541 = vmatprep.subr.mxu0 0.0
    %3542 = vmatpush1.msra.mxu0 0.0
    %3543 = vmatprep.subr.mxu0 0.0
    %3544 = vmatpush1.msra.mxu0 0.0
    %3545 = vmatprep.mubr.f32.mxu0 0.0
    %3546 = vmatmul.mubr.f32.gmra.mrb[0].mxu0 %v3476
    %v3547 = vpop.f32.mrb[0].mxu0
    %v3548 = vadd.f32 0.0, %v3547
    %v3549 = vpop.f32.mrb[0].mxu0
    %3550 = vmatprep.mubr.f32.mxu0 0.0
    %3551 = vmatmul.mubr.f32.gmra.mrb[0].mxu0 %v3479
    %v3552 = vpop.f32.mrb[0].mxu0
    %v3553 = vadd.f32 0.0, %v3552
    %v3554 = vpop.f32.mrb[0].mxu0
    %3555 = vdwg.mxu0
    %v3557 = vsel %vm418, %v3392, 0
    %v3560 = vsel %vm418, %v3397, 0
    %3562 = vmatprep.subr.mxu0 0.0
    %3563 = vmatpush1.msra.mxu0 %v292
    %3564 = vmatprep.subr.mxu0 0.0
    %3565 = vmatpush1.msra.mxu0 %v293
    %3566 = vmatprep.subr.mxu0 0.0
    %3567 = vmatpush1.msra.mxu0 0.0
    %3568 = vmatprep.subr.mxu0 0.0
    %3569 = vmatpush1.msra.mxu0 0.0
    %3570 = vmatprep.subr.mxu0 0.0
    %3571 = vmatpush1.msra.mxu0 0.0
    %3572 = vmatprep.subr.mxu0 0.0
    %3573 = vmatpush1.msra.mxu0 0.0
    %3574 = vmatprep.subr.mxu0 0.0
    %3575 = vmatpush1.msra.mxu0 0.0
    %3576 = vmatprep.subr.mxu0 0.0
    %3577 = vmatpush1.msra.mxu0 0.0
    %3578 = vmatprep.subr.mxu0 0.0
    %3579 = vmatpush1.msra.mxu0 0.0
    %3580 = vmatprep.subr.mxu0 0.0
    %3581 = vmatpush1.msra.mxu0 0.0
    %3582 = vmatprep.subr.mxu0 0.0
    %3583 = vmatpush1.msra.mxu0 0.0
    %3584 = vmatprep.subr.mxu0 0.0
    %3585 = vmatpush1.msra.mxu0 0.0
    %3586 = vmatprep.subr.mxu0 0.0
    %3587 = vmatpush1.msra.mxu0 0.0
    %3588 = vmatprep.subr.mxu0 0.0
    %3589 = vmatpush1.msra.mxu0 0.0
    %3590 = vmatprep.subr.mxu0 0.0
    %3591 = vmatpush1.msra.mxu0 0.0
    %3592 = vmatprep.subr.mxu0 0.0
    %3593 = vmatpush1.msra.mxu0 0.0
    %3594 = vmatprep.subr.mxu0 0.0
    %3595 = vmatpush1.msra.mxu0 0.0
    %3596 = vmatprep.subr.mxu0 0.0
    %3597 = vmatpush1.msra.mxu0 0.0
    %3598 = vmatprep.subr.mxu0 0.0
    %3599 = vmatpush1.msra.mxu0 0.0
    %3600 = vmatprep.subr.mxu0 0.0
    %3601 = vmatpush1.msra.mxu0 0.0
    %3602 = vmatprep.subr.mxu0 0.0
    %3603 = vmatpush1.msra.mxu0 0.0
    %3604 = vmatprep.subr.mxu0 0.0
    %3605 = vmatpush1.msra.mxu0 0.0
    %3606 = vmatprep.subr.mxu0 0.0
    %3607 = vmatpush1.msra.mxu0 0.0
    %3608 = vmatprep.subr.mxu0 0.0
    %3609 = vmatpush1.msra.mxu0 0.0
    %3610 = vmatprep.subr.mxu0 0.0
    %3611 = vmatpush1.msra.mxu0 0.0
    %3612 = vmatprep.subr.mxu0 0.0
    %3613 = vmatpush1.msra.mxu0 0.0
    %3614 = vmatprep.subr.mxu0 0.0
    %3615 = vmatpush1.msra.mxu0 0.0
    %3616 = vmatprep.subr.mxu0 0.0
    %3617 = vmatpush1.msra.mxu0 0.0
    %3618 = vmatprep.subr.mxu0 0.0
    %3619 = vmatpush1.msra.mxu0 0.0
    %3620 = vmatprep.subr.mxu0 0.0
    %3621 = vmatpush1.msra.mxu0 0.0
    %3622 = vmatprep.subr.mxu0 0.0
    %3623 = vmatpush1.msra.mxu0 0.0
    %3624 = vmatprep.subr.mxu0 0.0
    %3625 = vmatpush1.msra.mxu0 0.0
    %3626 = vmatprep.mubr.f32.mxu0 0.0
    %3627 = vmatmul.mubr.f32.gmra.mrb[0].mxu0 %v3557
    %v3628 = vpop.f32.mrb[0].mxu0
    %v3629 = vadd.f32 %v3548, %v3628
    %v3630 = vpop.f32.mrb[0].mxu0
    %3631 = vmatprep.mubr.f32.mxu0 0.0
    %3632 = vmatmul.mubr.f32.gmra.mrb[0].mxu0 %v3560
    %v3633 = vpop.f32.mrb[0].mxu0
    %v3634 = vadd.f32 %v3553, %v3633
    %v3635 = vpop.f32.mrb[0].mxu0
    %3636 = vdwg.mxu0
    %3637 = vst.msk [vmem:[#allocation2 + $0x10] sm:$0xff] %vm311, %v3629
    %3638 = vst.msk [vmem:[#allocation2 + $0x18] sm:$0xff] %vm311, %v3634
    %v3639 = vld [vmem:[#allocation2] sm:$0xff]
    %v3640 = vld [vmem:[#allocation2 + $0x8] sm:$0xff]
    %v3641 = vld [vmem:[#allocation2 + $0x10] sm:$0xff]
    %v3642 = vld [vmem:[#allocation2 + $0x18] sm:$0xff]
    %s3643 = scalar_lea.vmem [#allocation17], 32
    %v3644 = vld [vmem:[%s3643] sm:$0xff]
    %v3645 = vld [vmem:[%s3643 + $0x8] sm:$0xff]
    %v3646 = vld [vmem:[%s3643 + $0x10] sm:$0xff]
    %v3647 = vld [vmem:[%s3643 + $0x18] sm:$0xff]
    %s3648 = scalar_lea.vmem [#allocation18], 1
    %v3649 = vld [vmem:[%s3648] sm:$0x1]
    %v3651 = vlaneseq
    %v3652 = vshrl.u32 %v3651, 7
    %v3653 = vsub.s32 0, %v3652
    %v3654 = vrot.slane %v3649, %v3653
    %v3657 = vsel %vm311, %v3639, 0
    %v3660 = vsel %vm311, %v3640, 0
    %v3663 = vsel %vm311, %v3641, 0
    %v3666 = vsel %vm311, %v3642, 0
    %3668 = vmatprep.subr.mxu0 0.0
    %3669 = vmatpush1.msra.mxu0 %v3644
    %3670 = vmatprep.subr.mxu0 0.0
    %3671 = vmatpush1.msra.mxu0 %v3645
    %3672 = vmatprep.subr.mxu0 0.0
    %3673 = vmatpush1.msra.mxu0 %v3646
    %3674 = vmatprep.subr.mxu0 0.0
    %3675 = vmatpush1.msra.mxu0 %v3647
    %3676 = vmatprep.subr.mxu0 0.0
    %3677 = vmatpush1.msra.mxu0 0.0
    %3678 = vmatprep.subr.mxu0 0.0
    %3679 = vmatpush1.msra.mxu0 0.0
    %3680 = vmatprep.subr.mxu0 0.0
    %3681 = vmatpush1.msra.mxu0 0.0
    %3682 = vmatprep.subr.mxu0 0.0
    %3683 = vmatpush1.msra.mxu0 0.0
    %3684 = vmatprep.subr.mxu0 0.0
    %3685 = vmatpush1.msra.mxu0 0.0
    %3686 = vmatprep.subr.mxu0 0.0
    %3687 = vmatpush1.msra.mxu0 0.0
    %3688 = vmatprep.subr.mxu0 0.0
    %3689 = vmatpush1.msra.mxu0 0.0
    %3690 = vmatprep.subr.mxu0 0.0
    %3691 = vmatpush1.msra.mxu0 0.0
    %3692 = vmatprep.subr.mxu0 0.0
    %3693 = vmatpush1.msra.mxu0 0.0
    %3694 = vmatprep.subr.mxu0 0.0
    %3695 = vmatpush1.msra.mxu0 0.0
    %3696 = vmatprep.subr.mxu0 0.0
    %3697 = vmatpush1.msra.mxu0 0.0
    %3698 = vmatprep.subr.mxu0 0.0
    %3699 = vmatpush1.msra.mxu0 0.0
    %3700 = vmatprep.subr.mxu0 0.0
    %3701 = vmatpush1.msra.mxu0 0.0
    %3702 = vmatprep.subr.mxu0 0.0
    %3703 = vmatpush1.msra.mxu0 0.0
    %3704 = vmatprep.subr.mxu0 0.0
    %3705 = vmatpush1.msra.mxu0 0.0
    %3706 = vmatprep.subr.mxu0 0.0
    %3707 = vmatpush1.msra.mxu0 0.0
    %3708 = vmatprep.subr.mxu0 0.0
    %3709 = vmatpush1.msra.mxu0 0.0
    %3710 = vmatprep.subr.mxu0 0.0
    %3711 = vmatpush1.msra.mxu0 0.0
    %3712 = vmatprep.subr.mxu0 0.0
    %3713 = vmatpush1.msra.mxu0 0.0
    %3714 = vmatprep.subr.mxu0 0.0
    %3715 = vmatpush1.msra.mxu0 0.0
    %3716 = vmatprep.subr.mxu0 0.0
    %3717 = vmatpush1.msra.mxu0 0.0
    %3718 = vmatprep.subr.mxu0 0.0
    %3719 = vmatpush1.msra.mxu0 0.0
    %3720 = vmatprep.subr.mxu0 0.0
    %3721 = vmatpush1.msra.mxu0 0.0
    %3722 = vmatprep.subr.mxu0 0.0
    %3723 = vmatpush1.msra.mxu0 0.0
    %3724 = vmatprep.subr.mxu0 0.0
    %3725 = vmatpush1.msra.mxu0 0.0
    %3726 = vmatprep.subr.mxu0 0.0
    %3727 = vmatpush1.msra.mxu0 0.0
    %3728 = vmatprep.subr.mxu0 0.0
    %3729 = vmatpush1.msra.mxu0 0.0
    %3730 = vmatprep.subr.mxu0 0.0
    %3731 = vmatpush1.msra.mxu0 0.0
    %3732 = vmatprep.mubr.f32.mxu0 0.0
    %3733 = vmatmul.mubr.f32.gmra.mrb[0].mxu0 %v3657
    %v3734 = vpop.f32.mrb[0].mxu0
    %v3735 = vadd.f32 %v3654, %v3734
    %v3736 = vpop.f32.mrb[0].mxu0
    %3737 = vmatprep.mubr.f32.mxu0 0.0
    %3738 = vmatmul.mubr.f32.gmra.mrb[0].mxu0 %v3660
    %v3739 = vpop.f32.mrb[0].mxu0
    %v3740 = vadd.f32 %v3654, %v3739
    %v3741 = vpop.f32.mrb[0].mxu0
    %3742 = vmatprep.mubr.f32.mxu0 0.0
    %3743 = vmatmul.mubr.f32.gmra.mrb[0].mxu0 %v3663
    %v3744 = vpop.f32.mrb[0].mxu0
    %v3745 = vadd.f32 %v3654, %v3744
    %v3746 = vpop.f32.mrb[0].mxu0
    %3747 = vmatprep.mubr.f32.mxu0 0.0
    %3748 = vmatmul.mubr.f32.gmra.mrb[0].mxu0 %v3666
    %v3749 = vpop.f32.mrb[0].mxu0
    %v3750 = vadd.f32 %v3654, %v3749
    %v3751 = vpop.f32.mrb[0].mxu0
    %3752 = vdwg.mxu0
    %v3753 = vadd.f32 %v2171, %v3735
    %v3754 = vadd.f32 %v2176, %v3740
    %v3755 = vadd.f32 %v2181, %v3745
    %v3756 = vadd.f32 %v2186, %v3750
    %v3757 = vsel %vm311, %v3753, 0.0
    %v3758 = vsel %vm311, %v3754, 0.0
    %v3759 = vadd.f32 %v3757, %v3758
    %v3760 = vsel %vm311, %v3755, 0.0
    %v3761 = vadd.f32 %v3759, %v3760
    %v3762 = vsel %vm311, %v3756, 0.0
    %v3763 = vadd.f32 %v3761, %v3762
    %v3764 = vrot.slane %v3763, 4
    %v3765 = vadd.f32 %v3763, %v3764
    %v3766 = vrot.slane %v3765, 2
    %v3767 = vadd.f32 %v3765, %v3766
    %v3768 = vrot.slane %v3767, 1
    %v3769 = vadd.f32 %v3767, %v3768
    %v3770 = vmul.f32 %v3769, %v1895
    %v3771 = vsub.f32 %v3753, %v3770
    %v3772 = vsub.f32 %v3754, %v3770
    %v3773 = vsub.f32 %v3755, %v3770
    %v3774 = vsub.f32 %v3756, %v3770
    %v3775 = vmul.f32 %v3771, %v3771
    %v3776 = vmul.f32 %v3772, %v3772
    %v3777 = vmul.f32 %v3773, %v3773
    %v3778 = vmul.f32 %v3774, %v3774
    %v3779 = vsel %vm311, %v3775, 0.0
    %v3780 = vsel %vm311, %v3776, 0.0
    %v3781 = vadd.f32 %v3779, %v3780
    %v3782 = vsel %vm311, %v3777, 0.0
    %v3783 = vadd.f32 %v3781, %v3782
    %v3784 = vsel %vm311, %v3778, 0.0
    %v3785 = vadd.f32 %v3783, %v3784
    %v3786 = vrot.slane %v3785, 4
    %v3787 = vadd.f32 %v3785, %v3786
    %v3788 = vrot.slane %v3787, 2
    %v3789 = vadd.f32 %v3787, %v3788
    %v3790 = vrot.slane %v3789, 1
    %v3791 = vadd.f32 %v3789, %v3790
    %v3792 = vmul.f32 %v3791, %v1895
    %v3793 = vadd.f32 %v3792, 1e-05
    %v3794 = vrsqrt.pop %v3793
    %v3795 = vmul.f32 %v3771, %v3794
    %v3796 = vmul.f32 %v3772, %v3794
    %v3797 = vmul.f32 %v3773, %v3794
    %v3798 = vmul.f32 %v3774, %v3794
    %s3799 = scalar_lea.vmem [#allocation20], 1
    %v3800 = vld [vmem:[%s3799] sm:$0x1]
    %v3802 = vlaneseq
    %v3803 = vshrl.u32 %v3802, 7
    %v3804 = vsub.s32 0, %v3803
    %v3805 = vrot.slane %v3800, %v3804
    %v3807 = vmul.f32 %v3795, %v3805
    %v3808 = vmul.f32 %v3796, %v3805
    %v3809 = vmul.f32 %v3797, %v3805
    %v3810 = vmul.f32 %v3798, %v3805
    %s3811 = scalar_lea.vmem [#allocation21], 1
    %v3812 = vld [vmem:[%s3811] sm:$0x1]
    %v3814 = vlaneseq
    %v3815 = vshrl.u32 %v3814, 7
    %v3816 = vsub.s32 0, %v3815
    %v3817 = vrot.slane %v3812, %v3816
    %v3819 = vadd.f32 %v3807, %v3817
    %v3820 = vadd.f32 %v3808, %v3817
    %v3821 = vadd.f32 %v3809, %v3817
    %v3822 = vadd.f32 %v3810, %v3817
    %s3823 = scalar_lea.vmem [#allocation23], 1
    %v3824 = vld [vmem:[%s3823] sm:$0x1]
    %v3826 = vlaneseq
    %v3827 = vshrl.u32 %v3826, 7
    %v3828 = vsub.s32 0, %v3827
    %v3829 = vrot.slane %v3824, %v3828
    %v3831 = vmul.f32 %v3829, %v3819
    %v3832 = vmul.f32 %v3829, %v3820
    %v3833 = vmul.f32 %v3829, %v3821
    %v3834 = vmul.f32 %v3829, %v3822
    %s3835 = scalar_lea.vmem [#allocation24], 1
    %v3836 = vld [vmem:[%s3835] sm:$0x1]
    %v3838 = vlaneseq
    %v3839 = vshrl.u32 %v3838, 7
    %v3840 = vsub.s32 0, %v3839
    %v3841 = vrot.slane %v3836, %v3840
    %v3843 = vadd.f32 %v3831, %v3841
    %v3844 = vadd.f32 %v3832, %v3841
    %v3845 = vadd.f32 %v3833, %v3841
    %v3846 = vadd.f32 %v3834, %v3841
    %s3847 = scalar_lea.vmem [#allocation26], 32
    %v3848 = vld [vmem:[%s3847] sm:$0xff]
    %v3849 = vld [vmem:[%s3847 + $0x8] sm:$0xff]
    %v3850 = vld [vmem:[%s3847 + $0x10] sm:$0xff]
    %v3851 = vld [vmem:[%s3847 + $0x18] sm:$0xff]
    %s3852 = scalar_lea.vmem [#allocation27], 1
    %v3853 = vld [vmem:[%s3852] sm:$0x1]
    %v3855 = vlaneseq
    %v3856 = vshrl.u32 %v3855, 7
    %v3857 = vsub.s32 0, %v3856
    %v3858 = vrot.slane %v3853, %v3857
    %v3861 = vsel %vm311, %v3843, 0
    %v3864 = vsel %vm311, %v3844, 0
    %v3867 = vsel %vm311, %v3845, 0
    %v3870 = vsel %vm311, %v3846, 0
    %3872 = vmatprep.subr.mxu0 0.0
    %3873 = vmatpush1.msra.mxu0 %v3848
    %3874 = vmatprep.subr.mxu0 0.0
    %3875 = vmatpush1.msra.mxu0 %v3849
    %3876 = vmatprep.subr.mxu0 0.0
    %3877 = vmatpush1.msra.mxu0 %v3850
    %3878 = vmatprep.subr.mxu0 0.0
    %3879 = vmatpush1.msra.mxu0 %v3851
    %3880 = vmatprep.subr.mxu0 0.0
    %3881 = vmatpush1.msra.mxu0 0.0
    %3882 = vmatprep.subr.mxu0 0.0
    %3883 = vmatpush1.msra.mxu0 0.0
    %3884 = vmatprep.subr.mxu0 0.0
    %3885 = vmatpush1.msra.mxu0 0.0
    %3886 = vmatprep.subr.mxu0 0.0
    %3887 = vmatpush1.msra.mxu0 0.0
    %3888 = vmatprep.subr.mxu0 0.0
    %3889 = vmatpush1.msra.mxu0 0.0
    %3890 = vmatprep.subr.mxu0 0.0
    %3891 = vmatpush1.msra.mxu0 0.0
    %3892 = vmatprep.subr.mxu0 0.0
    %3893 = vmatpush1.msra.mxu0 0.0
    %3894 = vmatprep.subr.mxu0 0.0
    %3895 = vmatpush1.msra.mxu0 0.0
    %3896 = vmatprep.subr.mxu0 0.0
    %3897 = vmatpush1.msra.mxu0 0.0
    %3898 = vmatprep.subr.mxu0 0.0
    %3899 = vmatpush1.msra.mxu0 0.0
    %3900 = vmatprep.subr.mxu0 0.0
    %3901 = vmatpush1.msra.mxu0 0.0
    %3902 = vmatprep.subr.mxu0 0.0
    %3903 = vmatpush1.msra.mxu0 0.0
    %3904 = vmatprep.subr.mxu0 0.0
    %3905 = vmatpush1.msra.mxu0 0.0
    %3906 = vmatprep.subr.mxu0 0.0
    %3907 = vmatpush1.msra.mxu0 0.0
    %3908 = vmatprep.subr.mxu0 0.0
    %3909 = vmatpush1.msra.mxu0 0.0
    %3910 = vmatprep.subr.mxu0 0.0
    %3911 = vmatpush1.msra.mxu0 0.0
    %3912 = vmatprep.subr.mxu0 0.0
    %3913 = vmatpush1.msra.mxu0 0.0
    %3914 = vmatprep.subr.mxu0 0.0
    %3915 = vmatpush1.msra.mxu0 0.0
    %3916 = vmatprep.subr.mxu0 0.0
    %3917 = vmatpush1.msra.mxu0 0.0
    %3918 = vmatprep.subr.mxu0 0.0
    %3919 = vmatpush1.msra.mxu0 0.0
    %3920 = vmatprep.subr.mxu0 0.0
    %3921 = vmatpush1.msra.mxu0 0.0
    %3922 = vmatprep.subr.mxu0 0.0
    %3923 = vmatpush1.msra.mxu0 0.0
    %3924 = vmatprep.subr.mxu0 0.0
    %3925 = vmatpush1.msra.mxu0 0.0
    %3926 = vmatprep.subr.mxu0 0.0
    %3927 = vmatpush1.msra.mxu0 0.0
    %3928 = vmatprep.subr.mxu0 0.0
    %3929 = vmatpush1.msra.mxu0 0.0
    %3930 = vmatprep.subr.mxu0 0.0
    %3931 = vmatpush1.msra.mxu0 0.0
    %3932 = vmatprep.subr.mxu0 0.0
    %3933 = vmatpush1.msra.mxu0 0.0
    %3934 = vmatprep.subr.mxu0 0.0
    %3935 = vmatpush1.msra.mxu0 0.0
    %3936 = vmatprep.mubr.f32.mxu0 0.0
    %3937 = vmatmul.mubr.f32.gmra.mrb[0].mxu0 %v3861
    %v3938 = vpop.f32.mrb[0].mxu0
    %v3939 = vadd.f32 %v3858, %v3938
    %v3940 = vpop.f32.mrb[0].mxu0
    %3941 = vmatprep.mubr.f32.mxu0 0.0
    %3942 = vmatmul.mubr.f32.gmra.mrb[0].mxu0 %v3864
    %v3943 = vpop.f32.mrb[0].mxu0
    %v3944 = vadd.f32 %v3858, %v3943
    %v3945 = vpop.f32.mrb[0].mxu0
    %3946 = vmatprep.mubr.f32.mxu0 0.0
    %3947 = vmatmul.mubr.f32.gmra.mrb[0].mxu0 %v3867
    %v3948 = vpop.f32.mrb[0].mxu0
    %v3949 = vadd.f32 %v3858, %v3948
    %v3950 = vpop.f32.mrb[0].mxu0
    %3951 = vmatprep.mubr.f32.mxu0 0.0
    %3952 = vmatmul.mubr.f32.gmra.mrb[0].mxu0 %v3870
    %v3953 = vpop.f32.mrb[0].mxu0
    %v3954 = vadd.f32 %v3858, %v3953
    %v3955 = vpop.f32.mrb[0].mxu0
    %3956 = vdwg.mxu0
    %v3957 = vmax.f32 %v3939, 0.0
    %v3958 = vmax.f32 %v3944, 0.0
    %v3959 = vmax.f32 %v3949, 0.0
    %v3960 = vmax.f32 %v3954, 0.0
    %s3961 = scalar_lea.vmem %s18, 32
    %v3962 = vld [vmem:[%s3961] sm:$0xff]
    %v3963 = vld [vmem:[%s3961 + $0x8] sm:$0xff]
    %v3964 = vld [vmem:[%s3961 + $0x10] sm:$0xff]
    %v3965 = vld [vmem:[%s3961 + $0x18] sm:$0xff]
    %s3966 = scalar_lea.vmem %s19, 1
    %v3967 = vld [vmem:[%s3966] sm:$0x1]
    %v3969 = vlaneseq
    %v3970 = vshrl.u32 %v3969, 7
    %v3971 = vsub.s32 0, %v3970
    %v3972 = vrot.slane %v3967, %v3971
    %v3975 = vsel %vm311, %v3957, 0
    %v3978 = vsel %vm311, %v3958, 0
    %v3981 = vsel %vm311, %v3959, 0
    %v3984 = vsel %vm311, %v3960, 0
    %3986 = vmatprep.subr.mxu0 0.0
    %3987 = vmatpush1.msra.mxu0 %v3962
    %3988 = vmatprep.subr.mxu0 0.0
    %3989 = vmatpush1.msra.mxu0 %v3963
    %3990 = vmatprep.subr.mxu0 0.0
    %3991 = vmatpush1.msra.mxu0 %v3964
    %3992 = vmatprep.subr.mxu0 0.0
    %3993 = vmatpush1.msra.mxu0 %v3965
    %3994 = vmatprep.subr.mxu0 0.0
    %3995 = vmatpush1.msra.mxu0 0.0
    %3996 = vmatprep.subr.mxu0 0.0
    %3997 = vmatpush1.msra.mxu0 0.0
    %3998 = vmatprep.subr.mxu0 0.0
    %3999 = vmatpush1.msra.mxu0 0.0
    %4000 = vmatprep.subr.mxu0 0.0
    %4001 = vmatpush1.msra.mxu0 0.0
    %4002 = vmatprep.subr.mxu0 0.0
    %4003 = vmatpush1.msra.mxu0 0.0
    %4004 = vmatprep.subr.mxu0 0.0
    %4005 = vmatpush1.msra.mxu0 0.0
    %4006 = vmatprep.subr.mxu0 0.0
    %4007 = vmatpush1.msra.mxu0 0.0
    %4008 = vmatprep.subr.mxu0 0.0
    %4009 = vmatpush1.msra.mxu0 0.0
    %4010 = vmatprep.subr.mxu0 0.0
    %4011 = vmatpush1.msra.mxu0 0.0
    %4012 = vmatprep.subr.mxu0 0.0
    %4013 = vmatpush1.msra.mxu0 0.0
    %4014 = vmatprep.subr.mxu0 0.0
    %4015 = vmatpush1.msra.mxu0 0.0
    %4016 = vmatprep.subr.mxu0 0.0
    %4017 = vmatpush1.msra.mxu0 0.0
    %4018 = vmatprep.subr.mxu0 0.0
    %4019 = vmatpush1.msra.mxu0 0.0
    %4020 = vmatprep.subr.mxu0 0.0
    %4021 = vmatpush1.msra.mxu0 0.0
    %4022 = vmatprep.subr.mxu0 0.0
    %4023 = vmatpush1.msra.mxu0 0.0
    %4024 = vmatprep.subr.mxu0 0.0
    %4025 = vmatpush1.msra.mxu0 0.0
    %4026 = vmatprep.subr.mxu0 0.0
    %4027 = vmatpush1.msra.mxu0 0.0
    %4028 = vmatprep.subr.mxu0 0.0
    %4029 = vmatpush1.msra.mxu0 0.0
    %4030 = vmatprep.subr.mxu0 0.0
    %4031 = vmatpush1.msra.mxu0 0.0
    %4032 = vmatprep.subr.mxu0 0.0
    %4033 = vmatpush1.msra.mxu0 0.0
    %4034 = vmatprep.subr.mxu0 0.0
    %4035 = vmatpush1.msra.mxu0 0.0
    %4036 = vmatprep.subr.mxu0 0.0
    %4037 = vmatpush1.msra.mxu0 0.0
    %4038 = vmatprep.subr.mxu0 0.0
    %4039 = vmatpush1.msra.mxu0 0.0
    %4040 = vmatprep.subr.mxu0 0.0
    %4041 = vmatpush1.msra.mxu0 0.0
    %4042 = vmatprep.subr.mxu0 0.0
    %4043 = vmatpush1.msra.mxu0 0.0
    %4044 = vmatprep.subr.mxu0 0.0
    %4045 = vmatpush1.msra.mxu0 0.0
    %4046 = vmatprep.subr.mxu0 0.0
    %4047 = vmatpush1.msra.mxu0 0.0
    %4048 = vmatprep.subr.mxu0 0.0
    %4049 = vmatpush1.msra.mxu0 0.0
    %4050 = vmatprep.mubr.f32.mxu0 0.0
    %4051 = vmatmul.mubr.f32.gmra.mrb[0].mxu0 %v3975
    %v4052 = vpop.f32.mrb[0].mxu0
    %v4053 = vadd.f32 %v3972, %v4052
    %v4054 = vpop.f32.mrb[0].mxu0
    %4055 = vmatprep.mubr.f32.mxu0 0.0
    %4056 = vmatmul.mubr.f32.gmra.mrb[0].mxu0 %v3978
    %v4057 = vpop.f32.mrb[0].mxu0
    %v4058 = vadd.f32 %v3972, %v4057
    %v4059 = vpop.f32.mrb[0].mxu0
    %4060 = vmatprep.mubr.f32.mxu0 0.0
    %4061 = vmatmul.mubr.f32.gmra.mrb[0].mxu0 %v3981
    %v4062 = vpop.f32.mrb[0].mxu0
    %v4063 = vadd.f32 %v3972, %v4062
    %v4064 = vpop.f32.mrb[0].mxu0
    %4065 = vmatprep.mubr.f32.mxu0 0.0
    %4066 = vmatmul.mubr.f32.gmra.mrb[0].mxu0 %v3984
    %v4067 = vpop.f32.mrb[0].mxu0
    %v4068 = vadd.f32 %v3972, %v4067
    %v4069 = vpop.f32.mrb[0].mxu0
    %4070 = vdwg.mxu0
    %4071 = vst.msk [vmem:[#allocation29] sm:$0xff] %vm311, %v4053
    %4072 = vst.msk [vmem:[#allocation29 + $0x8] sm:$0xff] %vm311, %v4058
    %4073 = vst.msk [vmem:[#allocation29 + $0x10] sm:$0xff] %vm311, %v4063
    %4074 = vst.msk [vmem:[#allocation29 + $0x18] sm:$0xff] %vm311, %v4068
    // Predicated region
    $region146: #{tpu_custom_call.1} parent=1 // pred_check
      _
    $region147: #{tpu_custom_call.1} parent=1 // pred_check_branch
      %4076 = sbr.rel (0) target = $region149
    $region148: #{tpu_custom_call.1} parent=1 // pred_region
      %s4078 = ssub.s32 512, 512
      %4079 = vsyncadd [#allocation5], %s4078
      %s4080 = sshll.u32 [#allocation29], 4
      %s4081 = int_to_ptr.vmem [resolvable:$true] %s4080
      %4086 = dma.vmem_to_hbm [thread:$0]  %s4081, 512, %s20, [#allocation5], 128, 128, 8
    $region149: #{tpu_custom_call.1} parent=1 // pred_fallthru
      _
    // Predicated region
    $region150: #{tpu_custom_call.1} parent=1 // pred_check
      _
    $region151: #{tpu_custom_call.1} parent=1 // pred_check_branch
      %4088 = sbr.rel (0) target = $region153
    $region152: #{tpu_custom_call.1} parent=1 // pred_region
      %4089 = dma.done [#allocation5], 512
    $region153: #{tpu_custom_call.1} parent=1 // pred_fallthru
      _
    %4090 = vsyncpa [#allocation4], 1
    %4091 = vsyncpa [#allocation7], 1
    %4092 = vsyncpa [#allocation10], 1
    %4093 = vsyncpa [#allocation13], 1
    %4094 = vsyncpa [#allocation16], 1
    %4095 = vsyncpa [#allocation19], 1
    %4096 = vsyncpa [#allocation22], 1
    %4097 = vsyncpa [#allocation25], 1
    %4098 = vsyncpa [#allocation28], 1
    %4099 = vsyncpa [#allocation5], 1

</llo_original>
